<compile_context>
chip_gen: v7x
topology: tpu7x:2x2x1
jax: 0.10.0
libtpu: 0.0.40
codegen_flags: <defaults>
</compile_context>

<pallas_src>
import functools

import jax
import jax.numpy as jnp
from jax.experimental import pallas as pl
from jax.experimental.pallas import tpu as pltpu


# ----------------------------- conv3x3 + ReLU -----------------------------

def _conv3x3_relu_kernel(x_ref, w_ref, b_ref, o_ref, cols_ref,
                         *, th, wd, cin, cout):
    # x_ref:    (1, H+2, W+2, Cin) bf16  -- whole padded image, batch-resident
    # w_ref:    (9*Cin, Cout)      bf16  -- resident for the whole call
    # b_ref:    (1, Cout)          f32
    # o_ref:    (1, TH*W, Cout)    bf16  -- flattened-spatial output tile
    # cols_ref: (TH*W, 9*Cin)      bf16  -- VMEM scratch (im2col tile)
    r0 = pl.program_id(1) * th                     # first output row of tile

    if wd % 16 == 0:
        # Whole row-tile per tap: (TH, W, Cin) -> (TH*W, Cin) is a layout-
        # preserving merge because W is a multiple of the bf16 sublane tile.
        for ky in range(3):
            for kx in range(3):
                t = ky * 3 + kx
                slab = x_ref[0, pl.ds(r0 + ky, th), pl.ds(kx, wd), :]
                cols_ref[:, pl.ds(t * cin, cin)] = slab.reshape(th * wd, cin)
    else:
        # Tiny spatial sizes (W in {2, 4, 8}): build cols row by row with pure
        # 2-D loads/stores (no value reshapes needed).
        for row in range(th):
            for ky in range(3):
                for kx in range(3):
                    t = ky * 3 + kx
                    piece = x_ref[0, r0 + row + ky, pl.ds(kx, wd), :]
                    cols_ref[pl.ds(row * wd, wd), pl.ds(t * cin, cin)] = piece

    # Single folded matmul over K = 9*Cin (bf16 operands, f32 accumulate).
    acc = jnp.dot(cols_ref[...], w_ref[...], preferred_element_type=jnp.float32)
    out = jnp.maximum(acc + b_ref[...], 0.0)       # bias + ReLU in f32
    o_ref[0] = out.astype(o_ref.dtype)


def conv3x3_relu(x, w, b):
    """x: (N,H,W,Cin) float, w: (9*Cin,Cout) bf16/f32, b: (1,Cout) f32.

    Returns (N,H,W,Cout) bf16.  3x3 conv, stride 1, padding 1, fused ReLU.
    """
    n, h, wd, cin = x.shape
    cout = w.shape[-1]
    assert w.shape[0] == 9 * cin

    xp = jnp.pad(x.astype(jnp.bfloat16), ((0, 0), (1, 1), (1, 1), (0, 0)))

    if wd % 16 == 0:                                # slab path
        th = max(1, min(h, 256 // wd))              # ~256-row matmul tiles
        while h % th:
            th -= 1
    else:                                           # per-row path (tiny maps)
        th = h
    grid = (n, h // th)

    kernel = functools.partial(_conv3x3_relu_kernel,
                               th=th, wd=wd, cin=cin, cout=cout)
    out = pl.pallas_call(
        kernel,
        out_shape=jax.ShapeDtypeStruct((n, h * wd, cout), jnp.bfloat16),
        grid=grid,
        in_specs=[
            # whole padded image; index_map ignores the row-tile axis so the
            # block stays resident (no re-DMA between row tiles).
            pl.BlockSpec((1, h + 2, wd + 2, cin), lambda i, j: (i, 0, 0, 0)),
            pl.BlockSpec((9 * cin, cout), lambda i, j: (0, 0)),
            pl.BlockSpec((1, cout), lambda i, j: (0, 0)),
        ],
        out_specs=pl.BlockSpec((1, th * wd, cout), lambda i, j: (i, j, 0)),
        scratch_shapes=[pltpu.VMEM((th * wd, 9 * cin), jnp.bfloat16)],
        compiler_params=pltpu.CompilerParams(
            dimension_semantics=("parallel", "parallel"),
            vmem_limit_bytes=32 * 1024 * 1024),
    )(xp, w.astype(jnp.bfloat16), b.astype(jnp.float32))
    return out.reshape(n, h, wd, cout)


# ------------------------------ maxpool 2x2 -------------------------------

def _maxpool2x2_kernel(x_ref, o_ref):
    # x_ref: (1, THO, 2, Wo, 2*C)   o_ref: (1, THO, Wo, C)
    c = o_ref.shape[-1]
    top = x_ref[0, :, 0, :, :]                      # (THO, Wo, 2C) even rows
    bot = x_ref[0, :, 1, :, :]                      # odd rows
    hm = jnp.maximum(top, bot)                      # max over the row pair
    # lanes [0,C) hold even columns, [C,2C) hold odd columns
    o_ref[0] = jnp.maximum(hm[:, :, :c], hm[:, :, c:])


def maxpool2x2(x):
    """x: (N,H,W,C) -> (N,H//2,W//2,C); matches nn.MaxPool2d(2,2) (floors)."""
    n, h, wd, c = x.shape
    ho, wo = h // 2, wd // 2
    xr = x.reshape(n, ho, 2, wo, 2 * c)             # free reshape, no transpose
    tho = max(1, min(ho, 512 // max(wo, 1)))
    while ho % tho:
        tho -= 1
    return pl.pallas_call(
        _maxpool2x2_kernel,
        out_shape=jax.ShapeDtypeStruct((n, ho, wo, c), x.dtype),
        grid=(n, ho // tho),
        in_specs=[pl.BlockSpec((1, tho, 2, wo, 2 * c),
                               lambda i, j: (i, j, 0, 0, 0))],
        out_specs=pl.BlockSpec((1, tho, wo, c), lambda i, j: (i, j, 0, 0)),
        compiler_params=pltpu.CompilerParams(
            dimension_semantics=("parallel", "parallel"),
            vmem_limit_bytes=32 * 1024 * 1024),
    )(xr)


# ------------------------------ VGG16 model -------------------------------

_VGG16_CFG = [(3, 64), (64, 64),                       # slice1
              (64, 128), (128, 128),                   # slice2 (after pool)
              (128, 256), (256, 256), (256, 256),      # slice3 (after pool)
              (256, 512), (512, 512), (512, 512),      # slice4 (after pool)
              (512, 512), (512, 512), (512, 512)]      # slice5 (after pool)


def init_vgg16_params(key):
    # TODO(synk): replace with real torchvision VGG16 weights for the actual
    #             perceptual loss; He-style init is for kernel benchmarking.
    params = []
    for cin, cout in _VGG16_CFG:
        key, kw, kb = jax.random.split(key, 3)
        std = (2.0 / (9 * cin)) ** 0.5
        w = (jax.random.normal(kw, (3, 3, cin, cout), jnp.float32) * std
             ).reshape(9 * cin, cout).astype(jnp.bfloat16)    # tap-major rows
        b = jax.random.normal(kb, (1, cout), jnp.float32) * 0.01
        params.append((w, b))
    return params


def vgg16_features(x_nchw, params):
    """Matches losses.Vgg16.forward: returns [h_relu1..h_relu5] in NCHW."""
    h = jnp.transpose(x_nchw, (0, 2, 3, 1))          # NCHW -> NHWC once
    # slice1
    h = conv3x3_relu(h, *params[0])
    h = conv3x3_relu(h, *params[1])
    h1 = h
    # slice2
    h = maxpool2x2(h)
    h = conv3x3_relu(h, *params[2])
    h = conv3x3_relu(h, *params[3])
    h2 = h
    # slice3
    h = maxpool2x2(h)
    h = conv3x3_relu(h, *params[4])
    h = conv3x3_relu(h, *params[5])
    h = conv3x3_relu(h, *params[6])
    h3 = h
    # slice4
    h = maxpool2x2(h)
    h = conv3x3_relu(h, *params[7])
    h = conv3x3_relu(h, *params[8])
    h = conv3x3_relu(h, *params[9])
    h4 = h
    # slice5
    h = maxpool2x2(h)
    h = conv3x3_relu(h, *params[10])
    h = conv3x3_relu(h, *params[11])
    h = conv3x3_relu(h, *params[12])
    h = maxpool2x2(h)
    h5 = h
    # only the returned features are transposed/cast (interface fidelity with
    # the NCHW PyTorch module); the inter-layer path stays NHWC bf16.
    to_nchw = lambda t: jnp.transpose(t, (0, 3, 1, 2)).astype(jnp.float32)
    return [to_nchw(h1), to_nchw(h2), to_nchw(h3), to_nchw(h4), to_nchw(h5)]


# --------------------------------- main ------------------------------------

if __name__ == "__main__":
    key = jax.random.PRNGKey(0)
    kx, kp, kc1, kc2 = jax.random.split(key, 4)

    # ---- unit checks vs pure-JAX references (both conv code paths + pool) ----
    def conv_ref(x, w, b):
        nn_, hh_, ww_, ci_ = x.shape
        xp = jnp.pad(x, ((0, 0), (1, 1), (1, 1), (0, 0)))
        cols = jnp.concatenate(
            [xp[:, ky:ky + hh_, kx:kx + ww_, :]
             for ky in range(3) for kx in range(3)], axis=-1)
        y = jnp.einsum('nhwk,ko->nhwo', cols, w) + b[0]
        return jnp.maximum(y, 0.0)

    for (hh, ww, ci, co) in [(16, 16, 32, 64), (4, 4, 64, 128)]:
        kc1, ka, kb_, kw_ = jax.random.split(kc1, 4)
        xt = jax.random.normal(ka, (1, hh, ww, ci), jnp.float32)
        wt = jax.random.normal(kw_, (9 * ci, co), jnp.float32) * (2.0 / (9 * ci)) ** 0.5
        bt = jax.random.normal(kb_, (1, co), jnp.float32) * 0.01
        got = conv3x3_relu(xt, wt, bt).astype(jnp.float32)
        want = conv_ref(xt.astype(jnp.bfloat16).astype(jnp.float32),
                        wt.astype(jnp.bfloat16).astype(jnp.float32), bt)
        assert jnp.allclose(got, want, rtol=3e-2, atol=3e-2), (hh, ww, ci, co)

    xpool = jax.random.normal(kc2, (2, 8, 8, 64), jnp.float32).astype(jnp.bfloat16)
    gotp = maxpool2x2(xpool).astype(jnp.float32)
    wantp = xpool.astype(jnp.float32).reshape(2, 4, 2, 4, 2, 64).max(axis=(2, 4))
    assert jnp.allclose(gotp, wantp), "maxpool mismatch"

    # ---- full VGG16 feature extractor ----
    # PyTorch-style NCHW input; spatial 32 keeps all 5 maxpools valid (32 -> 1)
    x = jax.random.normal(kx, (2, 3, 32, 32), jnp.float32)
    params = init_vgg16_params(kp)

    feats = jax.jit(vgg16_features)(x, params)
    feats = jax.block_until_ready(feats)

    expected = [(2, 64, 32, 32), (2, 128, 16, 16), (2, 256, 8, 8),
                (2, 512, 4, 4), (2, 512, 1, 1)]
    assert [tuple(f.shape) for f in feats] == expected, \
        [tuple(f.shape) for f in feats]
    print("KERNEL_OK")
</pallas_src>

<mosaic_0001>
module attributes {stable_mosaic.version = 11 : i64} {
  func.func @_conv3x3_relu_kernel(%arg0: i32, %arg1: i32, %arg2: memref<1x18x18x32xbf16, #tpu.memory_space<vmem>>, %arg3: memref<288x64xbf16, #tpu.memory_space<vmem>>, %arg4: memref<1x64xf32, #tpu.memory_space<vmem>>, %arg5: memref<1x256x64xbf16, #tpu.memory_space<vmem>>, %arg6: memref<256x288xbf16, #tpu.memory_space<vmem>>) attributes {dimension_semantics = [#tpu.dimension_semantics<parallel>, #tpu.dimension_semantics<parallel>], iteration_bounds = array<i64: 1, 1>, scalar_prefetch = 0 : i64, scratch_operands = 1 : i64, tpu.core_type = #tpu.core_type<tc>, window_params = [{transform_indices = @transform_0, window_bounds = array<i64: 1, 18, 18, 32>}, {pipeline_mode = #tpu.pipeline_mode<synchronous>, transform_indices = @transform_1, window_bounds = array<i64: 288, 64>}, {pipeline_mode = #tpu.pipeline_mode<synchronous>, transform_indices = @transform_2, window_bounds = array<i64: 1, 64>}, {transform_indices = @transform_3, window_bounds = array<i64: 1, 256, 64>}]} {
    %c16_i32 = arith.constant 16 : i32
    %0 = arith.muli %arg1, %c16_i32 : i32
    %c0_i32 = arith.constant 0 : i32
    %1 = arith.addi %0, %c0_i32 : i32
    %c0 = arith.constant 0 : index
    %2 = arith.index_cast %1 : i32 to index
    %c0_0 = arith.constant 0 : index
    %c0_1 = arith.constant 0 : index
    %3 = vector.load %arg2[%c0, %2, %c0_0, %c0_1] : memref<1x18x18x32xbf16, #tpu.memory_space<vmem>>, vector<1x16x16x32xbf16>
    %4 = vector.shape_cast %3 : vector<1x16x16x32xbf16> to vector<16x16x32xbf16>
    %5 = vector.shape_cast %4 : vector<16x16x32xbf16> to vector<256x32xbf16>
    %c0_2 = arith.constant 0 : index
    %c0_3 = arith.constant 0 : index
    %6 = vector.load %arg6[%c0_2, %c0_3] : memref<256x288xbf16, #tpu.memory_space<vmem>>, vector<256x32xbf16>
    tpu.vector_store %arg6[%c0_2, %c0_3], %5 {strides = array<i32>} : memref<256x288xbf16, #tpu.memory_space<vmem>>, vector<256x32xbf16>,
    %c0_i32_4 = arith.constant 0 : i32
    %7 = arith.addi %0, %c0_i32_4 : i32
    %c0_5 = arith.constant 0 : index
    %8 = arith.index_cast %7 : i32 to index
    %c1 = arith.constant 1 : index
    %c0_6 = arith.constant 0 : index
    %9 = vector.load %arg2[%c0_5, %8, %c1, %c0_6] : memref<1x18x18x32xbf16, #tpu.memory_space<vmem>>, vector<1x16x16x32xbf16>
    %10 = vector.shape_cast %9 : vector<1x16x16x32xbf16> to vector<16x16x32xbf16>
    %11 = vector.shape_cast %10 : vector<16x16x32xbf16> to vector<256x32xbf16>
    %c0_7 = arith.constant 0 : index
    %c32 = arith.constant 32 : index
    %12 = vector.load %arg6[%c0_7, %c32] : memref<256x288xbf16, #tpu.memory_space<vmem>>, vector<256x32xbf16>
    tpu.vector_store %arg6[%c0_7, %c32], %11 {strides = array<i32>} : memref<256x288xbf16, #tpu.memory_space<vmem>>, vector<256x32xbf16>,
    %c0_i32_8 = arith.constant 0 : i32
    %13 = arith.addi %0, %c0_i32_8 : i32
    %c0_9 = arith.constant 0 : index
    %14 = arith.index_cast %13 : i32 to index
    %c2 = arith.constant 2 : index
    %c0_10 = arith.constant 0 : index
    %15 = vector.load %arg2[%c0_9, %14, %c2, %c0_10] : memref<1x18x18x32xbf16, #tpu.memory_space<vmem>>, vector<1x16x16x32xbf16>
    %16 = vector.shape_cast %15 : vector<1x16x16x32xbf16> to vector<16x16x32xbf16>
    %17 = vector.shape_cast %16 : vector<16x16x32xbf16> to vector<256x32xbf16>
    %c0_11 = arith.constant 0 : index
    %c64 = arith.constant 64 : index
    %18 = vector.load %arg6[%c0_11, %c64] : memref<256x288xbf16, #tpu.memory_space<vmem>>, vector<256x32xbf16>
    tpu.vector_store %arg6[%c0_11, %c64], %17 {strides = array<i32>} : memref<256x288xbf16, #tpu.memory_space<vmem>>, vector<256x32xbf16>,
    %c1_i32 = arith.constant 1 : i32
    %19 = arith.addi %0, %c1_i32 : i32
    %c0_12 = arith.constant 0 : index
    %20 = arith.index_cast %19 : i32 to index
    %c0_13 = arith.constant 0 : index
    %c0_14 = arith.constant 0 : index
    %21 = vector.load %arg2[%c0_12, %20, %c0_13, %c0_14] : memref<1x18x18x32xbf16, #tpu.memory_space<vmem>>, vector<1x16x16x32xbf16>
    %22 = vector.shape_cast %21 : vector<1x16x16x32xbf16> to vector<16x16x32xbf16>
    %23 = vector.shape_cast %22 : vector<16x16x32xbf16> to vector<256x32xbf16>
    %c0_15 = arith.constant 0 : index
    %c96 = arith.constant 96 : index
    %24 = vector.load %arg6[%c0_15, %c96] : memref<256x288xbf16, #tpu.memory_space<vmem>>, vector<256x32xbf16>
    tpu.vector_store %arg6[%c0_15, %c96], %23 {strides = array<i32>} : memref<256x288xbf16, #tpu.memory_space<vmem>>, vector<256x32xbf16>,
    %c1_i32_16 = arith.constant 1 : i32
    %25 = arith.addi %0, %c1_i32_16 : i32
    %c0_17 = arith.constant 0 : index
    %26 = arith.index_cast %25 : i32 to index
    %c1_18 = arith.constant 1 : index
    %c0_19 = arith.constant 0 : index
    %27 = vector.load %arg2[%c0_17, %26, %c1_18, %c0_19] : memref<1x18x18x32xbf16, #tpu.memory_space<vmem>>, vector<1x16x16x32xbf16>
    %28 = vector.shape_cast %27 : vector<1x16x16x32xbf16> to vector<16x16x32xbf16>
    %29 = vector.shape_cast %28 : vector<16x16x32xbf16> to vector<256x32xbf16>
    %c0_20 = arith.constant 0 : index
    %c128 = arith.constant 128 : index
    %30 = vector.load %arg6[%c0_20, %c128] : memref<256x288xbf16, #tpu.memory_space<vmem>>, vector<256x32xbf16>
    tpu.vector_store %arg6[%c0_20, %c128], %29 {strides = array<i32>} : memref<256x288xbf16, #tpu.memory_space<vmem>>, vector<256x32xbf16>,
    %c1_i32_21 = arith.constant 1 : i32
    %31 = arith.addi %0, %c1_i32_21 : i32
    %c0_22 = arith.constant 0 : index
    %32 = arith.index_cast %31 : i32 to index
    %c2_23 = arith.constant 2 : index
    %c0_24 = arith.constant 0 : index
    %33 = vector.load %arg2[%c0_22, %32, %c2_23, %c0_24] : memref<1x18x18x32xbf16, #tpu.memory_space<vmem>>, vector<1x16x16x32xbf16>
    %34 = vector.shape_cast %33 : vector<1x16x16x32xbf16> to vector<16x16x32xbf16>
    %35 = vector.shape_cast %34 : vector<16x16x32xbf16> to vector<256x32xbf16>
    %c0_25 = arith.constant 0 : index
    %c160 = arith.constant 160 : index
    %36 = vector.load %arg6[%c0_25, %c160] : memref<256x288xbf16, #tpu.memory_space<vmem>>, vector<256x32xbf16>
    tpu.vector_store %arg6[%c0_25, %c160], %35 {strides = array<i32>} : memref<256x288xbf16, #tpu.memory_space<vmem>>, vector<256x32xbf16>,
    %c2_i32 = arith.constant 2 : i32
    %37 = arith.addi %0, %c2_i32 : i32
    %c0_26 = arith.constant 0 : index
    %38 = arith.index_cast %37 : i32 to index
    %c0_27 = arith.constant 0 : index
    %c0_28 = arith.constant 0 : index
    %39 = vector.load %arg2[%c0_26, %38, %c0_27, %c0_28] : memref<1x18x18x32xbf16, #tpu.memory_space<vmem>>, vector<1x16x16x32xbf16>
    %40 = vector.shape_cast %39 : vector<1x16x16x32xbf16> to vector<16x16x32xbf16>
    %41 = vector.shape_cast %40 : vector<16x16x32xbf16> to vector<256x32xbf16>
    %c0_29 = arith.constant 0 : index
    %c192 = arith.constant 192 : index
    %42 = vector.load %arg6[%c0_29, %c192] : memref<256x288xbf16, #tpu.memory_space<vmem>>, vector<256x32xbf16>
    tpu.vector_store %arg6[%c0_29, %c192], %41 {strides = array<i32>} : memref<256x288xbf16, #tpu.memory_space<vmem>>, vector<256x32xbf16>,
    %c2_i32_30 = arith.constant 2 : i32
    %43 = arith.addi %0, %c2_i32_30 : i32
    %c0_31 = arith.constant 0 : index
    %44 = arith.index_cast %43 : i32 to index
    %c1_32 = arith.constant 1 : index
    %c0_33 = arith.constant 0 : index
    %45 = vector.load %arg2[%c0_31, %44, %c1_32, %c0_33] : memref<1x18x18x32xbf16, #tpu.memory_space<vmem>>, vector<1x16x16x32xbf16>
    %46 = vector.shape_cast %45 : vector<1x16x16x32xbf16> to vector<16x16x32xbf16>
    %47 = vector.shape_cast %46 : vector<16x16x32xbf16> to vector<256x32xbf16>
    %c0_34 = arith.constant 0 : index
    %c224 = arith.constant 224 : index
    %48 = vector.load %arg6[%c0_34, %c224] : memref<256x288xbf16, #tpu.memory_space<vmem>>, vector<256x32xbf16>
    tpu.vector_store %arg6[%c0_34, %c224], %47 {strides = array<i32>} : memref<256x288xbf16, #tpu.memory_space<vmem>>, vector<256x32xbf16>,
    %c2_i32_35 = arith.constant 2 : i32
    %49 = arith.addi %0, %c2_i32_35 : i32
    %c0_36 = arith.constant 0 : index
    %50 = arith.index_cast %49 : i32 to index
    %c2_37 = arith.constant 2 : index
    %c0_38 = arith.constant 0 : index
    %51 = vector.load %arg2[%c0_36, %50, %c2_37, %c0_38] : memref<1x18x18x32xbf16, #tpu.memory_space<vmem>>, vector<1x16x16x32xbf16>
    %52 = vector.shape_cast %51 : vector<1x16x16x32xbf16> to vector<16x16x32xbf16>
    %53 = vector.shape_cast %52 : vector<16x16x32xbf16> to vector<256x32xbf16>
    %c0_39 = arith.constant 0 : index
    %c256 = arith.constant 256 : index
    %54 = vector.load %arg6[%c0_39, %c256] : memref<256x288xbf16, #tpu.memory_space<vmem>>, vector<256x32xbf16>
    tpu.vector_store %arg6[%c0_39, %c256], %53 {strides = array<i32>} : memref<256x288xbf16, #tpu.memory_space<vmem>>, vector<256x32xbf16>,
    %c0_40 = arith.constant 0 : index
    %c0_41 = arith.constant 0 : index
    %55 = vector.load %arg6[%c0_40, %c0_41] : memref<256x288xbf16, #tpu.memory_space<vmem>>, vector<256x288xbf16>
    %c0_42 = arith.constant 0 : index
    %c0_43 = arith.constant 0 : index
    %56 = vector.load %arg3[%c0_42, %c0_43] : memref<288x64xbf16, #tpu.memory_space<vmem>>, vector<288x64xbf16>
    %cst = arith.constant dense<0.000000e+00> : vector<256x64xf32>
    %57 = tpu.matmul %55, %56, %cst {dimension_numbers = #tpu.dot_dimension_numbers<[1], [0], [0], [1], [0, 0, 1, 1], [], []>} : vector<256x288xbf16>, vector<288x64xbf16>, vector<256x64xf32> -> vector<256x64xf32>
    %c0_44 = arith.constant 0 : index
    %c0_45 = arith.constant 0 : index
    %58 = vector.load %arg4[%c0_44, %c0_45] : memref<1x64xf32, #tpu.memory_space<vmem>>, vector<1x64xf32>
    %59 = vector.broadcast %58 : vector<1x64xf32> to vector<256x64xf32>
    %60 = arith.addf %57, %59 : vector<256x64xf32>
    %cst_46 = arith.constant 0.000000e+00 : f32
    %61 = vector.broadcast %cst_46 : f32 to vector<256x64xf32>
    %62 = arith.maximumf %60, %61 : vector<256x64xf32>
    %63 = arith.truncf %62 : vector<256x64xf32> to vector<256x64xbf16>
    %c0_47 = arith.constant 0 : index
    %c0_48 = arith.constant 0 : index
    %c0_49 = arith.constant 0 : index
    %64 = vector.load %arg5[%c0_47, %c0_48, %c0_49] : memref<1x256x64xbf16, #tpu.memory_space<vmem>>, vector<1x256x64xbf16>
    %65 = vector.shape_cast %64 : vector<1x256x64xbf16> to vector<256x64xbf16>
    %66 = vector.shape_cast %63 : vector<256x64xbf16> to vector<1x256x64xbf16>
    tpu.vector_store %arg5[%c0_47, %c0_48, %c0_49], %66 {strides = array<i32>} : memref<1x256x64xbf16, #tpu.memory_space<vmem>>, vector<1x256x64xbf16>,
    return
  }
  func.func @transform_0(%arg0: i32, %arg1: i32) -> (i32, i32, i32, i32) {
    %c0_i32 = arith.constant 0 : i32
    %c0_i32_0 = arith.constant 0 : i32
    %c0_i32_1 = arith.constant 0 : i32
    %c0_i32_2 = arith.constant 0 : i32
    return %arg0, %c0_i32, %c0_i32_0, %c0_i32_1 : i32, i32, i32, i32
  }
  func.func @transform_1(%arg0: i32, %arg1: i32) -> (i32, i32) {
    %c0_i32 = arith.constant 0 : i32
    %c0_i32_0 = arith.constant 0 : i32
    %c0_i32_1 = arith.constant 0 : i32
    return %c0_i32, %c0_i32_0 : i32, i32
  }
  func.func @transform_2(%arg0: i32, %arg1: i32) -> (i32, i32) {
    %c0_i32 = arith.constant 0 : i32
    %c0_i32_0 = arith.constant 0 : i32
    %c0_i32_1 = arith.constant 0 : i32
    return %c0_i32, %c0_i32_0 : i32, i32
  }
  func.func @transform_3(%arg0: i32, %arg1: i32) -> (i32, i32, i32) {
    %c0_i32 = arith.constant 0 : i32
    %c0_i32_0 = arith.constant 0 : i32
    return %arg0, %arg1, %c0_i32 : i32, i32, i32
  }
}

</mosaic_0001>

<llo_original>
// kernel: tpu_custom_call.1
$region0: #{tpu_custom_call.1}
  #allocation0 [shape = 'u32[]', space=smem, size = 0x4, offset = 0x4, fixed_abs, tag = 'smem constant byte address 0x4 - core index']
  #allocation1 [shape = 'u32[144,128]{1,0:T(1,128)}', space=vmem, size = 0x12000, scoped, tag = 'internal scratch']
  #allocation2 [shape = 'bf16[256,288]{1,0:T(16,128)(2,1)}', space=vmem, size = 0x30000, scoped, tag = 'scratch operand']
  %s0 = inlined_call_operand.vmem [shape: bf16[1,18,18,32], index: 0, kind: input, shape index: {}]
  %s1 = inlined_call_operand.vmem [shape: bf16[288,64], index: 1, kind: input, shape index: {}]
  %s2 = inlined_call_operand.vmem [shape: f32[1,64], index: 2, kind: input, shape index: {}]
  %s3 = inlined_call_operand.vmem [shape: bf16[1,256,64], index: 3, kind: output, shape index: {}]
  %s4 = sld [smem:[#allocation0]]
  $region22: #{tpu_custom_call.1} parent=0
    _
  %s6 = ssub.s32 1, %s4
  %s7 = scalar_select 0, %s6, %s4
  // Predicated region
  $region2: #{tpu_custom_call.1} parent=0 // pred_check
    _
  $region3: #{tpu_custom_call.1} parent=0 // pred_check_branch
    %9 = sbr.rel (0) target = $region5
  $region4: #{tpu_custom_call.1} parent=0 // pred_region
    _
  $region5: #{tpu_custom_call.1} parent=0 // pred_fallthru
    _
  // Predicated region
  $region6: #{tpu_custom_call.1} parent=0 // pred_check
    _
  $region7: #{tpu_custom_call.1} parent=0 // pred_check_branch
    %11 = sbr.rel (0) target = $region9
  $region8: #{tpu_custom_call.1} parent=0 // pred_region
    _
  $region9: #{tpu_custom_call.1} parent=0 // pred_fallthru
    _
  // Predicated region
  $region10: #{tpu_custom_call.1} parent=0 // pred_check
    _
  $region11: #{tpu_custom_call.1} parent=0 // pred_check_branch
    %13 = sbr.rel (0) target = $region13
  $region12: #{tpu_custom_call.1} parent=0 // pred_region
    _
  $region13: #{tpu_custom_call.1} parent=0 // pred_fallthru
    _
  %s15 = smul.u32 0, 16
  %s16 = smul.u32 %s15, 3
  %s17 = smul.addr %s16, 4
  %s18 = scalar_lea.vmem %s0, %s17
  %v19 = vld [vmem:[%s18] sm:$0xf]
  %v20 = vld [vmem:[%s18 + $0x4] sm:$0xf]
  %v21 = vld [vmem:[%s18 + $0xc] sm:$0xf]
  %v22 = vld [vmem:[%s18 + $0x10] sm:$0xf]
  %v23 = vld [vmem:[%s18 + $0x18] sm:$0xf]
  %v24 = vld [vmem:[%s18 + $0x1c] sm:$0xf]
  %v25 = vld [vmem:[%s18 + $0x24] sm:$0xf]
  %v26 = vld [vmem:[%s18 + $0x28] sm:$0xf]
  %v27 = vld [vmem:[%s18 + $0x30] sm:$0xf]
  %v28 = vld [vmem:[%s18 + $0x34] sm:$0xf]
  %v29 = vld [vmem:[%s18 + $0x3c] sm:$0xf]
  %v30 = vld [vmem:[%s18 + $0x40] sm:$0xf]
  %v31 = vld [vmem:[%s18 + $0x48] sm:$0xf]
  %v32 = vld [vmem:[%s18 + $0x4c] sm:$0xf]
  %v33 = vld [vmem:[%s18 + $0x54] sm:$0xf]
  %v34 = vld [vmem:[%s18 + $0x58] sm:$0xf]
  %v35 = vld [vmem:[%s18 + $0x60] sm:$0xf]
  %v36 = vld [vmem:[%s18 + $0x64] sm:$0xf]
  %v37 = vld [vmem:[%s18 + $0x6c] sm:$0xf]
  %v38 = vld [vmem:[%s18 + $0x70] sm:$0xf]
  %v39 = vld [vmem:[%s18 + $0x78] sm:$0xf]
  %v40 = vld [vmem:[%s18 + $0x7c] sm:$0xf]
  %v41 = vld [vmem:[%s18 + $0x84] sm:$0xf]
  %v42 = vld [vmem:[%s18 + $0x88] sm:$0xf]
  %v43 = vld [vmem:[%s18 + $0x90] sm:$0xf]
  %v44 = vld [vmem:[%s18 + $0x94] sm:$0xf]
  %v45 = vld [vmem:[%s18 + $0x9c] sm:$0xf]
  %v46 = vld [vmem:[%s18 + $0xa0] sm:$0xf]
  %v47 = vld [vmem:[%s18 + $0xa8] sm:$0xf]
  %v48 = vld [vmem:[%s18 + $0xac] sm:$0xf]
  %v49 = vld [vmem:[%s18 + $0xb4] sm:$0xf]
  %v50 = vld [vmem:[%s18 + $0xb8] sm:$0xf]
  %v83 = vunpack.c.l.b16 %v19
  %v84 = vunpack.c.l.b16 %v20
  %v85 = vunpack.c.l.b16 %v21
  %v86 = vunpack.c.l.b16 %v22
  %v87 = vunpack.c.l.b16 %v23
  %v88 = vunpack.c.l.b16 %v24
  %v89 = vunpack.c.l.b16 %v25
  %v90 = vunpack.c.l.b16 %v26
  %v91 = vunpack.c.l.b16 %v27
  %v92 = vunpack.c.l.b16 %v28
  %v93 = vunpack.c.l.b16 %v29
  %v94 = vunpack.c.l.b16 %v30
  %v95 = vunpack.c.l.b16 %v31
  %v96 = vunpack.c.l.b16 %v32
  %v97 = vunpack.c.l.b16 %v33
  %v98 = vunpack.c.l.b16 %v34
  %v99 = vunpack.c.l.b16 %v35
  %v100 = vunpack.c.l.b16 %v36
  %v101 = vunpack.c.l.b16 %v37
  %v102 = vunpack.c.l.b16 %v38
  %v103 = vunpack.c.l.b16 %v39
  %v104 = vunpack.c.l.b16 %v40
  %v105 = vunpack.c.l.b16 %v41
  %v106 = vunpack.c.l.b16 %v42
  %v107 = vunpack.c.l.b16 %v43
  %v108 = vunpack.c.l.b16 %v44
  %v109 = vunpack.c.l.b16 %v45
  %v110 = vunpack.c.l.b16 %v46
  %v111 = vunpack.c.l.b16 %v47
  %v112 = vunpack.c.l.b16 %v48
  %v113 = vunpack.c.l.b16 %v49
  %v114 = vunpack.c.l.b16 %v50
  %v115 = vpack.c.b16 %v84, %v83
  %v116 = vpack.c.b16 %v86, %v85
  %v117 = vpack.c.b16 %v88, %v87
  %v118 = vpack.c.b16 %v90, %v89
  %v119 = vpack.c.b16 %v92, %v91
  %v120 = vpack.c.b16 %v94, %v93
  %v121 = vpack.c.b16 %v96, %v95
  %v122 = vpack.c.b16 %v98, %v97
  %v123 = vpack.c.b16 %v100, %v99
  %v124 = vpack.c.b16 %v102, %v101
  %v125 = vpack.c.b16 %v104, %v103
  %v126 = vpack.c.b16 %v106, %v105
  %v127 = vpack.c.b16 %v108, %v107
  %v128 = vpack.c.b16 %v110, %v109
  %v129 = vpack.c.b16 %v112, %v111
  %v130 = vpack.c.b16 %v114, %v113
  %vm147 = vcmask 261120
  %148 = vst.msk [vmem:[#allocation2] sm:$0xff] %vm147, %v115
  %149 = vst.msk [vmem:[#allocation2 + $0x18] sm:$0xff] %vm147, %v116
  %150 = vst.msk [vmem:[#allocation2 + $0x30] sm:$0xff] %vm147, %v117
  %151 = vst.msk [vmem:[#allocation2 + $0x48] sm:$0xff] %vm147, %v118
  %152 = vst.msk [vmem:[#allocation2 + $0x60] sm:$0xff] %vm147, %v119
  %153 = vst.msk [vmem:[#allocation2 + $0x78] sm:$0xff] %vm147, %v120
  %154 = vst.msk [vmem:[#allocation2 + $0x90] sm:$0xff] %vm147, %v121
  %155 = vst.msk [vmem:[#allocation2 + $0xa8] sm:$0xff] %vm147, %v122
  %156 = vst.msk [vmem:[#allocation2 + $0xc0] sm:$0xff] %vm147, %v123
  %157 = vst.msk [vmem:[#allocation2 + $0xd8] sm:$0xff] %vm147, %v124
  %158 = vst.msk [vmem:[#allocation2 + $0xf0] sm:$0xff] %vm147, %v125
  %159 = vst.msk [vmem:[#allocation2 + $0x108] sm:$0xff] %vm147, %v126
  %160 = vst.msk [vmem:[#allocation2 + $0x120] sm:$0xff] %vm147, %v127
  %161 = vst.msk [vmem:[#allocation2 + $0x138] sm:$0xff] %vm147, %v128
  %162 = vst.msk [vmem:[#allocation2 + $0x150] sm:$0xff] %vm147, %v129
  %163 = vst.msk [vmem:[#allocation2 + $0x168] sm:$0xff] %vm147, %v130
  %v164 = vld [vmem:[%s18] sm:$0xf]
  %v165 = vld [vmem:[%s18 + $0x4] sm:$0xf]
  %v166 = vld [vmem:[%s18 + $0x8] sm:$0x1]
  %v167 = vld [vmem:[%s18 + $0xc] sm:$0xf]
  %v168 = vld [vmem:[%s18 + $0x10] sm:$0xf]
  %v169 = vld [vmem:[%s18 + $0x14] sm:$0x1]
  %v170 = vld [vmem:[%s18 + $0x18] sm:$0xf]
  %v171 = vld [vmem:[%s18 + $0x1c] sm:$0xf]
  %v172 = vld [vmem:[%s18 + $0x20] sm:$0x1]
  %v173 = vld [vmem:[%s18 + $0x24] sm:$0xf]
  %v174 = vld [vmem:[%s18 + $0x28] sm:$0xf]
  %v175 = vld [vmem:[%s18 + $0x2c] sm:$0x1]
  %v176 = vld [vmem:[%s18 + $0x30] sm:$0xf]
  %v177 = vld [vmem:[%s18 + $0x34] sm:$0xf]
  %v178 = vld [vmem:[%s18 + $0x38] sm:$0x1]
  %v179 = vld [vmem:[%s18 + $0x3c] sm:$0xf]
  %v180 = vld [vmem:[%s18 + $0x40] sm:$0xf]
  %v181 = vld [vmem:[%s18 + $0x44] sm:$0x1]
  %v182 = vld [vmem:[%s18 + $0x48] sm:$0xf]
  %v183 = vld [vmem:[%s18 + $0x4c] sm:$0xf]
  %v184 = vld [vmem:[%s18 + $0x50] sm:$0x1]
  %v185 = vld [vmem:[%s18 + $0x54] sm:$0xf]
  %v186 = vld [vmem:[%s18 + $0x58] sm:$0xf]
  %v187 = vld [vmem:[%s18 + $0x5c] sm:$0x1]
  %v188 = vld [vmem:[%s18 + $0x60] sm:$0xf]
  %v189 = vld [vmem:[%s18 + $0x64] sm:$0xf]
  %v190 = vld [vmem:[%s18 + $0x68] sm:$0x1]
  %v191 = vld [vmem:[%s18 + $0x6c] sm:$0xf]
  %v192 = vld [vmem:[%s18 + $0x70] sm:$0xf]
  %v193 = vld [vmem:[%s18 + $0x74] sm:$0x1]
  %v194 = vld [vmem:[%s18 + $0x78] sm:$0xf]
  %v195 = vld [vmem:[%s18 + $0x7c] sm:$0xf]
  %v196 = vld [vmem:[%s18 + $0x80] sm:$0x1]
  %v197 = vld [vmem:[%s18 + $0x84] sm:$0xf]
  %v198 = vld [vmem:[%s18 + $0x88] sm:$0xf]
  %v199 = vld [vmem:[%s18 + $0x8c] sm:$0x1]
  %v200 = vld [vmem:[%s18 + $0x90] sm:$0xf]
  %v201 = vld [vmem:[%s18 + $0x94] sm:$0xf]
  %v202 = vld [vmem:[%s18 + $0x98] sm:$0x1]
  %v203 = vld [vmem:[%s18 + $0x9c] sm:$0xf]
  %v204 = vld [vmem:[%s18 + $0xa0] sm:$0xf]
  %v205 = vld [vmem:[%s18 + $0xa4] sm:$0x1]
  %v206 = vld [vmem:[%s18 + $0xa8] sm:$0xf]
  %v207 = vld [vmem:[%s18 + $0xac] sm:$0xf]
  %v208 = vld [vmem:[%s18 + $0xb0] sm:$0x1]
  %v209 = vld [vmem:[%s18 + $0xb4] sm:$0xf]
  %v210 = vld [vmem:[%s18 + $0xb8] sm:$0xf]
  %v211 = vld [vmem:[%s18 + $0xbc] sm:$0x1]
  %vm212 = vsmask.f32 3328
  %vm213 = vsmask.f32 7440
  %vm214 = vmor %vm212, %vm213
  %v216 = vshrl.u32 %v164, 16
  %v218 = vrot.slane %v216, 4
  %v219 = vshll.u32 %v164, 16
  %v221 = vrot.slane %v219, 5
  %v222 = vor.u32 %v218, %v221
  %v223 = vrot.slane %v222, 4
  %v225 = vshll.u32 %v165, 16
  %v227 = vrot.slane %v225, 5
  %v228 = vsel %vm214, %v223, %v227
  %v229 = vshrl.u32 %v165, 16
  %v231 = vrot.slane %v229, 4
  %v232 = vor.u32 %v231, %v227
  %v233 = vrot.slane %v232, 4
  %v235 = vshll.u32 %v166, 16
  %v237 = vrot.slane %v235, 5
  %v238 = vsel %vm214, %v233, %v237
  %v240 = vshrl.u32 %v167, 16
  %v242 = vrot.slane %v240, 4
  %v243 = vshll.u32 %v167, 16
  %v245 = vrot.slane %v243, 5
  %v246 = vor.u32 %v242, %v245
  %v247 = vrot.slane %v246, 4
  %v249 = vshll.u32 %v168, 16
  %v251 = vrot.slane %v249, 5
  %v252 = vsel %vm214, %v247, %v251
  %v253 = vshrl.u32 %v168, 16
  %v255 = vrot.slane %v253, 4
  %v256 = vor.u32 %v255, %v251
  %v257 = vrot.slane %v256, 4
  %v259 = vshll.u32 %v169, 16
  %v261 = vrot.slane %v259, 5
  %v262 = vsel %vm214, %v257, %v261
  %v264 = vshrl.u32 %v170, 16
  %v266 = vrot.slane %v264, 4
  %v267 = vshll.u32 %v170, 16
  %v269 = vrot.slane %v267, 5
  %v270 = vor.u32 %v266, %v269
  %v271 = vrot.slane %v270, 4
  %v273 = vshll.u32 %v171, 16
  %v275 = vrot.slane %v273, 5
  %v276 = vsel %vm214, %v271, %v275
  %v277 = vshrl.u32 %v171, 16
  %v279 = vrot.slane %v277, 4
  %v280 = vor.u32 %v279, %v275
  %v281 = vrot.slane %v280, 4
  %v283 = vshll.u32 %v172, 16
  %v285 = vrot.slane %v283, 5
  %v286 = vsel %vm214, %v281, %v285
  %v288 = vshrl.u32 %v173, 16
  %v290 = vrot.slane %v288, 4
  %v291 = vshll.u32 %v173, 16
  %v293 = vrot.slane %v291, 5
  %v294 = vor.u32 %v290, %v293
  %v295 = vrot.slane %v294, 4
  %v297 = vshll.u32 %v174, 16
  %v299 = vrot.slane %v297, 5
  %v300 = vsel %vm214, %v295, %v299
  %v301 = vshrl.u32 %v174, 16
  %v303 = vrot.slane %v301, 4
  %v304 = vor.u32 %v303, %v299
  %v305 = vrot.slane %v304, 4
  %v307 = vshll.u32 %v175, 16
  %v309 = vrot.slane %v307, 5
  %v310 = vsel %vm214, %v305, %v309
  %v312 = vshrl.u32 %v176, 16
  %v314 = vrot.slane %v312, 4
  %v315 = vshll.u32 %v176, 16
  %v317 = vrot.slane %v315, 5
  %v318 = vor.u32 %v314, %v317
  %v319 = vrot.slane %v318, 4
  %v321 = vshll.u32 %v177, 16
  %v323 = vrot.slane %v321, 5
  %v324 = vsel %vm214, %v319, %v323
  %v325 = vshrl.u32 %v177, 16
  %v327 = vrot.slane %v325, 4
  %v328 = vor.u32 %v327, %v323
  %v329 = vrot.slane %v328, 4
  %v331 = vshll.u32 %v178, 16
  %v333 = vrot.slane %v331, 5
  %v334 = vsel %vm214, %v329, %v333
  %v336 = vshrl.u32 %v179, 16
  %v338 = vrot.slane %v336, 4
  %v339 = vshll.u32 %v179, 16
  %v341 = vrot.slane %v339, 5
  %v342 = vor.u32 %v338, %v341
  %v343 = vrot.slane %v342, 4
  %v345 = vshll.u32 %v180, 16
  %v347 = vrot.slane %v345, 5
  %v348 = vsel %vm214, %v343, %v347
  %v349 = vshrl.u32 %v180, 16
  %v351 = vrot.slane %v349, 4
  %v352 = vor.u32 %v351, %v347
  %v353 = vrot.slane %v352, 4
  %v355 = vshll.u32 %v181, 16
  %v357 = vrot.slane %v355, 5
  %v358 = vsel %vm214, %v353, %v357
  %v360 = vshrl.u32 %v182, 16
  %v362 = vrot.slane %v360, 4
  %v363 = vshll.u32 %v182, 16
  %v365 = vrot.slane %v363, 5
  %v366 = vor.u32 %v362, %v365
  %v367 = vrot.slane %v366, 4
  %v369 = vshll.u32 %v183, 16
  %v371 = vrot.slane %v369, 5
  %v372 = vsel %vm214, %v367, %v371
  %v373 = vshrl.u32 %v183, 16
  %v375 = vrot.slane %v373, 4
  %v376 = vor.u32 %v375, %v371
  %v377 = vrot.slane %v376, 4
  %v379 = vshll.u32 %v184, 16
  %v381 = vrot.slane %v379, 5
  %v382 = vsel %vm214, %v377, %v381
  %v384 = vshrl.u32 %v185, 16
  %v386 = vrot.slane %v384, 4
  %v387 = vshll.u32 %v185, 16
  %v389 = vrot.slane %v387, 5
  %v390 = vor.u32 %v386, %v389
  %v391 = vrot.slane %v390, 4
  %v393 = vshll.u32 %v186, 16
  %v395 = vrot.slane %v393, 5
  %v396 = vsel %vm214, %v391, %v395
  %v397 = vshrl.u32 %v186, 16
  %v399 = vrot.slane %v397, 4
  %v400 = vor.u32 %v399, %v395
  %v401 = vrot.slane %v400, 4
  %v403 = vshll.u32 %v187, 16
  %v405 = vrot.slane %v403, 5
  %v406 = vsel %vm214, %v401, %v405
  %v408 = vshrl.u32 %v188, 16
  %v410 = vrot.slane %v408, 4
  %v411 = vshll.u32 %v188, 16
  %v413 = vrot.slane %v411, 5
  %v414 = vor.u32 %v410, %v413
  %v415 = vrot.slane %v414, 4
  %v417 = vshll.u32 %v189, 16
  %v419 = vrot.slane %v417, 5
  %v420 = vsel %vm214, %v415, %v419
  %v421 = vshrl.u32 %v189, 16
  %v423 = vrot.slane %v421, 4
  %v424 = vor.u32 %v423, %v419
  %v425 = vrot.slane %v424, 4
  %v427 = vshll.u32 %v190, 16
  %v429 = vrot.slane %v427, 5
  %v430 = vsel %vm214, %v425, %v429
  %v432 = vshrl.u32 %v191, 16
  %v434 = vrot.slane %v432, 4
  %v435 = vshll.u32 %v191, 16
  %v437 = vrot.slane %v435, 5
  %v438 = vor.u32 %v434, %v437
  %v439 = vrot.slane %v438, 4
  %v441 = vshll.u32 %v192, 16
  %v443 = vrot.slane %v441, 5
  %v444 = vsel %vm214, %v439, %v443
  %v445 = vshrl.u32 %v192, 16
  %v447 = vrot.slane %v445, 4
  %v448 = vor.u32 %v447, %v443
  %v449 = vrot.slane %v448, 4
  %v451 = vshll.u32 %v193, 16
  %v453 = vrot.slane %v451, 5
  %v454 = vsel %vm214, %v449, %v453
  %v456 = vshrl.u32 %v194, 16
  %v458 = vrot.slane %v456, 4
  %v459 = vshll.u32 %v194, 16
  %v461 = vrot.slane %v459, 5
  %v462 = vor.u32 %v458, %v461
  %v463 = vrot.slane %v462, 4
  %v465 = vshll.u32 %v195, 16
  %v467 = vrot.slane %v465, 5
  %v468 = vsel %vm214, %v463, %v467
  %v469 = vshrl.u32 %v195, 16
  %v471 = vrot.slane %v469, 4
  %v472 = vor.u32 %v471, %v467
  %v473 = vrot.slane %v472, 4
  %v475 = vshll.u32 %v196, 16
  %v477 = vrot.slane %v475, 5
  %v478 = vsel %vm214, %v473, %v477
  %v480 = vshrl.u32 %v197, 16
  %v482 = vrot.slane %v480, 4
  %v483 = vshll.u32 %v197, 16
  %v485 = vrot.slane %v483, 5
  %v486 = vor.u32 %v482, %v485
  %v487 = vrot.slane %v486, 4
  %v489 = vshll.u32 %v198, 16
  %v491 = vrot.slane %v489, 5
  %v492 = vsel %vm214, %v487, %v491
  %v493 = vshrl.u32 %v198, 16
  %v495 = vrot.slane %v493, 4
  %v496 = vor.u32 %v495, %v491
  %v497 = vrot.slane %v496, 4
  %v499 = vshll.u32 %v199, 16
  %v501 = vrot.slane %v499, 5
  %v502 = vsel %vm214, %v497, %v501
  %v504 = vshrl.u32 %v200, 16
  %v506 = vrot.slane %v504, 4
  %v507 = vshll.u32 %v200, 16
  %v509 = vrot.slane %v507, 5
  %v510 = vor.u32 %v506, %v509
  %v511 = vrot.slane %v510, 4
  %v513 = vshll.u32 %v201, 16
  %v515 = vrot.slane %v513, 5
  %v516 = vsel %vm214, %v511, %v515
  %v517 = vshrl.u32 %v201, 16
  %v519 = vrot.slane %v517, 4
  %v520 = vor.u32 %v519, %v515
  %v521 = vrot.slane %v520, 4
  %v523 = vshll.u32 %v202, 16
  %v525 = vrot.slane %v523, 5
  %v526 = vsel %vm214, %v521, %v525
  %v528 = vshrl.u32 %v203, 16
  %v530 = vrot.slane %v528, 4
  %v531 = vshll.u32 %v203, 16
  %v533 = vrot.slane %v531, 5
  %v534 = vor.u32 %v530, %v533
  %v535 = vrot.slane %v534, 4
  %v537 = vshll.u32 %v204, 16
  %v539 = vrot.slane %v537, 5
  %v540 = vsel %vm214, %v535, %v539
  %v541 = vshrl.u32 %v204, 16
  %v543 = vrot.slane %v541, 4
  %v544 = vor.u32 %v543, %v539
  %v545 = vrot.slane %v544, 4
  %v547 = vshll.u32 %v205, 16
  %v549 = vrot.slane %v547, 5
  %v550 = vsel %vm214, %v545, %v549
  %v552 = vshrl.u32 %v206, 16
  %v554 = vrot.slane %v552, 4
  %v555 = vshll.u32 %v206, 16
  %v557 = vrot.slane %v555, 5
  %v558 = vor.u32 %v554, %v557
  %v559 = vrot.slane %v558, 4
  %v561 = vshll.u32 %v207, 16
  %v563 = vrot.slane %v561, 5
  %v564 = vsel %vm214, %v559, %v563
  %v565 = vshrl.u32 %v207, 16
  %v567 = vrot.slane %v565, 4
  %v568 = vor.u32 %v567, %v563
  %v569 = vrot.slane %v568, 4
  %v571 = vshll.u32 %v208, 16
  %v573 = vrot.slane %v571, 5
  %v574 = vsel %vm214, %v569, %v573
  %v576 = vshrl.u32 %v209, 16
  %v578 = vrot.slane %v576, 4
  %v579 = vshll.u32 %v209, 16
  %v581 = vrot.slane %v579, 5
  %v582 = vor.u32 %v578, %v581
  %v583 = vrot.slane %v582, 4
  %v585 = vshll.u32 %v210, 16
  %v587 = vrot.slane %v585, 5
  %v588 = vsel %vm214, %v583, %v587
  %v589 = vshrl.u32 %v210, 16
  %v591 = vrot.slane %v589, 4
  %v592 = vor.u32 %v591, %v587
  %v593 = vrot.slane %v592, 4
  %v595 = vshll.u32 %v211, 16
  %v597 = vrot.slane %v595, 5
  %v598 = vsel %vm214, %v593, %v597
  %v599 = vunpack.c.l.b16 %v228
  %v600 = vunpack.c.l.b16 %v238
  %v601 = vunpack.c.l.b16 %v252
  %v602 = vunpack.c.l.b16 %v262
  %v603 = vunpack.c.l.b16 %v276
  %v604 = vunpack.c.l.b16 %v286
  %v605 = vunpack.c.l.b16 %v300
  %v606 = vunpack.c.l.b16 %v310
  %v607 = vunpack.c.l.b16 %v324
  %v608 = vunpack.c.l.b16 %v334
  %v609 = vunpack.c.l.b16 %v348
  %v610 = vunpack.c.l.b16 %v358
  %v611 = vunpack.c.l.b16 %v372
  %v612 = vunpack.c.l.b16 %v382
  %v613 = vunpack.c.l.b16 %v396
  %v614 = vunpack.c.l.b16 %v406
  %v615 = vunpack.c.l.b16 %v420
  %v616 = vunpack.c.l.b16 %v430
  %v617 = vunpack.c.l.b16 %v444
  %v618 = vunpack.c.l.b16 %v454
  %v619 = vunpack.c.l.b16 %v468
  %v620 = vunpack.c.l.b16 %v478
  %v621 = vunpack.c.l.b16 %v492
  %v622 = vunpack.c.l.b16 %v502
  %v623 = vunpack.c.l.b16 %v516
  %v624 = vunpack.c.l.b16 %v526
  %v625 = vunpack.c.l.b16 %v540
  %v626 = vunpack.c.l.b16 %v550
  %v627 = vunpack.c.l.b16 %v564
  %v628 = vunpack.c.l.b16 %v574
  %v629 = vunpack.c.l.b16 %v588
  %v630 = vunpack.c.l.b16 %v598
  %v631 = vpack.c.b16 %v600, %v599
  %v632 = vpack.c.b16 %v602, %v601
  %v633 = vpack.c.b16 %v604, %v603
  %v634 = vpack.c.b16 %v606, %v605
  %v635 = vpack.c.b16 %v608, %v607
  %v636 = vpack.c.b16 %v610, %v609
  %v637 = vpack.c.b16 %v612, %v611
  %v638 = vpack.c.b16 %v614, %v613
  %v639 = vpack.c.b16 %v616, %v615
  %v640 = vpack.c.b16 %v618, %v617
  %v641 = vpack.c.b16 %v620, %v619
  %v642 = vpack.c.b16 %v622, %v621
  %v643 = vpack.c.b16 %v624, %v623
  %v644 = vpack.c.b16 %v626, %v625
  %v645 = vpack.c.b16 %v628, %v627
  %v646 = vpack.c.b16 %v630, %v629
  %647 = vrot.lane.b32.xlu0 %v631, 32
  %v648 = vpop.permute.xlu0 %647
  %649 = vrot.lane.b32.xlu0 %v632, 32
  %v650 = vpop.permute.xlu0 %649
  %651 = vrot.lane.b32.xlu0 %v633, 32
  %v652 = vpop.permute.xlu0 %651
  %653 = vrot.lane.b32.xlu0 %v634, 32
  %v654 = vpop.permute.xlu0 %653
  %655 = vrot.lane.b32.xlu0 %v635, 32
  %v656 = vpop.permute.xlu0 %655
  %657 = vrot.lane.b32.xlu0 %v636, 32
  %v658 = vpop.permute.xlu0 %657
  %659 = vrot.lane.b32.xlu0 %v637, 32
  %v660 = vpop.permute.xlu0 %659
  %661 = vrot.lane.b32.xlu0 %v638, 32
  %v662 = vpop.permute.xlu0 %661
  %663 = vrot.lane.b32.xlu0 %v639, 32
  %v664 = vpop.permute.xlu0 %663
  %665 = vrot.lane.b32.xlu0 %v640, 32
  %v666 = vpop.permute.xlu0 %665
  %667 = vrot.lane.b32.xlu0 %v641, 32
  %v668 = vpop.permute.xlu0 %667
  %669 = vrot.lane.b32.xlu0 %v642, 32
  %v670 = vpop.permute.xlu0 %669
  %671 = vrot.lane.b32.xlu0 %v643, 32
  %v672 = vpop.permute.xlu0 %671
  %673 = vrot.lane.b32.xlu0 %v644, 32
  %v674 = vpop.permute.xlu0 %673
  %675 = vrot.lane.b32.xlu0 %v645, 32
  %v676 = vpop.permute.xlu0 %675
  %677 = vrot.lane.b32.xlu0 %v646, 32
  %v678 = vpop.permute.xlu0 %677
  %vm695 = vcmask 523520
  %696 = vst.msk [vmem:[#allocation2] sm:$0xff] %vm695, %v648
  %697 = vst.msk [vmem:[#allocation2 + $0x18] sm:$0xff] %vm695, %v650
  %698 = vst.msk [vmem:[#allocation2 + $0x30] sm:$0xff] %vm695, %v652
  %699 = vst.msk [vmem:[#allocation2 + $0x48] sm:$0xff] %vm695, %v654
  %700 = vst.msk [vmem:[#allocation2 + $0x60] sm:$0xff] %vm695, %v656
  %701 = vst.msk [vmem:[#allocation2 + $0x78] sm:$0xff] %vm695, %v658
  %702 = vst.msk [vmem:[#allocation2 + $0x90] sm:$0xff] %vm695, %v660
  %703 = vst.msk [vmem:[#allocation2 + $0xa8] sm:$0xff] %vm695, %v662
  %704 = vst.msk [vmem:[#allocation2 + $0xc0] sm:$0xff] %vm695, %v664
  %705 = vst.msk [vmem:[#allocation2 + $0xd8] sm:$0xff] %vm695, %v666
  %706 = vst.msk [vmem:[#allocation2 + $0xf0] sm:$0xff] %vm695, %v668
  %707 = vst.msk [vmem:[#allocation2 + $0x108] sm:$0xff] %vm695, %v670
  %708 = vst.msk [vmem:[#allocation2 + $0x120] sm:$0xff] %vm695, %v672
  %709 = vst.msk [vmem:[#allocation2 + $0x138] sm:$0xff] %vm695, %v674
  %710 = vst.msk [vmem:[#allocation2 + $0x150] sm:$0xff] %vm695, %v676
  %711 = vst.msk [vmem:[#allocation2 + $0x168] sm:$0xff] %vm695, %v678
  %v712 = vld [vmem:[%s18] sm:$0xe]
  %v713 = vld [vmem:[%s18 + $0x4] sm:$0xf]
  %v714 = vld [vmem:[%s18 + $0x8] sm:$0x1]
  %v715 = vld [vmem:[%s18 + $0xc] sm:$0xe]
  %v716 = vld [vmem:[%s18 + $0x10] sm:$0xf]
  %v717 = vld [vmem:[%s18 + $0x14] sm:$0x1]
  %v718 = vld [vmem:[%s18 + $0x18] sm:$0xe]
  %v719 = vld [vmem:[%s18 + $0x1c] sm:$0xf]
  %v720 = vld [vmem:[%s18 + $0x20] sm:$0x1]
  %v721 = vld [vmem:[%s18 + $0x24] sm:$0xe]
  %v722 = vld [vmem:[%s18 + $0x28] sm:$0xf]
  %v723 = vld [vmem:[%s18 + $0x2c] sm:$0x1]
  %v724 = vld [vmem:[%s18 + $0x30] sm:$0xe]
  %v725 = vld [vmem:[%s18 + $0x34] sm:$0xf]
  %v726 = vld [vmem:[%s18 + $0x38] sm:$0x1]
  %v727 = vld [vmem:[%s18 + $0x3c] sm:$0xe]
  %v728 = vld [vmem:[%s18 + $0x40] sm:$0xf]
  %v729 = vld [vmem:[%s18 + $0x44] sm:$0x1]
  %v730 = vld [vmem:[%s18 + $0x48] sm:$0xe]
  %v731 = vld [vmem:[%s18 + $0x4c] sm:$0xf]
  %v732 = vld [vmem:[%s18 + $0x50] sm:$0x1]
  %v733 = vld [vmem:[%s18 + $0x54] sm:$0xe]
  %v734 = vld [vmem:[%s18 + $0x58] sm:$0xf]
  %v735 = vld [vmem:[%s18 + $0x5c] sm:$0x1]
  %v736 = vld [vmem:[%s18 + $0x60] sm:$0xe]
  %v737 = vld [vmem:[%s18 + $0x64] sm:$0xf]
  %v738 = vld [vmem:[%s18 + $0x68] sm:$0x1]
  %v739 = vld [vmem:[%s18 + $0x6c] sm:$0xe]
  %v740 = vld [vmem:[%s18 + $0x70] sm:$0xf]
  %v741 = vld [vmem:[%s18 + $0x74] sm:$0x1]
  %v742 = vld [vmem:[%s18 + $0x78] sm:$0xe]
  %v743 = vld [vmem:[%s18 + $0x7c] sm:$0xf]
  %v744 = vld [vmem:[%s18 + $0x80] sm:$0x1]
  %v745 = vld [vmem:[%s18 + $0x84] sm:$0xe]
  %v746 = vld [vmem:[%s18 + $0x88] sm:$0xf]
  %v747 = vld [vmem:[%s18 + $0x8c] sm:$0x1]
  %v748 = vld [vmem:[%s18 + $0x90] sm:$0xe]
  %v749 = vld [vmem:[%s18 + $0x94] sm:$0xf]
  %v750 = vld [vmem:[%s18 + $0x98] sm:$0x1]
  %v751 = vld [vmem:[%s18 + $0x9c] sm:$0xe]
  %v752 = vld [vmem:[%s18 + $0xa0] sm:$0xf]
  %v753 = vld [vmem:[%s18 + $0xa4] sm:$0x1]
  %v754 = vld [vmem:[%s18 + $0xa8] sm:$0xe]
  %v755 = vld [vmem:[%s18 + $0xac] sm:$0xf]
  %v756 = vld [vmem:[%s18 + $0xb0] sm:$0x1]
  %v757 = vld [vmem:[%s18 + $0xb4] sm:$0xe]
  %v758 = vld [vmem:[%s18 + $0xb8] sm:$0xf]
  %v759 = vld [vmem:[%s18 + $0xbc] sm:$0x1]
  %vm808 = vcmask 1042432
  %vm809 = vcmask 1046532
  %vm810 = vmor %vm808, %vm809
  %v811 = vrot.slane %v712, 5
  %v812 = vrot.slane %v811, 4
  %v813 = vrot.slane %v713, 5
  %v814 = vsel %vm810, %v812, %v813
  %v815 = vrot.slane %v813, 4
  %v816 = vrot.slane %v714, 5
  %v817 = vsel %vm810, %v815, %v816
  %v818 = vrot.slane %v715, 5
  %v819 = vrot.slane %v818, 4
  %v820 = vrot.slane %v716, 5
  %v821 = vsel %vm810, %v819, %v820
  %v822 = vrot.slane %v820, 4
  %v823 = vrot.slane %v717, 5
  %v824 = vsel %vm810, %v822, %v823
  %v825 = vrot.slane %v718, 5
  %v826 = vrot.slane %v825, 4
  %v827 = vrot.slane %v719, 5
  %v828 = vsel %vm810, %v826, %v827
  %v829 = vrot.slane %v827, 4
  %v830 = vrot.slane %v720, 5
  %v831 = vsel %vm810, %v829, %v830
  %v832 = vrot.slane %v721, 5
  %v833 = vrot.slane %v832, 4
  %v834 = vrot.slane %v722, 5
  %v835 = vsel %vm810, %v833, %v834
  %v836 = vrot.slane %v834, 4
  %v837 = vrot.slane %v723, 5
  %v838 = vsel %vm810, %v836, %v837
  %v839 = vrot.slane %v724, 5
  %v840 = vrot.slane %v839, 4
  %v841 = vrot.slane %v725, 5
  %v842 = vsel %vm810, %v840, %v841
  %v843 = vrot.slane %v841, 4
  %v844 = vrot.slane %v726, 5
  %v845 = vsel %vm810, %v843, %v844
  %v846 = vrot.slane %v727, 5
  %v847 = vrot.slane %v846, 4
  %v848 = vrot.slane %v728, 5
  %v849 = vsel %vm810, %v847, %v848
  %v850 = vrot.slane %v848, 4
  %v851 = vrot.slane %v729, 5
  %v852 = vsel %vm810, %v850, %v851
  %v853 = vrot.slane %v730, 5
  %v854 = vrot.slane %v853, 4
  %v855 = vrot.slane %v731, 5
  %v856 = vsel %vm810, %v854, %v855
  %v857 = vrot.slane %v855, 4
  %v858 = vrot.slane %v732, 5
  %v859 = vsel %vm810, %v857, %v858
  %v860 = vrot.slane %v733, 5
  %v861 = vrot.slane %v860, 4
  %v862 = vrot.slane %v734, 5
  %v863 = vsel %vm810, %v861, %v862
  %v864 = vrot.slane %v862, 4
  %v865 = vrot.slane %v735, 5
  %v866 = vsel %vm810, %v864, %v865
  %v867 = vrot.slane %v736, 5
  %v868 = vrot.slane %v867, 4
  %v869 = vrot.slane %v737, 5
  %v870 = vsel %vm810, %v868, %v869
  %v871 = vrot.slane %v869, 4
  %v872 = vrot.slane %v738, 5
  %v873 = vsel %vm810, %v871, %v872
  %v874 = vrot.slane %v739, 5
  %v875 = vrot.slane %v874, 4
  %v876 = vrot.slane %v740, 5
  %v877 = vsel %vm810, %v875, %v876
  %v878 = vrot.slane %v876, 4
  %v879 = vrot.slane %v741, 5
  %v880 = vsel %vm810, %v878, %v879
  %v881 = vrot.slane %v742, 5
  %v882 = vrot.slane %v881, 4
  %v883 = vrot.slane %v743, 5
  %v884 = vsel %vm810, %v882, %v883
  %v885 = vrot.slane %v883, 4
  %v886 = vrot.slane %v744, 5
  %v887 = vsel %vm810, %v885, %v886
  %v888 = vrot.slane %v745, 5
  %v889 = vrot.slane %v888, 4
  %v890 = vrot.slane %v746, 5
  %v891 = vsel %vm810, %v889, %v890
  %v892 = vrot.slane %v890, 4
  %v893 = vrot.slane %v747, 5
  %v894 = vsel %vm810, %v892, %v893
  %v895 = vrot.slane %v748, 5
  %v896 = vrot.slane %v895, 4
  %v897 = vrot.slane %v749, 5
  %v898 = vsel %vm810, %v896, %v897
  %v899 = vrot.slane %v897, 4
  %v900 = vrot.slane %v750, 5
  %v901 = vsel %vm810, %v899, %v900
  %v902 = vrot.slane %v751, 5
  %v903 = vrot.slane %v902, 4
  %v904 = vrot.slane %v752, 5
  %v905 = vsel %vm810, %v903, %v904
  %v906 = vrot.slane %v904, 4
  %v907 = vrot.slane %v753, 5
  %v908 = vsel %vm810, %v906, %v907
  %v909 = vrot.slane %v754, 5
  %v910 = vrot.slane %v909, 4
  %v911 = vrot.slane %v755, 5
  %v912 = vsel %vm810, %v910, %v911
  %v913 = vrot.slane %v911, 4
  %v914 = vrot.slane %v756, 5
  %v915 = vsel %vm810, %v913, %v914
  %v916 = vrot.slane %v757, 5
  %v917 = vrot.slane %v916, 4
  %v918 = vrot.slane %v758, 5
  %v919 = vsel %vm810, %v917, %v918
  %v920 = vrot.slane %v918, 4
  %v921 = vrot.slane %v759, 5
  %v922 = vsel %vm810, %v920, %v921
  %v923 = vunpack.c.l.b16 %v814
  %v924 = vunpack.c.l.b16 %v817
  %v925 = vunpack.c.l.b16 %v821
  %v926 = vunpack.c.l.b16 %v824
  %v927 = vunpack.c.l.b16 %v828
  %v928 = vunpack.c.l.b16 %v831
  %v929 = vunpack.c.l.b16 %v835
  %v930 = vunpack.c.l.b16 %v838
  %v931 = vunpack.c.l.b16 %v842
  %v932 = vunpack.c.l.b16 %v845
  %v933 = vunpack.c.l.b16 %v849
  %v934 = vunpack.c.l.b16 %v852
  %v935 = vunpack.c.l.b16 %v856
  %v936 = vunpack.c.l.b16 %v859
  %v937 = vunpack.c.l.b16 %v863
  %v938 = vunpack.c.l.b16 %v866
  %v939 = vunpack.c.l.b16 %v870
  %v940 = vunpack.c.l.b16 %v873
  %v941 = vunpack.c.l.b16 %v877
  %v942 = vunpack.c.l.b16 %v880
  %v943 = vunpack.c.l.b16 %v884
  %v944 = vunpack.c.l.b16 %v887
  %v945 = vunpack.c.l.b16 %v891
  %v946 = vunpack.c.l.b16 %v894
  %v947 = vunpack.c.l.b16 %v898
  %v948 = vunpack.c.l.b16 %v901
  %v949 = vunpack.c.l.b16 %v905
  %v950 = vunpack.c.l.b16 %v908
  %v951 = vunpack.c.l.b16 %v912
  %v952 = vunpack.c.l.b16 %v915
  %v953 = vunpack.c.l.b16 %v919
  %v954 = vunpack.c.l.b16 %v922
  %v955 = vpack.c.b16 %v924, %v923
  %v956 = vpack.c.b16 %v926, %v925
  %v957 = vpack.c.b16 %v928, %v927
  %v958 = vpack.c.b16 %v930, %v929
  %v959 = vpack.c.b16 %v932, %v931
  %v960 = vpack.c.b16 %v934, %v933
  %v961 = vpack.c.b16 %v936, %v935
  %v962 = vpack.c.b16 %v938, %v937
  %v963 = vpack.c.b16 %v940, %v939
  %v964 = vpack.c.b16 %v942, %v941
  %v965 = vpack.c.b16 %v944, %v943
  %v966 = vpack.c.b16 %v946, %v945
  %v967 = vpack.c.b16 %v948, %v947
  %v968 = vpack.c.b16 %v950, %v949
  %v969 = vpack.c.b16 %v952, %v951
  %v970 = vpack.c.b16 %v954, %v953
  %971 = vrot.lane.b32.xlu0 %v955, 64
  %v972 = vpop.permute.xlu0 %971
  %973 = vrot.lane.b32.xlu0 %v956, 64
  %v974 = vpop.permute.xlu0 %973
  %975 = vrot.lane.b32.xlu0 %v957, 64
  %v976 = vpop.permute.xlu0 %975
  %977 = vrot.lane.b32.xlu0 %v958, 64
  %v978 = vpop.permute.xlu0 %977
  %979 = vrot.lane.b32.xlu0 %v959, 64
  %v980 = vpop.permute.xlu0 %979
  %981 = vrot.lane.b32.xlu0 %v960, 64
  %v982 = vpop.permute.xlu0 %981
  %983 = vrot.lane.b32.xlu0 %v961, 64
  %v984 = vpop.permute.xlu0 %983
  %985 = vrot.lane.b32.xlu0 %v962, 64
  %v986 = vpop.permute.xlu0 %985
  %987 = vrot.lane.b32.xlu0 %v963, 64
  %v988 = vpop.permute.xlu0 %987
  %989 = vrot.lane.b32.xlu0 %v964, 64
  %v990 = vpop.permute.xlu0 %989
  %991 = vrot.lane.b32.xlu0 %v965, 64
  %v992 = vpop.permute.xlu0 %991
  %993 = vrot.lane.b32.xlu0 %v966, 64
  %v994 = vpop.permute.xlu0 %993
  %995 = vrot.lane.b32.xlu0 %v967, 64
  %v996 = vpop.permute.xlu0 %995
  %997 = vrot.lane.b32.xlu0 %v968, 64
  %v998 = vpop.permute.xlu0 %997
  %999 = vrot.lane.b32.xlu0 %v969, 64
  %v1000 = vpop.permute.xlu0 %999
  %1001 = vrot.lane.b32.xlu0 %v970, 64
  %v1002 = vpop.permute.xlu0 %1001
  %vm1019 = vcmask 785920
  %1020 = vst.msk [vmem:[#allocation2] sm:$0xff] %vm1019, %v972
  %1021 = vst.msk [vmem:[#allocation2 + $0x18] sm:$0xff] %vm1019, %v974
  %1022 = vst.msk [vmem:[#allocation2 + $0x30] sm:$0xff] %vm1019, %v976
  %1023 = vst.msk [vmem:[#allocation2 + $0x48] sm:$0xff] %vm1019, %v978
  %1024 = vst.msk [vmem:[#allocation2 + $0x60] sm:$0xff] %vm1019, %v980
  %1025 = vst.msk [vmem:[#allocation2 + $0x78] sm:$0xff] %vm1019, %v982
  %1026 = vst.msk [vmem:[#allocation2 + $0x90] sm:$0xff] %vm1019, %v984
  %1027 = vst.msk [vmem:[#allocation2 + $0xa8] sm:$0xff] %vm1019, %v986
  %1028 = vst.msk [vmem:[#allocation2 + $0xc0] sm:$0xff] %vm1019, %v988
  %1029 = vst.msk [vmem:[#allocation2 + $0xd8] sm:$0xff] %vm1019, %v990
  %1030 = vst.msk [vmem:[#allocation2 + $0xf0] sm:$0xff] %vm1019, %v992
  %1031 = vst.msk [vmem:[#allocation2 + $0x108] sm:$0xff] %vm1019, %v994
  %1032 = vst.msk [vmem:[#allocation2 + $0x120] sm:$0xff] %vm1019, %v996
  %1033 = vst.msk [vmem:[#allocation2 + $0x138] sm:$0xff] %vm1019, %v998
  %1034 = vst.msk [vmem:[#allocation2 + $0x150] sm:$0xff] %vm1019, %v1000
  %1035 = vst.msk [vmem:[#allocation2 + $0x168] sm:$0xff] %vm1019, %v1002
  %s1036 = sadd.s32 %s15, 1
  %s1037 = smul.u32 %s1036, 3
  %s1038 = smul.addr %s1037, 4
  %s1039 = scalar_lea.vmem %s0, %s1038
  %v1040 = vld [vmem:[%s1039] sm:$0xf]
  %v1041 = vld [vmem:[%s1039 + $0x4] sm:$0xf]
  %v1042 = vld [vmem:[%s1039 + $0xc] sm:$0xf]
  %v1043 = vld [vmem:[%s1039 + $0x10] sm:$0xf]
  %v1044 = vld [vmem:[%s1039 + $0x18] sm:$0xf]
  %v1045 = vld [vmem:[%s1039 + $0x1c] sm:$0xf]
  %v1046 = vld [vmem:[%s1039 + $0x24] sm:$0xf]
  %v1047 = vld [vmem:[%s1039 + $0x28] sm:$0xf]
  %v1048 = vld [vmem:[%s1039 + $0x30] sm:$0xf]
  %v1049 = vld [vmem:[%s1039 + $0x34] sm:$0xf]
  %v1050 = vld [vmem:[%s1039 + $0x3c] sm:$0xf]
  %v1051 = vld [vmem:[%s1039 + $0x40] sm:$0xf]
  %v1052 = vld [vmem:[%s1039 + $0x48] sm:$0xf]
  %v1053 = vld [vmem:[%s1039 + $0x4c] sm:$0xf]
  %v1054 = vld [vmem:[%s1039 + $0x54] sm:$0xf]
  %v1055 = vld [vmem:[%s1039 + $0x58] sm:$0xf]
  %v1056 = vld [vmem:[%s1039 + $0x60] sm:$0xf]
  %v1057 = vld [vmem:[%s1039 + $0x64] sm:$0xf]
  %v1058 = vld [vmem:[%s1039 + $0x6c] sm:$0xf]
  %v1059 = vld [vmem:[%s1039 + $0x70] sm:$0xf]
  %v1060 = vld [vmem:[%s1039 + $0x78] sm:$0xf]
  %v1061 = vld [vmem:[%s1039 + $0x7c] sm:$0xf]
  %v1062 = vld [vmem:[%s1039 + $0x84] sm:$0xf]
  %v1063 = vld [vmem:[%s1039 + $0x88] sm:$0xf]
  %v1064 = vld [vmem:[%s1039 + $0x90] sm:$0xf]
  %v1065 = vld [vmem:[%s1039 + $0x94] sm:$0xf]
  %v1066 = vld [vmem:[%s1039 + $0x9c] sm:$0xf]
  %v1067 = vld [vmem:[%s1039 + $0xa0] sm:$0xf]
  %v1068 = vld [vmem:[%s1039 + $0xa8] sm:$0xf]
  %v1069 = vld [vmem:[%s1039 + $0xac] sm:$0xf]
  %v1070 = vld [vmem:[%s1039 + $0xb4] sm:$0xf]
  %v1071 = vld [vmem:[%s1039 + $0xb8] sm:$0xf]
  %v1104 = vunpack.c.l.b16 %v1040
  %v1105 = vunpack.c.l.b16 %v1041
  %v1106 = vunpack.c.l.b16 %v1042
  %v1107 = vunpack.c.l.b16 %v1043
  %v1108 = vunpack.c.l.b16 %v1044
  %v1109 = vunpack.c.l.b16 %v1045
  %v1110 = vunpack.c.l.b16 %v1046
  %v1111 = vunpack.c.l.b16 %v1047
  %v1112 = vunpack.c.l.b16 %v1048
  %v1113 = vunpack.c.l.b16 %v1049
  %v1114 = vunpack.c.l.b16 %v1050
  %v1115 = vunpack.c.l.b16 %v1051
  %v1116 = vunpack.c.l.b16 %v1052
  %v1117 = vunpack.c.l.b16 %v1053
  %v1118 = vunpack.c.l.b16 %v1054
  %v1119 = vunpack.c.l.b16 %v1055
  %v1120 = vunpack.c.l.b16 %v1056
  %v1121 = vunpack.c.l.b16 %v1057
  %v1122 = vunpack.c.l.b16 %v1058
  %v1123 = vunpack.c.l.b16 %v1059
  %v1124 = vunpack.c.l.b16 %v1060
  %v1125 = vunpack.c.l.b16 %v1061
  %v1126 = vunpack.c.l.b16 %v1062
  %v1127 = vunpack.c.l.b16 %v1063
  %v1128 = vunpack.c.l.b16 %v1064
  %v1129 = vunpack.c.l.b16 %v1065
  %v1130 = vunpack.c.l.b16 %v1066
  %v1131 = vunpack.c.l.b16 %v1067
  %v1132 = vunpack.c.l.b16 %v1068
  %v1133 = vunpack.c.l.b16 %v1069
  %v1134 = vunpack.c.l.b16 %v1070
  %v1135 = vunpack.c.l.b16 %v1071
  %v1136 = vpack.c.b16 %v1105, %v1104
  %v1137 = vpack.c.b16 %v1107, %v1106
  %v1138 = vpack.c.b16 %v1109, %v1108
  %v1139 = vpack.c.b16 %v1111, %v1110
  %v1140 = vpack.c.b16 %v1113, %v1112
  %v1141 = vpack.c.b16 %v1115, %v1114
  %v1142 = vpack.c.b16 %v1117, %v1116
  %v1143 = vpack.c.b16 %v1119, %v1118
  %v1144 = vpack.c.b16 %v1121, %v1120
  %v1145 = vpack.c.b16 %v1123, %v1122
  %v1146 = vpack.c.b16 %v1125, %v1124
  %v1147 = vpack.c.b16 %v1127, %v1126
  %v1148 = vpack.c.b16 %v1129, %v1128
  %v1149 = vpack.c.b16 %v1131, %v1130
  %v1150 = vpack.c.b16 %v1133, %v1132
  %v1151 = vpack.c.b16 %v1135, %v1134
  %1152 = vrot.lane.b32.xlu0 %v1136, 96
  %v1153 = vpop.permute.xlu0 %1152
  %1154 = vrot.lane.b32.xlu0 %v1137, 96
  %v1155 = vpop.permute.xlu0 %1154
  %1156 = vrot.lane.b32.xlu0 %v1138, 96
  %v1157 = vpop.permute.xlu0 %1156
  %1158 = vrot.lane.b32.xlu0 %v1139, 96
  %v1159 = vpop.permute.xlu0 %1158
  %1160 = vrot.lane.b32.xlu0 %v1140, 96
  %v1161 = vpop.permute.xlu0 %1160
  %1162 = vrot.lane.b32.xlu0 %v1141, 96
  %v1163 = vpop.permute.xlu0 %1162
  %1164 = vrot.lane.b32.xlu0 %v1142, 96
  %v1165 = vpop.permute.xlu0 %1164
  %1166 = vrot.lane.b32.xlu0 %v1143, 96
  %v1167 = vpop.permute.xlu0 %1166
  %1168 = vrot.lane.b32.xlu0 %v1144, 96
  %v1169 = vpop.permute.xlu0 %1168
  %1170 = vrot.lane.b32.xlu0 %v1145, 96
  %v1171 = vpop.permute.xlu0 %1170
  %1172 = vrot.lane.b32.xlu0 %v1146, 96
  %v1173 = vpop.permute.xlu0 %1172
  %1174 = vrot.lane.b32.xlu0 %v1147, 96
  %v1175 = vpop.permute.xlu0 %1174
  %1176 = vrot.lane.b32.xlu0 %v1148, 96
  %v1177 = vpop.permute.xlu0 %1176
  %1178 = vrot.lane.b32.xlu0 %v1149, 96
  %v1179 = vpop.permute.xlu0 %1178
  %1180 = vrot.lane.b32.xlu0 %v1150, 96
  %v1181 = vpop.permute.xlu0 %1180
  %1182 = vrot.lane.b32.xlu0 %v1151, 96
  %v1183 = vpop.permute.xlu0 %1182
  %vm1200 = vcmask 1048320
  %1201 = vst.msk [vmem:[#allocation2] sm:$0xff] %vm1200, %v1153
  %1202 = vst.msk [vmem:[#allocation2 + $0x18] sm:$0xff] %vm1200, %v1155
  %1203 = vst.msk [vmem:[#allocation2 + $0x30] sm:$0xff] %vm1200, %v1157
  %1204 = vst.msk [vmem:[#allocation2 + $0x48] sm:$0xff] %vm1200, %v1159
  %1205 = vst.msk [vmem:[#allocation2 + $0x60] sm:$0xff] %vm1200, %v1161
  %1206 = vst.msk [vmem:[#allocation2 + $0x78] sm:$0xff] %vm1200, %v1163
  %1207 = vst.msk [vmem:[#allocation2 + $0x90] sm:$0xff] %vm1200, %v1165
  %1208 = vst.msk [vmem:[#allocation2 + $0xa8] sm:$0xff] %vm1200, %v1167
  %1209 = vst.msk [vmem:[#allocation2 + $0xc0] sm:$0xff] %vm1200, %v1169
  %1210 = vst.msk [vmem:[#allocation2 + $0xd8] sm:$0xff] %vm1200, %v1171
  %1211 = vst.msk [vmem:[#allocation2 + $0xf0] sm:$0xff] %vm1200, %v1173
  %1212 = vst.msk [vmem:[#allocation2 + $0x108] sm:$0xff] %vm1200, %v1175
  %1213 = vst.msk [vmem:[#allocation2 + $0x120] sm:$0xff] %vm1200, %v1177
  %1214 = vst.msk [vmem:[#allocation2 + $0x138] sm:$0xff] %vm1200, %v1179
  %1215 = vst.msk [vmem:[#allocation2 + $0x150] sm:$0xff] %vm1200, %v1181
  %1216 = vst.msk [vmem:[#allocation2 + $0x168] sm:$0xff] %vm1200, %v1183
  %v1217 = vld [vmem:[%s1039] sm:$0xf]
  %v1218 = vld [vmem:[%s1039 + $0x4] sm:$0xf]
  %v1219 = vld [vmem:[%s1039 + $0x8] sm:$0x1]
  %v1220 = vld [vmem:[%s1039 + $0xc] sm:$0xf]
  %v1221 = vld [vmem:[%s1039 + $0x10] sm:$0xf]
  %v1222 = vld [vmem:[%s1039 + $0x14] sm:$0x1]
  %v1223 = vld [vmem:[%s1039 + $0x18] sm:$0xf]
  %v1224 = vld [vmem:[%s1039 + $0x1c] sm:$0xf]
  %v1225 = vld [vmem:[%s1039 + $0x20] sm:$0x1]
  %v1226 = vld [vmem:[%s1039 + $0x24] sm:$0xf]
  %v1227 = vld [vmem:[%s1039 + $0x28] sm:$0xf]
  %v1228 = vld [vmem:[%s1039 + $0x2c] sm:$0x1]
  %v1229 = vld [vmem:[%s1039 + $0x30] sm:$0xf]
  %v1230 = vld [vmem:[%s1039 + $0x34] sm:$0xf]
  %v1231 = vld [vmem:[%s1039 + $0x38] sm:$0x1]
  %v1232 = vld [vmem:[%s1039 + $0x3c] sm:$0xf]
  %v1233 = vld [vmem:[%s1039 + $0x40] sm:$0xf]
  %v1234 = vld [vmem:[%s1039 + $0x44] sm:$0x1]
  %v1235 = vld [vmem:[%s1039 + $0x48] sm:$0xf]
  %v1236 = vld [vmem:[%s1039 + $0x4c] sm:$0xf]
  %v1237 = vld [vmem:[%s1039 + $0x50] sm:$0x1]
  %v1238 = vld [vmem:[%s1039 + $0x54] sm:$0xf]
  %v1239 = vld [vmem:[%s1039 + $0x58] sm:$0xf]
  %v1240 = vld [vmem:[%s1039 + $0x5c] sm:$0x1]
  %v1241 = vld [vmem:[%s1039 + $0x60] sm:$0xf]
  %v1242 = vld [vmem:[%s1039 + $0x64] sm:$0xf]
  %v1243 = vld [vmem:[%s1039 + $0x68] sm:$0x1]
  %v1244 = vld [vmem:[%s1039 + $0x6c] sm:$0xf]
  %v1245 = vld [vmem:[%s1039 + $0x70] sm:$0xf]
  %v1246 = vld [vmem:[%s1039 + $0x74] sm:$0x1]
  %v1247 = vld [vmem:[%s1039 + $0x78] sm:$0xf]
  %v1248 = vld [vmem:[%s1039 + $0x7c] sm:$0xf]
  %v1249 = vld [vmem:[%s1039 + $0x80] sm:$0x1]
  %v1250 = vld [vmem:[%s1039 + $0x84] sm:$0xf]
  %v1251 = vld [vmem:[%s1039 + $0x88] sm:$0xf]
  %v1252 = vld [vmem:[%s1039 + $0x8c] sm:$0x1]
  %v1253 = vld [vmem:[%s1039 + $0x90] sm:$0xf]
  %v1254 = vld [vmem:[%s1039 + $0x94] sm:$0xf]
  %v1255 = vld [vmem:[%s1039 + $0x98] sm:$0x1]
  %v1256 = vld [vmem:[%s1039 + $0x9c] sm:$0xf]
  %v1257 = vld [vmem:[%s1039 + $0xa0] sm:$0xf]
  %v1258 = vld [vmem:[%s1039 + $0xa4] sm:$0x1]
  %v1259 = vld [vmem:[%s1039 + $0xa8] sm:$0xf]
  %v1260 = vld [vmem:[%s1039 + $0xac] sm:$0xf]
  %v1261 = vld [vmem:[%s1039 + $0xb0] sm:$0x1]
  %v1262 = vld [vmem:[%s1039 + $0xb4] sm:$0xf]
  %v1263 = vld [vmem:[%s1039 + $0xb8] sm:$0xf]
  %v1264 = vld [vmem:[%s1039 + $0xbc] sm:$0x1]
  %v1266 = vshrl.u32 %v1217, 16
  %v1268 = vrot.slane %v1266, 4
  %v1269 = vshll.u32 %v1217, 16
  %v1271 = vrot.slane %v1269, 5
  %v1272 = vor.u32 %v1268, %v1271
  %v1273 = vrot.slane %v1272, 4
  %v1275 = vshll.u32 %v1218, 16
  %v1277 = vrot.slane %v1275, 5
  %v1278 = vsel %vm214, %v1273, %v1277
  %v1279 = vshrl.u32 %v1218, 16
  %v1281 = vrot.slane %v1279, 4
  %v1282 = vor.u32 %v1281, %v1277
  %v1283 = vrot.slane %v1282, 4
  %v1285 = vshll.u32 %v1219, 16
  %v1287 = vrot.slane %v1285, 5
  %v1288 = vsel %vm214, %v1283, %v1287
  %v1290 = vshrl.u32 %v1220, 16
  %v1292 = vrot.slane %v1290, 4
  %v1293 = vshll.u32 %v1220, 16
  %v1295 = vrot.slane %v1293, 5
  %v1296 = vor.u32 %v1292, %v1295
  %v1297 = vrot.slane %v1296, 4
  %v1299 = vshll.u32 %v1221, 16
  %v1301 = vrot.slane %v1299, 5
  %v1302 = vsel %vm214, %v1297, %v1301
  %v1303 = vshrl.u32 %v1221, 16
  %v1305 = vrot.slane %v1303, 4
  %v1306 = vor.u32 %v1305, %v1301
  %v1307 = vrot.slane %v1306, 4
  %v1309 = vshll.u32 %v1222, 16
  %v1311 = vrot.slane %v1309, 5
  %v1312 = vsel %vm214, %v1307, %v1311
  %v1314 = vshrl.u32 %v1223, 16
  %v1316 = vrot.slane %v1314, 4
  %v1317 = vshll.u32 %v1223, 16
  %v1319 = vrot.slane %v1317, 5
  %v1320 = vor.u32 %v1316, %v1319
  %v1321 = vrot.slane %v1320, 4
  %v1323 = vshll.u32 %v1224, 16
  %v1325 = vrot.slane %v1323, 5
  %v1326 = vsel %vm214, %v1321, %v1325
  %v1327 = vshrl.u32 %v1224, 16
  %v1329 = vrot.slane %v1327, 4
  %v1330 = vor.u32 %v1329, %v1325
  %v1331 = vrot.slane %v1330, 4
  %v1333 = vshll.u32 %v1225, 16
  %v1335 = vrot.slane %v1333, 5
  %v1336 = vsel %vm214, %v1331, %v1335
  %v1338 = vshrl.u32 %v1226, 16
  %v1340 = vrot.slane %v1338, 4
  %v1341 = vshll.u32 %v1226, 16
  %v1343 = vrot.slane %v1341, 5
  %v1344 = vor.u32 %v1340, %v1343
  %v1345 = vrot.slane %v1344, 4
  %v1347 = vshll.u32 %v1227, 16
  %v1349 = vrot.slane %v1347, 5
  %v1350 = vsel %vm214, %v1345, %v1349
  %v1351 = vshrl.u32 %v1227, 16
  %v1353 = vrot.slane %v1351, 4
  %v1354 = vor.u32 %v1353, %v1349
  %v1355 = vrot.slane %v1354, 4
  %v1357 = vshll.u32 %v1228, 16
  %v1359 = vrot.slane %v1357, 5
  %v1360 = vsel %vm214, %v1355, %v1359
  %v1362 = vshrl.u32 %v1229, 16
  %v1364 = vrot.slane %v1362, 4
  %v1365 = vshll.u32 %v1229, 16
  %v1367 = vrot.slane %v1365, 5
  %v1368 = vor.u32 %v1364, %v1367
  %v1369 = vrot.slane %v1368, 4
  %v1371 = vshll.u32 %v1230, 16
  %v1373 = vrot.slane %v1371, 5
  %v1374 = vsel %vm214, %v1369, %v1373
  %v1375 = vshrl.u32 %v1230, 16
  %v1377 = vrot.slane %v1375, 4
  %v1378 = vor.u32 %v1377, %v1373
  %v1379 = vrot.slane %v1378, 4
  %v1381 = vshll.u32 %v1231, 16
  %v1383 = vrot.slane %v1381, 5
  %v1384 = vsel %vm214, %v1379, %v1383
  %v1386 = vshrl.u32 %v1232, 16
  %v1388 = vrot.slane %v1386, 4
  %v1389 = vshll.u32 %v1232, 16
  %v1391 = vrot.slane %v1389, 5
  %v1392 = vor.u32 %v1388, %v1391
  %v1393 = vrot.slane %v1392, 4
  %v1395 = vshll.u32 %v1233, 16
  %v1397 = vrot.slane %v1395, 5
  %v1398 = vsel %vm214, %v1393, %v1397
  %v1399 = vshrl.u32 %v1233, 16
  %v1401 = vrot.slane %v1399, 4
  %v1402 = vor.u32 %v1401, %v1397
  %v1403 = vrot.slane %v1402, 4
  %v1405 = vshll.u32 %v1234, 16
  %v1407 = vrot.slane %v1405, 5
  %v1408 = vsel %vm214, %v1403, %v1407
  %v1410 = vshrl.u32 %v1235, 16
  %v1412 = vrot.slane %v1410, 4
  %v1413 = vshll.u32 %v1235, 16
  %v1415 = vrot.slane %v1413, 5
  %v1416 = vor.u32 %v1412, %v1415
  %v1417 = vrot.slane %v1416, 4
  %v1419 = vshll.u32 %v1236, 16
  %v1421 = vrot.slane %v1419, 5
  %v1422 = vsel %vm214, %v1417, %v1421
  %v1423 = vshrl.u32 %v1236, 16
  %v1425 = vrot.slane %v1423, 4
  %v1426 = vor.u32 %v1425, %v1421
  %v1427 = vrot.slane %v1426, 4
  %v1429 = vshll.u32 %v1237, 16
  %v1431 = vrot.slane %v1429, 5
  %v1432 = vsel %vm214, %v1427, %v1431
  %v1434 = vshrl.u32 %v1238, 16
  %v1436 = vrot.slane %v1434, 4
  %v1437 = vshll.u32 %v1238, 16
  %v1439 = vrot.slane %v1437, 5
  %v1440 = vor.u32 %v1436, %v1439
  %v1441 = vrot.slane %v1440, 4
  %v1443 = vshll.u32 %v1239, 16
  %v1445 = vrot.slane %v1443, 5
  %v1446 = vsel %vm214, %v1441, %v1445
  %v1447 = vshrl.u32 %v1239, 16
  %v1449 = vrot.slane %v1447, 4
  %v1450 = vor.u32 %v1449, %v1445
  %v1451 = vrot.slane %v1450, 4
  %v1453 = vshll.u32 %v1240, 16
  %v1455 = vrot.slane %v1453, 5
  %v1456 = vsel %vm214, %v1451, %v1455
  %v1458 = vshrl.u32 %v1241, 16
  %v1460 = vrot.slane %v1458, 4
  %v1461 = vshll.u32 %v1241, 16
  %v1463 = vrot.slane %v1461, 5
  %v1464 = vor.u32 %v1460, %v1463
  %v1465 = vrot.slane %v1464, 4
  %v1467 = vshll.u32 %v1242, 16
  %v1469 = vrot.slane %v1467, 5
  %v1470 = vsel %vm214, %v1465, %v1469
  %v1471 = vshrl.u32 %v1242, 16
  %v1473 = vrot.slane %v1471, 4
  %v1474 = vor.u32 %v1473, %v1469
  %v1475 = vrot.slane %v1474, 4
  %v1477 = vshll.u32 %v1243, 16
  %v1479 = vrot.slane %v1477, 5
  %v1480 = vsel %vm214, %v1475, %v1479
  %v1482 = vshrl.u32 %v1244, 16
  %v1484 = vrot.slane %v1482, 4
  %v1485 = vshll.u32 %v1244, 16
  %v1487 = vrot.slane %v1485, 5
  %v1488 = vor.u32 %v1484, %v1487
  %v1489 = vrot.slane %v1488, 4
  %v1491 = vshll.u32 %v1245, 16
  %v1493 = vrot.slane %v1491, 5
  %v1494 = vsel %vm214, %v1489, %v1493
  %v1495 = vshrl.u32 %v1245, 16
  %v1497 = vrot.slane %v1495, 4
  %v1498 = vor.u32 %v1497, %v1493
  %v1499 = vrot.slane %v1498, 4
  %v1501 = vshll.u32 %v1246, 16
  %v1503 = vrot.slane %v1501, 5
  %v1504 = vsel %vm214, %v1499, %v1503
  %v1506 = vshrl.u32 %v1247, 16
  %v1508 = vrot.slane %v1506, 4
  %v1509 = vshll.u32 %v1247, 16
  %v1511 = vrot.slane %v1509, 5
  %v1512 = vor.u32 %v1508, %v1511
  %v1513 = vrot.slane %v1512, 4
  %v1515 = vshll.u32 %v1248, 16
  %v1517 = vrot.slane %v1515, 5
  %v1518 = vsel %vm214, %v1513, %v1517
  %v1519 = vshrl.u32 %v1248, 16
  %v1521 = vrot.slane %v1519, 4
  %v1522 = vor.u32 %v1521, %v1517
  %v1523 = vrot.slane %v1522, 4
  %v1525 = vshll.u32 %v1249, 16
  %v1527 = vrot.slane %v1525, 5
  %v1528 = vsel %vm214, %v1523, %v1527
  %v1530 = vshrl.u32 %v1250, 16
  %v1532 = vrot.slane %v1530, 4
  %v1533 = vshll.u32 %v1250, 16
  %v1535 = vrot.slane %v1533, 5
  %v1536 = vor.u32 %v1532, %v1535
  %v1537 = vrot.slane %v1536, 4
  %v1539 = vshll.u32 %v1251, 16
  %v1541 = vrot.slane %v1539, 5
  %v1542 = vsel %vm214, %v1537, %v1541
  %v1543 = vshrl.u32 %v1251, 16
  %v1545 = vrot.slane %v1543, 4
  %v1546 = vor.u32 %v1545, %v1541
  %v1547 = vrot.slane %v1546, 4
  %v1549 = vshll.u32 %v1252, 16
  %v1551 = vrot.slane %v1549, 5
  %v1552 = vsel %vm214, %v1547, %v1551
  %v1554 = vshrl.u32 %v1253, 16
  %v1556 = vrot.slane %v1554, 4
  %v1557 = vshll.u32 %v1253, 16
  %v1559 = vrot.slane %v1557, 5
  %v1560 = vor.u32 %v1556, %v1559
  %v1561 = vrot.slane %v1560, 4
  %v1563 = vshll.u32 %v1254, 16
  %v1565 = vrot.slane %v1563, 5
  %v1566 = vsel %vm214, %v1561, %v1565
  %v1567 = vshrl.u32 %v1254, 16
  %v1569 = vrot.slane %v1567, 4
  %v1570 = vor.u32 %v1569, %v1565
  %v1571 = vrot.slane %v1570, 4
  %v1573 = vshll.u32 %v1255, 16
  %v1575 = vrot.slane %v1573, 5
  %v1576 = vsel %vm214, %v1571, %v1575
  %v1578 = vshrl.u32 %v1256, 16
  %v1580 = vrot.slane %v1578, 4
  %v1581 = vshll.u32 %v1256, 16
  %v1583 = vrot.slane %v1581, 5
  %v1584 = vor.u32 %v1580, %v1583
  %v1585 = vrot.slane %v1584, 4
  %v1587 = vshll.u32 %v1257, 16
  %v1589 = vrot.slane %v1587, 5
  %v1590 = vsel %vm214, %v1585, %v1589
  %v1591 = vshrl.u32 %v1257, 16
  %v1593 = vrot.slane %v1591, 4
  %v1594 = vor.u32 %v1593, %v1589
  %v1595 = vrot.slane %v1594, 4
  %v1597 = vshll.u32 %v1258, 16
  %v1599 = vrot.slane %v1597, 5
  %v1600 = vsel %vm214, %v1595, %v1599
  %v1602 = vshrl.u32 %v1259, 16
  %v1604 = vrot.slane %v1602, 4
  %v1605 = vshll.u32 %v1259, 16
  %v1607 = vrot.slane %v1605, 5
  %v1608 = vor.u32 %v1604, %v1607
  %v1609 = vrot.slane %v1608, 4
  %v1611 = vshll.u32 %v1260, 16
  %v1613 = vrot.slane %v1611, 5
  %v1614 = vsel %vm214, %v1609, %v1613
  %v1615 = vshrl.u32 %v1260, 16
  %v1617 = vrot.slane %v1615, 4
  %v1618 = vor.u32 %v1617, %v1613
  %v1619 = vrot.slane %v1618, 4
  %v1621 = vshll.u32 %v1261, 16
  %v1623 = vrot.slane %v1621, 5
  %v1624 = vsel %vm214, %v1619, %v1623
  %v1626 = vshrl.u32 %v1262, 16
  %v1628 = vrot.slane %v1626, 4
  %v1629 = vshll.u32 %v1262, 16
  %v1631 = vrot.slane %v1629, 5
  %v1632 = vor.u32 %v1628, %v1631
  %v1633 = vrot.slane %v1632, 4
  %v1635 = vshll.u32 %v1263, 16
  %v1637 = vrot.slane %v1635, 5
  %v1638 = vsel %vm214, %v1633, %v1637
  %v1639 = vshrl.u32 %v1263, 16
  %v1641 = vrot.slane %v1639, 4
  %v1642 = vor.u32 %v1641, %v1637
  %v1643 = vrot.slane %v1642, 4
  %v1645 = vshll.u32 %v1264, 16
  %v1647 = vrot.slane %v1645, 5
  %v1648 = vsel %vm214, %v1643, %v1647
  %v1649 = vunpack.c.l.b16 %v1278
  %v1650 = vunpack.c.l.b16 %v1288
  %v1651 = vunpack.c.l.b16 %v1302
  %v1652 = vunpack.c.l.b16 %v1312
  %v1653 = vunpack.c.l.b16 %v1326
  %v1654 = vunpack.c.l.b16 %v1336
  %v1655 = vunpack.c.l.b16 %v1350
  %v1656 = vunpack.c.l.b16 %v1360
  %v1657 = vunpack.c.l.b16 %v1374
  %v1658 = vunpack.c.l.b16 %v1384
  %v1659 = vunpack.c.l.b16 %v1398
  %v1660 = vunpack.c.l.b16 %v1408
  %v1661 = vunpack.c.l.b16 %v1422
  %v1662 = vunpack.c.l.b16 %v1432
  %v1663 = vunpack.c.l.b16 %v1446
  %v1664 = vunpack.c.l.b16 %v1456
  %v1665 = vunpack.c.l.b16 %v1470
  %v1666 = vunpack.c.l.b16 %v1480
  %v1667 = vunpack.c.l.b16 %v1494
  %v1668 = vunpack.c.l.b16 %v1504
  %v1669 = vunpack.c.l.b16 %v1518
  %v1670 = vunpack.c.l.b16 %v1528
  %v1671 = vunpack.c.l.b16 %v1542
  %v1672 = vunpack.c.l.b16 %v1552
  %v1673 = vunpack.c.l.b16 %v1566
  %v1674 = vunpack.c.l.b16 %v1576
  %v1675 = vunpack.c.l.b16 %v1590
  %v1676 = vunpack.c.l.b16 %v1600
  %v1677 = vunpack.c.l.b16 %v1614
  %v1678 = vunpack.c.l.b16 %v1624
  %v1679 = vunpack.c.l.b16 %v1638
  %v1680 = vunpack.c.l.b16 %v1648
  %v1681 = vpack.c.b16 %v1650, %v1649
  %v1682 = vpack.c.b16 %v1652, %v1651
  %v1683 = vpack.c.b16 %v1654, %v1653
  %v1684 = vpack.c.b16 %v1656, %v1655
  %v1685 = vpack.c.b16 %v1658, %v1657
  %v1686 = vpack.c.b16 %v1660, %v1659
  %v1687 = vpack.c.b16 %v1662, %v1661
  %v1688 = vpack.c.b16 %v1664, %v1663
  %v1689 = vpack.c.b16 %v1666, %v1665
  %v1690 = vpack.c.b16 %v1668, %v1667
  %v1691 = vpack.c.b16 %v1670, %v1669
  %v1692 = vpack.c.b16 %v1672, %v1671
  %v1693 = vpack.c.b16 %v1674, %v1673
  %v1694 = vpack.c.b16 %v1676, %v1675
  %v1695 = vpack.c.b16 %v1678, %v1677
  %v1696 = vpack.c.b16 %v1680, %v1679
  %1713 = vst.msk [vmem:[#allocation2 + $0x8] sm:$0xff] %vm147, %v1681
  %1714 = vst.msk [vmem:[#allocation2 + $0x20] sm:$0xff] %vm147, %v1682
  %1715 = vst.msk [vmem:[#allocation2 + $0x38] sm:$0xff] %vm147, %v1683
  %1716 = vst.msk [vmem:[#allocation2 + $0x50] sm:$0xff] %vm147, %v1684
  %1717 = vst.msk [vmem:[#allocation2 + $0x68] sm:$0xff] %vm147, %v1685
  %1718 = vst.msk [vmem:[#allocation2 + $0x80] sm:$0xff] %vm147, %v1686
  %1719 = vst.msk [vmem:[#allocation2 + $0x98] sm:$0xff] %vm147, %v1687
  %1720 = vst.msk [vmem:[#allocation2 + $0xb0] sm:$0xff] %vm147, %v1688
  %1721 = vst.msk [vmem:[#allocation2 + $0xc8] sm:$0xff] %vm147, %v1689
  %1722 = vst.msk [vmem:[#allocation2 + $0xe0] sm:$0xff] %vm147, %v1690
  %1723 = vst.msk [vmem:[#allocation2 + $0xf8] sm:$0xff] %vm147, %v1691
  %1724 = vst.msk [vmem:[#allocation2 + $0x110] sm:$0xff] %vm147, %v1692
  %1725 = vst.msk [vmem:[#allocation2 + $0x128] sm:$0xff] %vm147, %v1693
  %1726 = vst.msk [vmem:[#allocation2 + $0x140] sm:$0xff] %vm147, %v1694
  %1727 = vst.msk [vmem:[#allocation2 + $0x158] sm:$0xff] %vm147, %v1695
  %1728 = vst.msk [vmem:[#allocation2 + $0x170] sm:$0xff] %vm147, %v1696
  %v1729 = vld [vmem:[%s1039] sm:$0xe]
  %v1730 = vld [vmem:[%s1039 + $0x4] sm:$0xf]
  %v1731 = vld [vmem:[%s1039 + $0x8] sm:$0x1]
  %v1732 = vld [vmem:[%s1039 + $0xc] sm:$0xe]
  %v1733 = vld [vmem:[%s1039 + $0x10] sm:$0xf]
  %v1734 = vld [vmem:[%s1039 + $0x14] sm:$0x1]
  %v1735 = vld [vmem:[%s1039 + $0x18] sm:$0xe]
  %v1736 = vld [vmem:[%s1039 + $0x1c] sm:$0xf]
  %v1737 = vld [vmem:[%s1039 + $0x20] sm:$0x1]
  %v1738 = vld [vmem:[%s1039 + $0x24] sm:$0xe]
  %v1739 = vld [vmem:[%s1039 + $0x28] sm:$0xf]
  %v1740 = vld [vmem:[%s1039 + $0x2c] sm:$0x1]
  %v1741 = vld [vmem:[%s1039 + $0x30] sm:$0xe]
  %v1742 = vld [vmem:[%s1039 + $0x34] sm:$0xf]
  %v1743 = vld [vmem:[%s1039 + $0x38] sm:$0x1]
  %v1744 = vld [vmem:[%s1039 + $0x3c] sm:$0xe]
  %v1745 = vld [vmem:[%s1039 + $0x40] sm:$0xf]
  %v1746 = vld [vmem:[%s1039 + $0x44] sm:$0x1]
  %v1747 = vld [vmem:[%s1039 + $0x48] sm:$0xe]
  %v1748 = vld [vmem:[%s1039 + $0x4c] sm:$0xf]
  %v1749 = vld [vmem:[%s1039 + $0x50] sm:$0x1]
  %v1750 = vld [vmem:[%s1039 + $0x54] sm:$0xe]
  %v1751 = vld [vmem:[%s1039 + $0x58] sm:$0xf]
  %v1752 = vld [vmem:[%s1039 + $0x5c] sm:$0x1]
  %v1753 = vld [vmem:[%s1039 + $0x60] sm:$0xe]
  %v1754 = vld [vmem:[%s1039 + $0x64] sm:$0xf]
  %v1755 = vld [vmem:[%s1039 + $0x68] sm:$0x1]
  %v1756 = vld [vmem:[%s1039 + $0x6c] sm:$0xe]
  %v1757 = vld [vmem:[%s1039 + $0x70] sm:$0xf]
  %v1758 = vld [vmem:[%s1039 + $0x74] sm:$0x1]
  %v1759 = vld [vmem:[%s1039 + $0x78] sm:$0xe]
  %v1760 = vld [vmem:[%s1039 + $0x7c] sm:$0xf]
  %v1761 = vld [vmem:[%s1039 + $0x80] sm:$0x1]
  %v1762 = vld [vmem:[%s1039 + $0x84] sm:$0xe]
  %v1763 = vld [vmem:[%s1039 + $0x88] sm:$0xf]
  %v1764 = vld [vmem:[%s1039 + $0x8c] sm:$0x1]
  %v1765 = vld [vmem:[%s1039 + $0x90] sm:$0xe]
  %v1766 = vld [vmem:[%s1039 + $0x94] sm:$0xf]
  %v1767 = vld [vmem:[%s1039 + $0x98] sm:$0x1]
  %v1768 = vld [vmem:[%s1039 + $0x9c] sm:$0xe]
  %v1769 = vld [vmem:[%s1039 + $0xa0] sm:$0xf]
  %v1770 = vld [vmem:[%s1039 + $0xa4] sm:$0x1]
  %v1771 = vld [vmem:[%s1039 + $0xa8] sm:$0xe]
  %v1772 = vld [vmem:[%s1039 + $0xac] sm:$0xf]
  %v1773 = vld [vmem:[%s1039 + $0xb0] sm:$0x1]
  %v1774 = vld [vmem:[%s1039 + $0xb4] sm:$0xe]
  %v1775 = vld [vmem:[%s1039 + $0xb8] sm:$0xf]
  %v1776 = vld [vmem:[%s1039 + $0xbc] sm:$0x1]
  %v1825 = vrot.slane %v1729, 5
  %v1826 = vrot.slane %v1825, 4
  %v1827 = vrot.slane %v1730, 5
  %v1828 = vsel %vm810, %v1826, %v1827
  %v1829 = vrot.slane %v1827, 4
  %v1830 = vrot.slane %v1731, 5
  %v1831 = vsel %vm810, %v1829, %v1830
  %v1832 = vrot.slane %v1732, 5
  %v1833 = vrot.slane %v1832, 4
  %v1834 = vrot.slane %v1733, 5
  %v1835 = vsel %vm810, %v1833, %v1834
  %v1836 = vrot.slane %v1834, 4
  %v1837 = vrot.slane %v1734, 5
  %v1838 = vsel %vm810, %v1836, %v1837
  %v1839 = vrot.slane %v1735, 5
  %v1840 = vrot.slane %v1839, 4
  %v1841 = vrot.slane %v1736, 5
  %v1842 = vsel %vm810, %v1840, %v1841
  %v1843 = vrot.slane %v1841, 4
  %v1844 = vrot.slane %v1737, 5
  %v1845 = vsel %vm810, %v1843, %v1844
  %v1846 = vrot.slane %v1738, 5
  %v1847 = vrot.slane %v1846, 4
  %v1848 = vrot.slane %v1739, 5
  %v1849 = vsel %vm810, %v1847, %v1848
  %v1850 = vrot.slane %v1848, 4
  %v1851 = vrot.slane %v1740, 5
  %v1852 = vsel %vm810, %v1850, %v1851
  %v1853 = vrot.slane %v1741, 5
  %v1854 = vrot.slane %v1853, 4
  %v1855 = vrot.slane %v1742, 5
  %v1856 = vsel %vm810, %v1854, %v1855
  %v1857 = vrot.slane %v1855, 4
  %v1858 = vrot.slane %v1743, 5
  %v1859 = vsel %vm810, %v1857, %v1858
  %v1860 = vrot.slane %v1744, 5
  %v1861 = vrot.slane %v1860, 4
  %v1862 = vrot.slane %v1745, 5
  %v1863 = vsel %vm810, %v1861, %v1862
  %v1864 = vrot.slane %v1862, 4
  %v1865 = vrot.slane %v1746, 5
  %v1866 = vsel %vm810, %v1864, %v1865
  %v1867 = vrot.slane %v1747, 5
  %v1868 = vrot.slane %v1867, 4
  %v1869 = vrot.slane %v1748, 5
  %v1870 = vsel %vm810, %v1868, %v1869
  %v1871 = vrot.slane %v1869, 4
  %v1872 = vrot.slane %v1749, 5
  %v1873 = vsel %vm810, %v1871, %v1872
  %v1874 = vrot.slane %v1750, 5
  %v1875 = vrot.slane %v1874, 4
  %v1876 = vrot.slane %v1751, 5
  %v1877 = vsel %vm810, %v1875, %v1876
  %v1878 = vrot.slane %v1876, 4
  %v1879 = vrot.slane %v1752, 5
  %v1880 = vsel %vm810, %v1878, %v1879
  %v1881 = vrot.slane %v1753, 5
  %v1882 = vrot.slane %v1881, 4
  %v1883 = vrot.slane %v1754, 5
  %v1884 = vsel %vm810, %v1882, %v1883
  %v1885 = vrot.slane %v1883, 4
  %v1886 = vrot.slane %v1755, 5
  %v1887 = vsel %vm810, %v1885, %v1886
  %v1888 = vrot.slane %v1756, 5
  %v1889 = vrot.slane %v1888, 4
  %v1890 = vrot.slane %v1757, 5
  %v1891 = vsel %vm810, %v1889, %v1890
  %v1892 = vrot.slane %v1890, 4
  %v1893 = vrot.slane %v1758, 5
  %v1894 = vsel %vm810, %v1892, %v1893
  %v1895 = vrot.slane %v1759, 5
  %v1896 = vrot.slane %v1895, 4
  %v1897 = vrot.slane %v1760, 5
  %v1898 = vsel %vm810, %v1896, %v1897
  %v1899 = vrot.slane %v1897, 4
  %v1900 = vrot.slane %v1761, 5
  %v1901 = vsel %vm810, %v1899, %v1900
  %v1902 = vrot.slane %v1762, 5
  %v1903 = vrot.slane %v1902, 4
  %v1904 = vrot.slane %v1763, 5
  %v1905 = vsel %vm810, %v1903, %v1904
  %v1906 = vrot.slane %v1904, 4
  %v1907 = vrot.slane %v1764, 5
  %v1908 = vsel %vm810, %v1906, %v1907
  %v1909 = vrot.slane %v1765, 5
  %v1910 = vrot.slane %v1909, 4
  %v1911 = vrot.slane %v1766, 5
  %v1912 = vsel %vm810, %v1910, %v1911
  %v1913 = vrot.slane %v1911, 4
  %v1914 = vrot.slane %v1767, 5
  %v1915 = vsel %vm810, %v1913, %v1914
  %v1916 = vrot.slane %v1768, 5
  %v1917 = vrot.slane %v1916, 4
  %v1918 = vrot.slane %v1769, 5
  %v1919 = vsel %vm810, %v1917, %v1918
  %v1920 = vrot.slane %v1918, 4
  %v1921 = vrot.slane %v1770, 5
  %v1922 = vsel %vm810, %v1920, %v1921
  %v1923 = vrot.slane %v1771, 5
  %v1924 = vrot.slane %v1923, 4
  %v1925 = vrot.slane %v1772, 5
  %v1926 = vsel %vm810, %v1924, %v1925
  %v1927 = vrot.slane %v1925, 4
  %v1928 = vrot.slane %v1773, 5
  %v1929 = vsel %vm810, %v1927, %v1928
  %v1930 = vrot.slane %v1774, 5
  %v1931 = vrot.slane %v1930, 4
  %v1932 = vrot.slane %v1775, 5
  %v1933 = vsel %vm810, %v1931, %v1932
  %v1934 = vrot.slane %v1932, 4
  %v1935 = vrot.slane %v1776, 5
  %v1936 = vsel %vm810, %v1934, %v1935
  %v1937 = vunpack.c.l.b16 %v1828
  %v1938 = vunpack.c.l.b16 %v1831
  %v1939 = vunpack.c.l.b16 %v1835
  %v1940 = vunpack.c.l.b16 %v1838
  %v1941 = vunpack.c.l.b16 %v1842
  %v1942 = vunpack.c.l.b16 %v1845
  %v1943 = vunpack.c.l.b16 %v1849
  %v1944 = vunpack.c.l.b16 %v1852
  %v1945 = vunpack.c.l.b16 %v1856
  %v1946 = vunpack.c.l.b16 %v1859
  %v1947 = vunpack.c.l.b16 %v1863
  %v1948 = vunpack.c.l.b16 %v1866
  %v1949 = vunpack.c.l.b16 %v1870
  %v1950 = vunpack.c.l.b16 %v1873
  %v1951 = vunpack.c.l.b16 %v1877
  %v1952 = vunpack.c.l.b16 %v1880
  %v1953 = vunpack.c.l.b16 %v1884
  %v1954 = vunpack.c.l.b16 %v1887
  %v1955 = vunpack.c.l.b16 %v1891
  %v1956 = vunpack.c.l.b16 %v1894
  %v1957 = vunpack.c.l.b16 %v1898
  %v1958 = vunpack.c.l.b16 %v1901
  %v1959 = vunpack.c.l.b16 %v1905
  %v1960 = vunpack.c.l.b16 %v1908
  %v1961 = vunpack.c.l.b16 %v1912
  %v1962 = vunpack.c.l.b16 %v1915
  %v1963 = vunpack.c.l.b16 %v1919
  %v1964 = vunpack.c.l.b16 %v1922
  %v1965 = vunpack.c.l.b16 %v1926
  %v1966 = vunpack.c.l.b16 %v1929
  %v1967 = vunpack.c.l.b16 %v1933
  %v1968 = vunpack.c.l.b16 %v1936
  %v1969 = vpack.c.b16 %v1938, %v1937
  %v1970 = vpack.c.b16 %v1940, %v1939
  %v1971 = vpack.c.b16 %v1942, %v1941
  %v1972 = vpack.c.b16 %v1944, %v1943
  %v1973 = vpack.c.b16 %v1946, %v1945
  %v1974 = vpack.c.b16 %v1948, %v1947
  %v1975 = vpack.c.b16 %v1950, %v1949
  %v1976 = vpack.c.b16 %v1952, %v1951
  %v1977 = vpack.c.b16 %v1954, %v1953
  %v1978 = vpack.c.b16 %v1956, %v1955
  %v1979 = vpack.c.b16 %v1958, %v1957
  %v1980 = vpack.c.b16 %v1960, %v1959
  %v1981 = vpack.c.b16 %v1962, %v1961
  %v1982 = vpack.c.b16 %v1964, %v1963
  %v1983 = vpack.c.b16 %v1966, %v1965
  %v1984 = vpack.c.b16 %v1968, %v1967
  %1985 = vrot.lane.b32.xlu0 %v1969, 32
  %v1986 = vpop.permute.xlu0 %1985
  %1987 = vrot.lane.b32.xlu0 %v1970, 32
  %v1988 = vpop.permute.xlu0 %1987
  %1989 = vrot.lane.b32.xlu0 %v1971, 32
  %v1990 = vpop.permute.xlu0 %1989
  %1991 = vrot.lane.b32.xlu0 %v1972, 32
  %v1992 = vpop.permute.xlu0 %1991
  %1993 = vrot.lane.b32.xlu0 %v1973, 32
  %v1994 = vpop.permute.xlu0 %1993
  %1995 = vrot.lane.b32.xlu0 %v1974, 32
  %v1996 = vpop.permute.xlu0 %1995
  %1997 = vrot.lane.b32.xlu0 %v1975, 32
  %v1998 = vpop.permute.xlu0 %1997
  %1999 = vrot.lane.b32.xlu0 %v1976, 32
  %v2000 = vpop.permute.xlu0 %1999
  %2001 = vrot.lane.b32.xlu0 %v1977, 32
  %v2002 = vpop.permute.xlu0 %2001
  %2003 = vrot.lane.b32.xlu0 %v1978, 32
  %v2004 = vpop.permute.xlu0 %2003
  %2005 = vrot.lane.b32.xlu0 %v1979, 32
  %v2006 = vpop.permute.xlu0 %2005
  %2007 = vrot.lane.b32.xlu0 %v1980, 32
  %v2008 = vpop.permute.xlu0 %2007
  %2009 = vrot.lane.b32.xlu0 %v1981, 32
  %v2010 = vpop.permute.xlu0 %2009
  %2011 = vrot.lane.b32.xlu0 %v1982, 32
  %v2012 = vpop.permute.xlu0 %2011
  %2013 = vrot.lane.b32.xlu0 %v1983, 32
  %v2014 = vpop.permute.xlu0 %2013
  %2015 = vrot.lane.b32.xlu0 %v1984, 32
  %v2016 = vpop.permute.xlu0 %2015
  %2033 = vst.msk [vmem:[#allocation2 + $0x8] sm:$0xff] %vm695, %v1986
  %2034 = vst.msk [vmem:[#allocation2 + $0x20] sm:$0xff] %vm695, %v1988
  %2035 = vst.msk [vmem:[#allocation2 + $0x38] sm:$0xff] %vm695, %v1990
  %2036 = vst.msk [vmem:[#allocation2 + $0x50] sm:$0xff] %vm695, %v1992
  %2037 = vst.msk [vmem:[#allocation2 + $0x68] sm:$0xff] %vm695, %v1994
  %2038 = vst.msk [vmem:[#allocation2 + $0x80] sm:$0xff] %vm695, %v1996
  %2039 = vst.msk [vmem:[#allocation2 + $0x98] sm:$0xff] %vm695, %v1998
  %2040 = vst.msk [vmem:[#allocation2 + $0xb0] sm:$0xff] %vm695, %v2000
  %2041 = vst.msk [vmem:[#allocation2 + $0xc8] sm:$0xff] %vm695, %v2002
  %2042 = vst.msk [vmem:[#allocation2 + $0xe0] sm:$0xff] %vm695, %v2004
  %2043 = vst.msk [vmem:[#allocation2 + $0xf8] sm:$0xff] %vm695, %v2006
  %2044 = vst.msk [vmem:[#allocation2 + $0x110] sm:$0xff] %vm695, %v2008
  %2045 = vst.msk [vmem:[#allocation2 + $0x128] sm:$0xff] %vm695, %v2010
  %2046 = vst.msk [vmem:[#allocation2 + $0x140] sm:$0xff] %vm695, %v2012
  %2047 = vst.msk [vmem:[#allocation2 + $0x158] sm:$0xff] %vm695, %v2014
  %2048 = vst.msk [vmem:[#allocation2 + $0x170] sm:$0xff] %vm695, %v2016
  %s2049 = sadd.s32 %s15, 2
  %s2050 = smul.u32 %s2049, 3
  %s2051 = smul.addr %s2050, 4
  %s2052 = scalar_lea.vmem %s0, %s2051
  %v2053 = vld [vmem:[%s2052] sm:$0xf]
  %v2054 = vld [vmem:[%s2052 + $0x4] sm:$0xf]
  %v2055 = vld [vmem:[%s2052 + $0xc] sm:$0xf]
  %v2056 = vld [vmem:[%s2052 + $0x10] sm:$0xf]
  %v2057 = vld [vmem:[%s2052 + $0x18] sm:$0xf]
  %v2058 = vld [vmem:[%s2052 + $0x1c] sm:$0xf]
  %v2059 = vld [vmem:[%s2052 + $0x24] sm:$0xf]
  %v2060 = vld [vmem:[%s2052 + $0x28] sm:$0xf]
  %v2061 = vld [vmem:[%s2052 + $0x30] sm:$0xf]
  %v2062 = vld [vmem:[%s2052 + $0x34] sm:$0xf]
  %v2063 = vld [vmem:[%s2052 + $0x3c] sm:$0xf]
  %v2064 = vld [vmem:[%s2052 + $0x40] sm:$0xf]
  %v2065 = vld [vmem:[%s2052 + $0x48] sm:$0xf]
  %v2066 = vld [vmem:[%s2052 + $0x4c] sm:$0xf]
  %v2067 = vld [vmem:[%s2052 + $0x54] sm:$0xf]
  %v2068 = vld [vmem:[%s2052 + $0x58] sm:$0xf]
  %v2069 = vld [vmem:[%s2052 + $0x60] sm:$0xf]
  %v2070 = vld [vmem:[%s2052 + $0x64] sm:$0xf]
  %v2071 = vld [vmem:[%s2052 + $0x6c] sm:$0xf]
  %v2072 = vld [vmem:[%s2052 + $0x70] sm:$0xf]
  %v2073 = vld [vmem:[%s2052 + $0x78] sm:$0xf]
  %v2074 = vld [vmem:[%s2052 + $0x7c] sm:$0xf]
  %v2075 = vld [vmem:[%s2052 + $0x84] sm:$0xf]
  %v2076 = vld [vmem:[%s2052 + $0x88] sm:$0xf]
  %v2077 = vld [vmem:[%s2052 + $0x90] sm:$0xf]
  %v2078 = vld [vmem:[%s2052 + $0x94] sm:$0xf]
  %v2079 = vld [vmem:[%s2052 + $0x9c] sm:$0xf]
  %v2080 = vld [vmem:[%s2052 + $0xa0] sm:$0xf]
  %v2081 = vld [vmem:[%s2052 + $0xa8] sm:$0xf]
  %v2082 = vld [vmem:[%s2052 + $0xac] sm:$0xf]
  %v2083 = vld [vmem:[%s2052 + $0xb4] sm:$0xf]
  %v2084 = vld [vmem:[%s2052 + $0xb8] sm:$0xf]
  %v2117 = vunpack.c.l.b16 %v2053
  %v2118 = vunpack.c.l.b16 %v2054
  %v2119 = vunpack.c.l.b16 %v2055
  %v2120 = vunpack.c.l.b16 %v2056
  %v2121 = vunpack.c.l.b16 %v2057
  %v2122 = vunpack.c.l.b16 %v2058
  %v2123 = vunpack.c.l.b16 %v2059
  %v2124 = vunpack.c.l.b16 %v2060
  %v2125 = vunpack.c.l.b16 %v2061
  %v2126 = vunpack.c.l.b16 %v2062
  %v2127 = vunpack.c.l.b16 %v2063
  %v2128 = vunpack.c.l.b16 %v2064
  %v2129 = vunpack.c.l.b16 %v2065
  %v2130 = vunpack.c.l.b16 %v2066
  %v2131 = vunpack.c.l.b16 %v2067
  %v2132 = vunpack.c.l.b16 %v2068
  %v2133 = vunpack.c.l.b16 %v2069
  %v2134 = vunpack.c.l.b16 %v2070
  %v2135 = vunpack.c.l.b16 %v2071
  %v2136 = vunpack.c.l.b16 %v2072
  %v2137 = vunpack.c.l.b16 %v2073
  %v2138 = vunpack.c.l.b16 %v2074
  %v2139 = vunpack.c.l.b16 %v2075
  %v2140 = vunpack.c.l.b16 %v2076
  %v2141 = vunpack.c.l.b16 %v2077
  %v2142 = vunpack.c.l.b16 %v2078
  %v2143 = vunpack.c.l.b16 %v2079
  %v2144 = vunpack.c.l.b16 %v2080
  %v2145 = vunpack.c.l.b16 %v2081
  %v2146 = vunpack.c.l.b16 %v2082
  %v2147 = vunpack.c.l.b16 %v2083
  %v2148 = vunpack.c.l.b16 %v2084
  %v2149 = vpack.c.b16 %v2118, %v2117
  %v2150 = vpack.c.b16 %v2120, %v2119
  %v2151 = vpack.c.b16 %v2122, %v2121
  %v2152 = vpack.c.b16 %v2124, %v2123
  %v2153 = vpack.c.b16 %v2126, %v2125
  %v2154 = vpack.c.b16 %v2128, %v2127
  %v2155 = vpack.c.b16 %v2130, %v2129
  %v2156 = vpack.c.b16 %v2132, %v2131
  %v2157 = vpack.c.b16 %v2134, %v2133
  %v2158 = vpack.c.b16 %v2136, %v2135
  %v2159 = vpack.c.b16 %v2138, %v2137
  %v2160 = vpack.c.b16 %v2140, %v2139
  %v2161 = vpack.c.b16 %v2142, %v2141
  %v2162 = vpack.c.b16 %v2144, %v2143
  %v2163 = vpack.c.b16 %v2146, %v2145
  %v2164 = vpack.c.b16 %v2148, %v2147
  %2165 = vrot.lane.b32.xlu0 %v2149, 64
  %v2166 = vpop.permute.xlu0 %2165
  %2167 = vrot.lane.b32.xlu0 %v2150, 64
  %v2168 = vpop.permute.xlu0 %2167
  %2169 = vrot.lane.b32.xlu0 %v2151, 64
  %v2170 = vpop.permute.xlu0 %2169
  %2171 = vrot.lane.b32.xlu0 %v2152, 64
  %v2172 = vpop.permute.xlu0 %2171
  %2173 = vrot.lane.b32.xlu0 %v2153, 64
  %v2174 = vpop.permute.xlu0 %2173
  %2175 = vrot.lane.b32.xlu0 %v2154, 64
  %v2176 = vpop.permute.xlu0 %2175
  %2177 = vrot.lane.b32.xlu0 %v2155, 64
  %v2178 = vpop.permute.xlu0 %2177
  %2179 = vrot.lane.b32.xlu0 %v2156, 64
  %v2180 = vpop.permute.xlu0 %2179
  %2181 = vrot.lane.b32.xlu0 %v2157, 64
  %v2182 = vpop.permute.xlu0 %2181
  %2183 = vrot.lane.b32.xlu0 %v2158, 64
  %v2184 = vpop.permute.xlu0 %2183
  %2185 = vrot.lane.b32.xlu0 %v2159, 64
  %v2186 = vpop.permute.xlu0 %2185
  %2187 = vrot.lane.b32.xlu0 %v2160, 64
  %v2188 = vpop.permute.xlu0 %2187
  %2189 = vrot.lane.b32.xlu0 %v2161, 64
  %v2190 = vpop.permute.xlu0 %2189
  %2191 = vrot.lane.b32.xlu0 %v2162, 64
  %v2192 = vpop.permute.xlu0 %2191
  %2193 = vrot.lane.b32.xlu0 %v2163, 64
  %v2194 = vpop.permute.xlu0 %2193
  %2195 = vrot.lane.b32.xlu0 %v2164, 64
  %v2196 = vpop.permute.xlu0 %2195
  %2213 = vst.msk [vmem:[#allocation2 + $0x8] sm:$0xff] %vm1019, %v2166
  %2214 = vst.msk [vmem:[#allocation2 + $0x20] sm:$0xff] %vm1019, %v2168
  %2215 = vst.msk [vmem:[#allocation2 + $0x38] sm:$0xff] %vm1019, %v2170
  %2216 = vst.msk [vmem:[#allocation2 + $0x50] sm:$0xff] %vm1019, %v2172
  %2217 = vst.msk [vmem:[#allocation2 + $0x68] sm:$0xff] %vm1019, %v2174
  %2218 = vst.msk [vmem:[#allocation2 + $0x80] sm:$0xff] %vm1019, %v2176
  %2219 = vst.msk [vmem:[#allocation2 + $0x98] sm:$0xff] %vm1019, %v2178
  %2220 = vst.msk [vmem:[#allocation2 + $0xb0] sm:$0xff] %vm1019, %v2180
  %2221 = vst.msk [vmem:[#allocation2 + $0xc8] sm:$0xff] %vm1019, %v2182
  %2222 = vst.msk [vmem:[#allocation2 + $0xe0] sm:$0xff] %vm1019, %v2184
  %2223 = vst.msk [vmem:[#allocation2 + $0xf8] sm:$0xff] %vm1019, %v2186
  %2224 = vst.msk [vmem:[#allocation2 + $0x110] sm:$0xff] %vm1019, %v2188
  %2225 = vst.msk [vmem:[#allocation2 + $0x128] sm:$0xff] %vm1019, %v2190
  %2226 = vst.msk [vmem:[#allocation2 + $0x140] sm:$0xff] %vm1019, %v2192
  %2227 = vst.msk [vmem:[#allocation2 + $0x158] sm:$0xff] %vm1019, %v2194
  %2228 = vst.msk [vmem:[#allocation2 + $0x170] sm:$0xff] %vm1019, %v2196
  %v2229 = vld [vmem:[%s2052] sm:$0xf]
  %v2230 = vld [vmem:[%s2052 + $0x4] sm:$0xf]
  %v2231 = vld [vmem:[%s2052 + $0x8] sm:$0x1]
  %v2232 = vld [vmem:[%s2052 + $0xc] sm:$0xf]
  %v2233 = vld [vmem:[%s2052 + $0x10] sm:$0xf]
  %v2234 = vld [vmem:[%s2052 + $0x14] sm:$0x1]
  %v2235 = vld [vmem:[%s2052 + $0x18] sm:$0xf]
  %v2236 = vld [vmem:[%s2052 + $0x1c] sm:$0xf]
  %v2237 = vld [vmem:[%s2052 + $0x20] sm:$0x1]
  %v2238 = vld [vmem:[%s2052 + $0x24] sm:$0xf]
  %v2239 = vld [vmem:[%s2052 + $0x28] sm:$0xf]
  %v2240 = vld [vmem:[%s2052 + $0x2c] sm:$0x1]
  %v2241 = vld [vmem:[%s2052 + $0x30] sm:$0xf]
  %v2242 = vld [vmem:[%s2052 + $0x34] sm:$0xf]
  %v2243 = vld [vmem:[%s2052 + $0x38] sm:$0x1]
  %v2244 = vld [vmem:[%s2052 + $0x3c] sm:$0xf]
  %v2245 = vld [vmem:[%s2052 + $0x40] sm:$0xf]
  %v2246 = vld [vmem:[%s2052 + $0x44] sm:$0x1]
  %v2247 = vld [vmem:[%s2052 + $0x48] sm:$0xf]
  %v2248 = vld [vmem:[%s2052 + $0x4c] sm:$0xf]
  %v2249 = vld [vmem:[%s2052 + $0x50] sm:$0x1]
  %v2250 = vld [vmem:[%s2052 + $0x54] sm:$0xf]
  %v2251 = vld [vmem:[%s2052 + $0x58] sm:$0xf]
  %v2252 = vld [vmem:[%s2052 + $0x5c] sm:$0x1]
  %v2253 = vld [vmem:[%s2052 + $0x60] sm:$0xf]
  %v2254 = vld [vmem:[%s2052 + $0x64] sm:$0xf]
  %v2255 = vld [vmem:[%s2052 + $0x68] sm:$0x1]
  %v2256 = vld [vmem:[%s2052 + $0x6c] sm:$0xf]
  %v2257 = vld [vmem:[%s2052 + $0x70] sm:$0xf]
  %v2258 = vld [vmem:[%s2052 + $0x74] sm:$0x1]
  %v2259 = vld [vmem:[%s2052 + $0x78] sm:$0xf]
  %v2260 = vld [vmem:[%s2052 + $0x7c] sm:$0xf]
  %v2261 = vld [vmem:[%s2052 + $0x80] sm:$0x1]
  %v2262 = vld [vmem:[%s2052 + $0x84] sm:$0xf]
  %v2263 = vld [vmem:[%s2052 + $0x88] sm:$0xf]
  %v2264 = vld [vmem:[%s2052 + $0x8c] sm:$0x1]
  %v2265 = vld [vmem:[%s2052 + $0x90] sm:$0xf]
  %v2266 = vld [vmem:[%s2052 + $0x94] sm:$0xf]
  %v2267 = vld [vmem:[%s2052 + $0x98] sm:$0x1]
  %v2268 = vld [vmem:[%s2052 + $0x9c] sm:$0xf]
  %v2269 = vld [vmem:[%s2052 + $0xa0] sm:$0xf]
  %v2270 = vld [vmem:[%s2052 + $0xa4] sm:$0x1]
  %v2271 = vld [vmem:[%s2052 + $0xa8] sm:$0xf]
  %v2272 = vld [vmem:[%s2052 + $0xac] sm:$0xf]
  %v2273 = vld [vmem:[%s2052 + $0xb0] sm:$0x1]
  %v2274 = vld [vmem:[%s2052 + $0xb4] sm:$0xf]
  %v2275 = vld [vmem:[%s2052 + $0xb8] sm:$0xf]
  %v2276 = vld [vmem:[%s2052 + $0xbc] sm:$0x1]
  %v2278 = vshrl.u32 %v2229, 16
  %v2280 = vrot.slane %v2278, 4
  %v2281 = vshll.u32 %v2229, 16
  %v2283 = vrot.slane %v2281, 5
  %v2284 = vor.u32 %v2280, %v2283
  %v2285 = vrot.slane %v2284, 4
  %v2287 = vshll.u32 %v2230, 16
  %v2289 = vrot.slane %v2287, 5
  %v2290 = vsel %vm214, %v2285, %v2289
  %v2291 = vshrl.u32 %v2230, 16
  %v2293 = vrot.slane %v2291, 4
  %v2294 = vor.u32 %v2293, %v2289
  %v2295 = vrot.slane %v2294, 4
  %v2297 = vshll.u32 %v2231, 16
  %v2299 = vrot.slane %v2297, 5
  %v2300 = vsel %vm214, %v2295, %v2299
  %v2302 = vshrl.u32 %v2232, 16
  %v2304 = vrot.slane %v2302, 4
  %v2305 = vshll.u32 %v2232, 16
  %v2307 = vrot.slane %v2305, 5
  %v2308 = vor.u32 %v2304, %v2307
  %v2309 = vrot.slane %v2308, 4
  %v2311 = vshll.u32 %v2233, 16
  %v2313 = vrot.slane %v2311, 5
  %v2314 = vsel %vm214, %v2309, %v2313
  %v2315 = vshrl.u32 %v2233, 16
  %v2317 = vrot.slane %v2315, 4
  %v2318 = vor.u32 %v2317, %v2313
  %v2319 = vrot.slane %v2318, 4
  %v2321 = vshll.u32 %v2234, 16
  %v2323 = vrot.slane %v2321, 5
  %v2324 = vsel %vm214, %v2319, %v2323
  %v2326 = vshrl.u32 %v2235, 16
  %v2328 = vrot.slane %v2326, 4
  %v2329 = vshll.u32 %v2235, 16
  %v2331 = vrot.slane %v2329, 5
  %v2332 = vor.u32 %v2328, %v2331
  %v2333 = vrot.slane %v2332, 4
  %v2335 = vshll.u32 %v2236, 16
  %v2337 = vrot.slane %v2335, 5
  %v2338 = vsel %vm214, %v2333, %v2337
  %v2339 = vshrl.u32 %v2236, 16
  %v2341 = vrot.slane %v2339, 4
  %v2342 = vor.u32 %v2341, %v2337
  %v2343 = vrot.slane %v2342, 4
  %v2345 = vshll.u32 %v2237, 16
  %v2347 = vrot.slane %v2345, 5
  %v2348 = vsel %vm214, %v2343, %v2347
  %v2350 = vshrl.u32 %v2238, 16
  %v2352 = vrot.slane %v2350, 4
  %v2353 = vshll.u32 %v2238, 16
  %v2355 = vrot.slane %v2353, 5
  %v2356 = vor.u32 %v2352, %v2355
  %v2357 = vrot.slane %v2356, 4
  %v2359 = vshll.u32 %v2239, 16
  %v2361 = vrot.slane %v2359, 5
  %v2362 = vsel %vm214, %v2357, %v2361
  %v2363 = vshrl.u32 %v2239, 16
  %v2365 = vrot.slane %v2363, 4
  %v2366 = vor.u32 %v2365, %v2361
  %v2367 = vrot.slane %v2366, 4
  %v2369 = vshll.u32 %v2240, 16
  %v2371 = vrot.slane %v2369, 5
  %v2372 = vsel %vm214, %v2367, %v2371
  %v2374 = vshrl.u32 %v2241, 16
  %v2376 = vrot.slane %v2374, 4
  %v2377 = vshll.u32 %v2241, 16
  %v2379 = vrot.slane %v2377, 5
  %v2380 = vor.u32 %v2376, %v2379
  %v2381 = vrot.slane %v2380, 4
  %v2383 = vshll.u32 %v2242, 16
  %v2385 = vrot.slane %v2383, 5
  %v2386 = vsel %vm214, %v2381, %v2385
  %v2387 = vshrl.u32 %v2242, 16
  %v2389 = vrot.slane %v2387, 4
  %v2390 = vor.u32 %v2389, %v2385
  %v2391 = vrot.slane %v2390, 4
  %v2393 = vshll.u32 %v2243, 16
  %v2395 = vrot.slane %v2393, 5
  %v2396 = vsel %vm214, %v2391, %v2395
  %v2398 = vshrl.u32 %v2244, 16
  %v2400 = vrot.slane %v2398, 4
  %v2401 = vshll.u32 %v2244, 16
  %v2403 = vrot.slane %v2401, 5
  %v2404 = vor.u32 %v2400, %v2403
  %v2405 = vrot.slane %v2404, 4
  %v2407 = vshll.u32 %v2245, 16
  %v2409 = vrot.slane %v2407, 5
  %v2410 = vsel %vm214, %v2405, %v2409
  %v2411 = vshrl.u32 %v2245, 16
  %v2413 = vrot.slane %v2411, 4
  %v2414 = vor.u32 %v2413, %v2409
  %v2415 = vrot.slane %v2414, 4
  %v2417 = vshll.u32 %v2246, 16
  %v2419 = vrot.slane %v2417, 5
  %v2420 = vsel %vm214, %v2415, %v2419
  %v2422 = vshrl.u32 %v2247, 16
  %v2424 = vrot.slane %v2422, 4
  %v2425 = vshll.u32 %v2247, 16
  %v2427 = vrot.slane %v2425, 5
  %v2428 = vor.u32 %v2424, %v2427
  %v2429 = vrot.slane %v2428, 4
  %v2431 = vshll.u32 %v2248, 16
  %v2433 = vrot.slane %v2431, 5
  %v2434 = vsel %vm214, %v2429, %v2433
  %v2435 = vshrl.u32 %v2248, 16
  %v2437 = vrot.slane %v2435, 4
  %v2438 = vor.u32 %v2437, %v2433
  %v2439 = vrot.slane %v2438, 4
  %v2441 = vshll.u32 %v2249, 16
  %v2443 = vrot.slane %v2441, 5
  %v2444 = vsel %vm214, %v2439, %v2443
  %v2446 = vshrl.u32 %v2250, 16
  %v2448 = vrot.slane %v2446, 4
  %v2449 = vshll.u32 %v2250, 16
  %v2451 = vrot.slane %v2449, 5
  %v2452 = vor.u32 %v2448, %v2451
  %v2453 = vrot.slane %v2452, 4
  %v2455 = vshll.u32 %v2251, 16
  %v2457 = vrot.slane %v2455, 5
  %v2458 = vsel %vm214, %v2453, %v2457
  %v2459 = vshrl.u32 %v2251, 16
  %v2461 = vrot.slane %v2459, 4
  %v2462 = vor.u32 %v2461, %v2457
  %v2463 = vrot.slane %v2462, 4
  %v2465 = vshll.u32 %v2252, 16
  %v2467 = vrot.slane %v2465, 5
  %v2468 = vsel %vm214, %v2463, %v2467
  %v2470 = vshrl.u32 %v2253, 16
  %v2472 = vrot.slane %v2470, 4
  %v2473 = vshll.u32 %v2253, 16
  %v2475 = vrot.slane %v2473, 5
  %v2476 = vor.u32 %v2472, %v2475
  %v2477 = vrot.slane %v2476, 4
  %v2479 = vshll.u32 %v2254, 16
  %v2481 = vrot.slane %v2479, 5
  %v2482 = vsel %vm214, %v2477, %v2481
  %v2483 = vshrl.u32 %v2254, 16
  %v2485 = vrot.slane %v2483, 4
  %v2486 = vor.u32 %v2485, %v2481
  %v2487 = vrot.slane %v2486, 4
  %v2489 = vshll.u32 %v2255, 16
  %v2491 = vrot.slane %v2489, 5
  %v2492 = vsel %vm214, %v2487, %v2491
  %v2494 = vshrl.u32 %v2256, 16
  %v2496 = vrot.slane %v2494, 4
  %v2497 = vshll.u32 %v2256, 16
  %v2499 = vrot.slane %v2497, 5
  %v2500 = vor.u32 %v2496, %v2499
  %v2501 = vrot.slane %v2500, 4
  %v2503 = vshll.u32 %v2257, 16
  %v2505 = vrot.slane %v2503, 5
  %v2506 = vsel %vm214, %v2501, %v2505
  %v2507 = vshrl.u32 %v2257, 16
  %v2509 = vrot.slane %v2507, 4
  %v2510 = vor.u32 %v2509, %v2505
  %v2511 = vrot.slane %v2510, 4
  %v2513 = vshll.u32 %v2258, 16
  %v2515 = vrot.slane %v2513, 5
  %v2516 = vsel %vm214, %v2511, %v2515
  %v2518 = vshrl.u32 %v2259, 16
  %v2520 = vrot.slane %v2518, 4
  %v2521 = vshll.u32 %v2259, 16
  %v2523 = vrot.slane %v2521, 5
  %v2524 = vor.u32 %v2520, %v2523
  %v2525 = vrot.slane %v2524, 4
  %v2527 = vshll.u32 %v2260, 16
  %v2529 = vrot.slane %v2527, 5
  %v2530 = vsel %vm214, %v2525, %v2529
  %v2531 = vshrl.u32 %v2260, 16
  %v2533 = vrot.slane %v2531, 4
  %v2534 = vor.u32 %v2533, %v2529
  %v2535 = vrot.slane %v2534, 4
  %v2537 = vshll.u32 %v2261, 16
  %v2539 = vrot.slane %v2537, 5
  %v2540 = vsel %vm214, %v2535, %v2539
  %v2542 = vshrl.u32 %v2262, 16
  %v2544 = vrot.slane %v2542, 4
  %v2545 = vshll.u32 %v2262, 16
  %v2547 = vrot.slane %v2545, 5
  %v2548 = vor.u32 %v2544, %v2547
  %v2549 = vrot.slane %v2548, 4
  %v2551 = vshll.u32 %v2263, 16
  %v2553 = vrot.slane %v2551, 5
  %v2554 = vsel %vm214, %v2549, %v2553
  %v2555 = vshrl.u32 %v2263, 16
  %v2557 = vrot.slane %v2555, 4
  %v2558 = vor.u32 %v2557, %v2553
  %v2559 = vrot.slane %v2558, 4
  %v2561 = vshll.u32 %v2264, 16
  %v2563 = vrot.slane %v2561, 5
  %v2564 = vsel %vm214, %v2559, %v2563
  %v2566 = vshrl.u32 %v2265, 16
  %v2568 = vrot.slane %v2566, 4
  %v2569 = vshll.u32 %v2265, 16
  %v2571 = vrot.slane %v2569, 5
  %v2572 = vor.u32 %v2568, %v2571
  %v2573 = vrot.slane %v2572, 4
  %v2575 = vshll.u32 %v2266, 16
  %v2577 = vrot.slane %v2575, 5
  %v2578 = vsel %vm214, %v2573, %v2577
  %v2579 = vshrl.u32 %v2266, 16
  %v2581 = vrot.slane %v2579, 4
  %v2582 = vor.u32 %v2581, %v2577
  %v2583 = vrot.slane %v2582, 4
  %v2585 = vshll.u32 %v2267, 16
  %v2587 = vrot.slane %v2585, 5
  %v2588 = vsel %vm214, %v2583, %v2587
  %v2590 = vshrl.u32 %v2268, 16
  %v2592 = vrot.slane %v2590, 4
  %v2593 = vshll.u32 %v2268, 16
  %v2595 = vrot.slane %v2593, 5
  %v2596 = vor.u32 %v2592, %v2595
  %v2597 = vrot.slane %v2596, 4
  %v2599 = vshll.u32 %v2269, 16
  %v2601 = vrot.slane %v2599, 5
  %v2602 = vsel %vm214, %v2597, %v2601
  %v2603 = vshrl.u32 %v2269, 16
  %v2605 = vrot.slane %v2603, 4
  %v2606 = vor.u32 %v2605, %v2601
  %v2607 = vrot.slane %v2606, 4
  %v2609 = vshll.u32 %v2270, 16
  %v2611 = vrot.slane %v2609, 5
  %v2612 = vsel %vm214, %v2607, %v2611
  %v2614 = vshrl.u32 %v2271, 16
  %v2616 = vrot.slane %v2614, 4
  %v2617 = vshll.u32 %v2271, 16
  %v2619 = vrot.slane %v2617, 5
  %v2620 = vor.u32 %v2616, %v2619
  %v2621 = vrot.slane %v2620, 4
  %v2623 = vshll.u32 %v2272, 16
  %v2625 = vrot.slane %v2623, 5
  %v2626 = vsel %vm214, %v2621, %v2625
  %v2627 = vshrl.u32 %v2272, 16
  %v2629 = vrot.slane %v2627, 4
  %v2630 = vor.u32 %v2629, %v2625
  %v2631 = vrot.slane %v2630, 4
  %v2633 = vshll.u32 %v2273, 16
  %v2635 = vrot.slane %v2633, 5
  %v2636 = vsel %vm214, %v2631, %v2635
  %v2638 = vshrl.u32 %v2274, 16
  %v2640 = vrot.slane %v2638, 4
  %v2641 = vshll.u32 %v2274, 16
  %v2643 = vrot.slane %v2641, 5
  %v2644 = vor.u32 %v2640, %v2643
  %v2645 = vrot.slane %v2644, 4
  %v2647 = vshll.u32 %v2275, 16
  %v2649 = vrot.slane %v2647, 5
  %v2650 = vsel %vm214, %v2645, %v2649
  %v2651 = vshrl.u32 %v2275, 16
  %v2653 = vrot.slane %v2651, 4
  %v2654 = vor.u32 %v2653, %v2649
  %v2655 = vrot.slane %v2654, 4
  %v2657 = vshll.u32 %v2276, 16
  %v2659 = vrot.slane %v2657, 5
  %v2660 = vsel %vm214, %v2655, %v2659
  %v2661 = vunpack.c.l.b16 %v2290
  %v2662 = vunpack.c.l.b16 %v2300
  %v2663 = vunpack.c.l.b16 %v2314
  %v2664 = vunpack.c.l.b16 %v2324
  %v2665 = vunpack.c.l.b16 %v2338
  %v2666 = vunpack.c.l.b16 %v2348
  %v2667 = vunpack.c.l.b16 %v2362
  %v2668 = vunpack.c.l.b16 %v2372
  %v2669 = vunpack.c.l.b16 %v2386
  %v2670 = vunpack.c.l.b16 %v2396
  %v2671 = vunpack.c.l.b16 %v2410
  %v2672 = vunpack.c.l.b16 %v2420
  %v2673 = vunpack.c.l.b16 %v2434
  %v2674 = vunpack.c.l.b16 %v2444
  %v2675 = vunpack.c.l.b16 %v2458
  %v2676 = vunpack.c.l.b16 %v2468
  %v2677 = vunpack.c.l.b16 %v2482
  %v2678 = vunpack.c.l.b16 %v2492
  %v2679 = vunpack.c.l.b16 %v2506
  %v2680 = vunpack.c.l.b16 %v2516
  %v2681 = vunpack.c.l.b16 %v2530
  %v2682 = vunpack.c.l.b16 %v2540
  %v2683 = vunpack.c.l.b16 %v2554
  %v2684 = vunpack.c.l.b16 %v2564
  %v2685 = vunpack.c.l.b16 %v2578
  %v2686 = vunpack.c.l.b16 %v2588
  %v2687 = vunpack.c.l.b16 %v2602
  %v2688 = vunpack.c.l.b16 %v2612
  %v2689 = vunpack.c.l.b16 %v2626
  %v2690 = vunpack.c.l.b16 %v2636
  %v2691 = vunpack.c.l.b16 %v2650
  %v2692 = vunpack.c.l.b16 %v2660
  %v2693 = vpack.c.b16 %v2662, %v2661
  %v2694 = vpack.c.b16 %v2664, %v2663
  %v2695 = vpack.c.b16 %v2666, %v2665
  %v2696 = vpack.c.b16 %v2668, %v2667
  %v2697 = vpack.c.b16 %v2670, %v2669
  %v2698 = vpack.c.b16 %v2672, %v2671
  %v2699 = vpack.c.b16 %v2674, %v2673
  %v2700 = vpack.c.b16 %v2676, %v2675
  %v2701 = vpack.c.b16 %v2678, %v2677
  %v2702 = vpack.c.b16 %v2680, %v2679
  %v2703 = vpack.c.b16 %v2682, %v2681
  %v2704 = vpack.c.b16 %v2684, %v2683
  %v2705 = vpack.c.b16 %v2686, %v2685
  %v2706 = vpack.c.b16 %v2688, %v2687
  %v2707 = vpack.c.b16 %v2690, %v2689
  %v2708 = vpack.c.b16 %v2692, %v2691
  %2709 = vrot.lane.b32.xlu0 %v2693, 96
  %v2710 = vpop.permute.xlu0 %2709
  %2711 = vrot.lane.b32.xlu0 %v2694, 96
  %v2712 = vpop.permute.xlu0 %2711
  %2713 = vrot.lane.b32.xlu0 %v2695, 96
  %v2714 = vpop.permute.xlu0 %2713
  %2715 = vrot.lane.b32.xlu0 %v2696, 96
  %v2716 = vpop.permute.xlu0 %2715
  %2717 = vrot.lane.b32.xlu0 %v2697, 96
  %v2718 = vpop.permute.xlu0 %2717
  %2719 = vrot.lane.b32.xlu0 %v2698, 96
  %v2720 = vpop.permute.xlu0 %2719
  %2721 = vrot.lane.b32.xlu0 %v2699, 96
  %v2722 = vpop.permute.xlu0 %2721
  %2723 = vrot.lane.b32.xlu0 %v2700, 96
  %v2724 = vpop.permute.xlu0 %2723
  %2725 = vrot.lane.b32.xlu0 %v2701, 96
  %v2726 = vpop.permute.xlu0 %2725
  %2727 = vrot.lane.b32.xlu0 %v2702, 96
  %v2728 = vpop.permute.xlu0 %2727
  %2729 = vrot.lane.b32.xlu0 %v2703, 96
  %v2730 = vpop.permute.xlu0 %2729
  %2731 = vrot.lane.b32.xlu0 %v2704, 96
  %v2732 = vpop.permute.xlu0 %2731
  %2733 = vrot.lane.b32.xlu0 %v2705, 96
  %v2734 = vpop.permute.xlu0 %2733
  %2735 = vrot.lane.b32.xlu0 %v2706, 96
  %v2736 = vpop.permute.xlu0 %2735
  %2737 = vrot.lane.b32.xlu0 %v2707, 96
  %v2738 = vpop.permute.xlu0 %2737
  %2739 = vrot.lane.b32.xlu0 %v2708, 96
  %v2740 = vpop.permute.xlu0 %2739
  %2757 = vst.msk [vmem:[#allocation2 + $0x8] sm:$0xff] %vm1200, %v2710
  %2758 = vst.msk [vmem:[#allocation2 + $0x20] sm:$0xff] %vm1200, %v2712
  %2759 = vst.msk [vmem:[#allocation2 + $0x38] sm:$0xff] %vm1200, %v2714
  %2760 = vst.msk [vmem:[#allocation2 + $0x50] sm:$0xff] %vm1200, %v2716
  %2761 = vst.msk [vmem:[#allocation2 + $0x68] sm:$0xff] %vm1200, %v2718
  %2762 = vst.msk [vmem:[#allocation2 + $0x80] sm:$0xff] %vm1200, %v2720
  %2763 = vst.msk [vmem:[#allocation2 + $0x98] sm:$0xff] %vm1200, %v2722
  %2764 = vst.msk [vmem:[#allocation2 + $0xb0] sm:$0xff] %vm1200, %v2724
  %2765 = vst.msk [vmem:[#allocation2 + $0xc8] sm:$0xff] %vm1200, %v2726
  %2766 = vst.msk [vmem:[#allocation2 + $0xe0] sm:$0xff] %vm1200, %v2728
  %2767 = vst.msk [vmem:[#allocation2 + $0xf8] sm:$0xff] %vm1200, %v2730
  %2768 = vst.msk [vmem:[#allocation2 + $0x110] sm:$0xff] %vm1200, %v2732
  %2769 = vst.msk [vmem:[#allocation2 + $0x128] sm:$0xff] %vm1200, %v2734
  %2770 = vst.msk [vmem:[#allocation2 + $0x140] sm:$0xff] %vm1200, %v2736
  %2771 = vst.msk [vmem:[#allocation2 + $0x158] sm:$0xff] %vm1200, %v2738
  %2772 = vst.msk [vmem:[#allocation2 + $0x170] sm:$0xff] %vm1200, %v2740
  %v2773 = vld [vmem:[%s2052] sm:$0xe]
  %v2774 = vld [vmem:[%s2052 + $0x4] sm:$0xf]
  %v2775 = vld [vmem:[%s2052 + $0x8] sm:$0x1]
  %v2776 = vld [vmem:[%s2052 + $0xc] sm:$0xe]
  %v2777 = vld [vmem:[%s2052 + $0x10] sm:$0xf]
  %v2778 = vld [vmem:[%s2052 + $0x14] sm:$0x1]
  %v2779 = vld [vmem:[%s2052 + $0x18] sm:$0xe]
  %v2780 = vld [vmem:[%s2052 + $0x1c] sm:$0xf]
  %v2781 = vld [vmem:[%s2052 + $0x20] sm:$0x1]
  %v2782 = vld [vmem:[%s2052 + $0x24] sm:$0xe]
  %v2783 = vld [vmem:[%s2052 + $0x28] sm:$0xf]
  %v2784 = vld [vmem:[%s2052 + $0x2c] sm:$0x1]
  %v2785 = vld [vmem:[%s2052 + $0x30] sm:$0xe]
  %v2786 = vld [vmem:[%s2052 + $0x34] sm:$0xf]
  %v2787 = vld [vmem:[%s2052 + $0x38] sm:$0x1]
  %v2788 = vld [vmem:[%s2052 + $0x3c] sm:$0xe]
  %v2789 = vld [vmem:[%s2052 + $0x40] sm:$0xf]
  %v2790 = vld [vmem:[%s2052 + $0x44] sm:$0x1]
  %v2791 = vld [vmem:[%s2052 + $0x48] sm:$0xe]
  %v2792 = vld [vmem:[%s2052 + $0x4c] sm:$0xf]
  %v2793 = vld [vmem:[%s2052 + $0x50] sm:$0x1]
  %v2794 = vld [vmem:[%s2052 + $0x54] sm:$0xe]
  %v2795 = vld [vmem:[%s2052 + $0x58] sm:$0xf]
  %v2796 = vld [vmem:[%s2052 + $0x5c] sm:$0x1]
  %v2797 = vld [vmem:[%s2052 + $0x60] sm:$0xe]
  %v2798 = vld [vmem:[%s2052 + $0x64] sm:$0xf]
  %v2799 = vld [vmem:[%s2052 + $0x68] sm:$0x1]
  %v2800 = vld [vmem:[%s2052 + $0x6c] sm:$0xe]
  %v2801 = vld [vmem:[%s2052 + $0x70] sm:$0xf]
  %v2802 = vld [vmem:[%s2052 + $0x74] sm:$0x1]
  %v2803 = vld [vmem:[%s2052 + $0x78] sm:$0xe]
  %v2804 = vld [vmem:[%s2052 + $0x7c] sm:$0xf]
  %v2805 = vld [vmem:[%s2052 + $0x80] sm:$0x1]
  %v2806 = vld [vmem:[%s2052 + $0x84] sm:$0xe]
  %v2807 = vld [vmem:[%s2052 + $0x88] sm:$0xf]
  %v2808 = vld [vmem:[%s2052 + $0x8c] sm:$0x1]
  %v2809 = vld [vmem:[%s2052 + $0x90] sm:$0xe]
  %v2810 = vld [vmem:[%s2052 + $0x94] sm:$0xf]
  %v2811 = vld [vmem:[%s2052 + $0x98] sm:$0x1]
  %v2812 = vld [vmem:[%s2052 + $0x9c] sm:$0xe]
  %v2813 = vld [vmem:[%s2052 + $0xa0] sm:$0xf]
  %v2814 = vld [vmem:[%s2052 + $0xa4] sm:$0x1]
  %v2815 = vld [vmem:[%s2052 + $0xa8] sm:$0xe]
  %v2816 = vld [vmem:[%s2052 + $0xac] sm:$0xf]
  %v2817 = vld [vmem:[%s2052 + $0xb0] sm:$0x1]
  %v2818 = vld [vmem:[%s2052 + $0xb4] sm:$0xe]
  %v2819 = vld [vmem:[%s2052 + $0xb8] sm:$0xf]
  %v2820 = vld [vmem:[%s2052 + $0xbc] sm:$0x1]
  %v2869 = vrot.slane %v2773, 5
  %v2870 = vrot.slane %v2869, 4
  %v2871 = vrot.slane %v2774, 5
  %v2872 = vsel %vm810, %v2870, %v2871
  %v2873 = vrot.slane %v2871, 4
  %v2874 = vrot.slane %v2775, 5
  %v2875 = vsel %vm810, %v2873, %v2874
  %v2876 = vrot.slane %v2776, 5
  %v2877 = vrot.slane %v2876, 4
  %v2878 = vrot.slane %v2777, 5
  %v2879 = vsel %vm810, %v2877, %v2878
  %v2880 = vrot.slane %v2878, 4
  %v2881 = vrot.slane %v2778, 5
  %v2882 = vsel %vm810, %v2880, %v2881
  %v2883 = vrot.slane %v2779, 5
  %v2884 = vrot.slane %v2883, 4
  %v2885 = vrot.slane %v2780, 5
  %v2886 = vsel %vm810, %v2884, %v2885
  %v2887 = vrot.slane %v2885, 4
  %v2888 = vrot.slane %v2781, 5
  %v2889 = vsel %vm810, %v2887, %v2888
  %v2890 = vrot.slane %v2782, 5
  %v2891 = vrot.slane %v2890, 4
  %v2892 = vrot.slane %v2783, 5
  %v2893 = vsel %vm810, %v2891, %v2892
  %v2894 = vrot.slane %v2892, 4
  %v2895 = vrot.slane %v2784, 5
  %v2896 = vsel %vm810, %v2894, %v2895
  %v2897 = vrot.slane %v2785, 5
  %v2898 = vrot.slane %v2897, 4
  %v2899 = vrot.slane %v2786, 5
  %v2900 = vsel %vm810, %v2898, %v2899
  %v2901 = vrot.slane %v2899, 4
  %v2902 = vrot.slane %v2787, 5
  %v2903 = vsel %vm810, %v2901, %v2902
  %v2904 = vrot.slane %v2788, 5
  %v2905 = vrot.slane %v2904, 4
  %v2906 = vrot.slane %v2789, 5
  %v2907 = vsel %vm810, %v2905, %v2906
  %v2908 = vrot.slane %v2906, 4
  %v2909 = vrot.slane %v2790, 5
  %v2910 = vsel %vm810, %v2908, %v2909
  %v2911 = vrot.slane %v2791, 5
  %v2912 = vrot.slane %v2911, 4
  %v2913 = vrot.slane %v2792, 5
  %v2914 = vsel %vm810, %v2912, %v2913
  %v2915 = vrot.slane %v2913, 4
  %v2916 = vrot.slane %v2793, 5
  %v2917 = vsel %vm810, %v2915, %v2916
  %v2918 = vrot.slane %v2794, 5
  %v2919 = vrot.slane %v2918, 4
  %v2920 = vrot.slane %v2795, 5
  %v2921 = vsel %vm810, %v2919, %v2920
  %v2922 = vrot.slane %v2920, 4
  %v2923 = vrot.slane %v2796, 5
  %v2924 = vsel %vm810, %v2922, %v2923
  %v2925 = vrot.slane %v2797, 5
  %v2926 = vrot.slane %v2925, 4
  %v2927 = vrot.slane %v2798, 5
  %v2928 = vsel %vm810, %v2926, %v2927
  %v2929 = vrot.slane %v2927, 4
  %v2930 = vrot.slane %v2799, 5
  %v2931 = vsel %vm810, %v2929, %v2930
  %v2932 = vrot.slane %v2800, 5
  %v2933 = vrot.slane %v2932, 4
  %v2934 = vrot.slane %v2801, 5
  %v2935 = vsel %vm810, %v2933, %v2934
  %v2936 = vrot.slane %v2934, 4
  %v2937 = vrot.slane %v2802, 5
  %v2938 = vsel %vm810, %v2936, %v2937
  %v2939 = vrot.slane %v2803, 5
  %v2940 = vrot.slane %v2939, 4
  %v2941 = vrot.slane %v2804, 5
  %v2942 = vsel %vm810, %v2940, %v2941
  %v2943 = vrot.slane %v2941, 4
  %v2944 = vrot.slane %v2805, 5
  %v2945 = vsel %vm810, %v2943, %v2944
  %v2946 = vrot.slane %v2806, 5
  %v2947 = vrot.slane %v2946, 4
  %v2948 = vrot.slane %v2807, 5
  %v2949 = vsel %vm810, %v2947, %v2948
  %v2950 = vrot.slane %v2948, 4
  %v2951 = vrot.slane %v2808, 5
  %v2952 = vsel %vm810, %v2950, %v2951
  %v2953 = vrot.slane %v2809, 5
  %v2954 = vrot.slane %v2953, 4
  %v2955 = vrot.slane %v2810, 5
  %v2956 = vsel %vm810, %v2954, %v2955
  %v2957 = vrot.slane %v2955, 4
  %v2958 = vrot.slane %v2811, 5
  %v2959 = vsel %vm810, %v2957, %v2958
  %v2960 = vrot.slane %v2812, 5
  %v2961 = vrot.slane %v2960, 4
  %v2962 = vrot.slane %v2813, 5
  %v2963 = vsel %vm810, %v2961, %v2962
  %v2964 = vrot.slane %v2962, 4
  %v2965 = vrot.slane %v2814, 5
  %v2966 = vsel %vm810, %v2964, %v2965
  %v2967 = vrot.slane %v2815, 5
  %v2968 = vrot.slane %v2967, 4
  %v2969 = vrot.slane %v2816, 5
  %v2970 = vsel %vm810, %v2968, %v2969
  %v2971 = vrot.slane %v2969, 4
  %v2972 = vrot.slane %v2817, 5
  %v2973 = vsel %vm810, %v2971, %v2972
  %v2974 = vrot.slane %v2818, 5
  %v2975 = vrot.slane %v2974, 4
  %v2976 = vrot.slane %v2819, 5
  %v2977 = vsel %vm810, %v2975, %v2976
  %v2978 = vrot.slane %v2976, 4
  %v2979 = vrot.slane %v2820, 5
  %v2980 = vsel %vm810, %v2978, %v2979
  %v2981 = vunpack.c.l.b16 %v2872
  %v2982 = vunpack.c.l.b16 %v2875
  %v2983 = vunpack.c.l.b16 %v2879
  %v2984 = vunpack.c.l.b16 %v2882
  %v2985 = vunpack.c.l.b16 %v2886
  %v2986 = vunpack.c.l.b16 %v2889
  %v2987 = vunpack.c.l.b16 %v2893
  %v2988 = vunpack.c.l.b16 %v2896
  %v2989 = vunpack.c.l.b16 %v2900
  %v2990 = vunpack.c.l.b16 %v2903
  %v2991 = vunpack.c.l.b16 %v2907
  %v2992 = vunpack.c.l.b16 %v2910
  %v2993 = vunpack.c.l.b16 %v2914
  %v2994 = vunpack.c.l.b16 %v2917
  %v2995 = vunpack.c.l.b16 %v2921
  %v2996 = vunpack.c.l.b16 %v2924
  %v2997 = vunpack.c.l.b16 %v2928
  %v2998 = vunpack.c.l.b16 %v2931
  %v2999 = vunpack.c.l.b16 %v2935
  %v3000 = vunpack.c.l.b16 %v2938
  %v3001 = vunpack.c.l.b16 %v2942
  %v3002 = vunpack.c.l.b16 %v2945
  %v3003 = vunpack.c.l.b16 %v2949
  %v3004 = vunpack.c.l.b16 %v2952
  %v3005 = vunpack.c.l.b16 %v2956
  %v3006 = vunpack.c.l.b16 %v2959
  %v3007 = vunpack.c.l.b16 %v2963
  %v3008 = vunpack.c.l.b16 %v2966
  %v3009 = vunpack.c.l.b16 %v2970
  %v3010 = vunpack.c.l.b16 %v2973
  %v3011 = vunpack.c.l.b16 %v2977
  %v3012 = vunpack.c.l.b16 %v2980
  %v3013 = vpack.c.b16 %v2982, %v2981
  %v3014 = vpack.c.b16 %v2984, %v2983
  %v3015 = vpack.c.b16 %v2986, %v2985
  %v3016 = vpack.c.b16 %v2988, %v2987
  %v3017 = vpack.c.b16 %v2990, %v2989
  %v3018 = vpack.c.b16 %v2992, %v2991
  %v3019 = vpack.c.b16 %v2994, %v2993
  %v3020 = vpack.c.b16 %v2996, %v2995
  %v3021 = vpack.c.b16 %v2998, %v2997
  %v3022 = vpack.c.b16 %v3000, %v2999
  %v3023 = vpack.c.b16 %v3002, %v3001
  %v3024 = vpack.c.b16 %v3004, %v3003
  %v3025 = vpack.c.b16 %v3006, %v3005
  %v3026 = vpack.c.b16 %v3008, %v3007
  %v3027 = vpack.c.b16 %v3010, %v3009
  %v3028 = vpack.c.b16 %v3012, %v3011
  %3045 = vst.msk [vmem:[#allocation2 + $0x10] sm:$0xff] %vm147, %v3013
  %3046 = vst.msk [vmem:[#allocation2 + $0x28] sm:$0xff] %vm147, %v3014
  %3047 = vst.msk [vmem:[#allocation2 + $0x40] sm:$0xff] %vm147, %v3015
  %3048 = vst.msk [vmem:[#allocation2 + $0x58] sm:$0xff] %vm147, %v3016
  %3049 = vst.msk [vmem:[#allocation2 + $0x70] sm:$0xff] %vm147, %v3017
  %3050 = vst.msk [vmem:[#allocation2 + $0x88] sm:$0xff] %vm147, %v3018
  %3051 = vst.msk [vmem:[#allocation2 + $0xa0] sm:$0xff] %vm147, %v3019
  %3052 = vst.msk [vmem:[#allocation2 + $0xb8] sm:$0xff] %vm147, %v3020
  %3053 = vst.msk [vmem:[#allocation2 + $0xd0] sm:$0xff] %vm147, %v3021
  %3054 = vst.msk [vmem:[#allocation2 + $0xe8] sm:$0xff] %vm147, %v3022
  %3055 = vst.msk [vmem:[#allocation2 + $0x100] sm:$0xff] %vm147, %v3023
  %3056 = vst.msk [vmem:[#allocation2 + $0x118] sm:$0xff] %vm147, %v3024
  %3057 = vst.msk [vmem:[#allocation2 + $0x130] sm:$0xff] %vm147, %v3025
  %3058 = vst.msk [vmem:[#allocation2 + $0x148] sm:$0xff] %vm147, %v3026
  %3059 = vst.msk [vmem:[#allocation2 + $0x160] sm:$0xff] %vm147, %v3027
  %3060 = vst.msk [vmem:[#allocation2 + $0x178] sm:$0xff] %vm147, %v3028
  %v3061 = vld [vmem:[#allocation2] sm:$0xff]
  %v3062 = vld [vmem:[#allocation2 + $0x8] sm:$0xff]
  %v3063 = vld [vmem:[#allocation2 + $0x10] sm:$0xff]
  %v3064 = vld [vmem:[#allocation2 + $0x18] sm:$0xff]
  %v3065 = vld [vmem:[#allocation2 + $0x20] sm:$0xff]
  %v3066 = vld [vmem:[#allocation2 + $0x28] sm:$0xff]
  %v3067 = vld [vmem:[#allocation2 + $0x30] sm:$0xff]
  %v3068 = vld [vmem:[#allocation2 + $0x38] sm:$0xff]
  %v3069 = vld [vmem:[#allocation2 + $0x40] sm:$0xff]
  %v3070 = vld [vmem:[#allocation2 + $0x48] sm:$0xff]
  %v3071 = vld [vmem:[#allocation2 + $0x50] sm:$0xff]
  %v3072 = vld [vmem:[#allocation2 + $0x58] sm:$0xff]
  %v3073 = vld [vmem:[#allocation2 + $0x60] sm:$0xff]
  %v3074 = vld [vmem:[#allocation2 + $0x68] sm:$0xff]
  %v3075 = vld [vmem:[#allocation2 + $0x70] sm:$0xff]
  %v3076 = vld [vmem:[#allocation2 + $0x78] sm:$0xff]
  %v3077 = vld [vmem:[#allocation2 + $0x80] sm:$0xff]
  %v3078 = vld [vmem:[#allocation2 + $0x88] sm:$0xff]
  %v3079 = vld [vmem:[#allocation2 + $0x90] sm:$0xff]
  %v3080 = vld [vmem:[#allocation2 + $0x98] sm:$0xff]
  %v3081 = vld [vmem:[#allocation2 + $0xa0] sm:$0xff]
  %v3082 = vld [vmem:[#allocation2 + $0xa8] sm:$0xff]
  %v3083 = vld [vmem:[#allocation2 + $0xb0] sm:$0xff]
  %v3084 = vld [vmem:[#allocation2 + $0xb8] sm:$0xff]
  %v3085 = vld [vmem:[#allocation2 + $0xc0] sm:$0xff]
  %v3086 = vld [vmem:[#allocation2 + $0xc8] sm:$0xff]
  %v3087 = vld [vmem:[#allocation2 + $0xd0] sm:$0xff]
  %v3088 = vld [vmem:[#allocation2 + $0xd8] sm:$0xff]
  %v3089 = vld [vmem:[#allocation2 + $0xe0] sm:$0xff]
  %v3090 = vld [vmem:[#allocation2 + $0xe8] sm:$0xff]
  %v3091 = vld [vmem:[#allocation2 + $0xf0] sm:$0xff]
  %v3092 = vld [vmem:[#allocation2 + $0xf8] sm:$0xff]
  %v3093 = vld [vmem:[#allocation2 + $0x100] sm:$0xff]
  %v3094 = vld [vmem:[#allocation2 + $0x108] sm:$0xff]
  %v3095 = vld [vmem:[#allocation2 + $0x110] sm:$0xff]
  %v3096 = vld [vmem:[#allocation2 + $0x118] sm:$0xff]
  %v3097 = vld [vmem:[#allocation2 + $0x120] sm:$0xff]
  %v3098 = vld [vmem:[#allocation2 + $0x128] sm:$0xff]
  %v3099 = vld [vmem:[#allocation2 + $0x130] sm:$0xff]
  %v3100 = vld [vmem:[#allocation2 + $0x138] sm:$0xff]
  %v3101 = vld [vmem:[#allocation2 + $0x140] sm:$0xff]
  %v3102 = vld [vmem:[#allocation2 + $0x148] sm:$0xff]
  %v3103 = vld [vmem:[#allocation2 + $0x150] sm:$0xff]
  %v3104 = vld [vmem:[#allocation2 + $0x158] sm:$0xff]
  %v3105 = vld [vmem:[#allocation2 + $0x160] sm:$0xff]
  %v3106 = vld [vmem:[#allocation2 + $0x168] sm:$0xff]
  %v3107 = vld [vmem:[#allocation2 + $0x170] sm:$0xff]
  %v3108 = vld [vmem:[#allocation2 + $0x178] sm:$0xff]
  %v3109 = vld [vmem:[%s1] sm:$0xf]
  %v3110 = vld [vmem:[%s1 + $0x4] sm:$0xf]
  %v3111 = vld [vmem:[%s1 + $0x8] sm:$0xf]
  %v3112 = vld [vmem:[%s1 + $0xc] sm:$0xf]
  %v3113 = vld [vmem:[%s1 + $0x10] sm:$0xf]
  %v3114 = vld [vmem:[%s1 + $0x14] sm:$0xf]
  %v3115 = vld [vmem:[%s1 + $0x18] sm:$0xf]
  %v3116 = vld [vmem:[%s1 + $0x1c] sm:$0xf]
  %v3117 = vld [vmem:[%s1 + $0x20] sm:$0xf]
  %v3118 = vld [vmem:[%s1 + $0x24] sm:$0xf]
  %v3119 = vld [vmem:[%s1 + $0x28] sm:$0xf]
  %v3120 = vld [vmem:[%s1 + $0x2c] sm:$0xf]
  %v3121 = vld [vmem:[%s1 + $0x30] sm:$0xf]
  %v3122 = vld [vmem:[%s1 + $0x34] sm:$0xf]
  %v3123 = vld [vmem:[%s1 + $0x38] sm:$0xf]
  %v3124 = vld [vmem:[%s1 + $0x3c] sm:$0xf]
  %v3125 = vld [vmem:[%s1 + $0x40] sm:$0xf]
  %v3126 = vld [vmem:[%s1 + $0x44] sm:$0xf]
  %v3127 = vld [vmem:[%s1 + $0x48] sm:$0xf]
  %v3128 = vld [vmem:[%s1 + $0x4c] sm:$0xf]
  %v3129 = vld [vmem:[%s1 + $0x50] sm:$0xf]
  %v3130 = vld [vmem:[%s1 + $0x54] sm:$0xf]
  %v3131 = vld [vmem:[%s1 + $0x58] sm:$0xf]
  %v3132 = vld [vmem:[%s1 + $0x5c] sm:$0xf]
  %v3133 = vld [vmem:[%s1 + $0x60] sm:$0xf]
  %v3134 = vld [vmem:[%s1 + $0x64] sm:$0xf]
  %v3135 = vld [vmem:[%s1 + $0x68] sm:$0xf]
  %v3136 = vld [vmem:[%s1 + $0x6c] sm:$0xf]
  %v3137 = vld [vmem:[%s1 + $0x70] sm:$0xf]
  %v3138 = vld [vmem:[%s1 + $0x74] sm:$0xf]
  %v3139 = vld [vmem:[%s1 + $0x78] sm:$0xf]
  %v3140 = vld [vmem:[%s1 + $0x7c] sm:$0xf]
  %v3141 = vld [vmem:[%s1 + $0x80] sm:$0xf]
  %v3142 = vld [vmem:[%s1 + $0x84] sm:$0xf]
  %v3143 = vld [vmem:[%s1 + $0x88] sm:$0xf]
  %v3144 = vld [vmem:[%s1 + $0x8c] sm:$0xf]
  %v3145 = vld [vmem:[%s2] sm:$0x1]
  %v3147 = vlaneseq
  %v3148 = vshrl.u32 %v3147, 7
  %v3149 = vsub.s32 0, %v3148
  %v3150 = vrot.slane %v3145, %v3149
  %v3188 = vunpack.c.l.b16 %v3109
  %v3189 = vunpack.c.l.b16 %v3110
  %v3190 = vunpack.c.l.b16 %v3111
  %v3191 = vunpack.c.l.b16 %v3112
  %v3192 = vunpack.c.l.b16 %v3113
  %v3193 = vunpack.c.l.b16 %v3114
  %v3194 = vunpack.c.l.b16 %v3115
  %v3195 = vunpack.c.l.b16 %v3116
  %v3196 = vunpack.c.l.b16 %v3117
  %v3197 = vunpack.c.l.b16 %v3118
  %v3198 = vunpack.c.l.b16 %v3119
  %v3199 = vunpack.c.l.b16 %v3120
  %v3200 = vunpack.c.l.b16 %v3121
  %v3201 = vunpack.c.l.b16 %v3122
  %v3202 = vunpack.c.l.b16 %v3123
  %v3203 = vunpack.c.l.b16 %v3124
  %v3204 = vunpack.c.l.b16 %v3125
  %v3205 = vunpack.c.l.b16 %v3126
  %v3206 = vunpack.c.l.b16 %v3127
  %v3207 = vunpack.c.l.b16 %v3128
  %v3208 = vunpack.c.l.b16 %v3129
  %v3209 = vunpack.c.l.b16 %v3130
  %v3210 = vunpack.c.l.b16 %v3131
  %v3211 = vunpack.c.l.b16 %v3132
  %v3212 = vunpack.c.l.b16 %v3133
  %v3213 = vunpack.c.l.b16 %v3134
  %v3214 = vunpack.c.l.b16 %v3135
  %v3215 = vunpack.c.l.b16 %v3136
  %v3216 = vunpack.c.l.b16 %v3137
  %v3217 = vunpack.c.l.b16 %v3138
  %v3218 = vunpack.c.l.b16 %v3139
  %v3219 = vunpack.c.l.b16 %v3140
  %v3220 = vunpack.c.l.b16 %v3141
  %v3221 = vunpack.c.l.b16 %v3142
  %v3222 = vunpack.c.l.b16 %v3143
  %v3223 = vunpack.c.l.b16 %v3144
  %v3224 = vpack.c.b16 %v3189, %v3188
  %v3225 = vpack.c.b16 %v3191, %v3190
  %v3226 = vpack.c.b16 %v3193, %v3192
  %v3227 = vpack.c.b16 %v3195, %v3194
  %v3228 = vpack.c.b16 %v3197, %v3196
  %v3229 = vpack.c.b16 %v3199, %v3198
  %v3230 = vpack.c.b16 %v3201, %v3200
  %v3231 = vpack.c.b16 %v3203, %v3202
  %v3232 = vpack.c.b16 %v3205, %v3204
  %v3233 = vpack.c.b16 %v3207, %v3206
  %v3234 = vpack.c.b16 %v3209, %v3208
  %v3235 = vpack.c.b16 %v3211, %v3210
  %v3236 = vpack.c.b16 %v3213, %v3212
  %v3237 = vpack.c.b16 %v3215, %v3214
  %v3238 = vpack.c.b16 %v3217, %v3216
  %v3239 = vpack.c.b16 %v3219, %v3218
  %v3240 = vpack.c.b16 %v3221, %v3220
  %v3241 = vpack.c.b16 %v3223, %v3222
  %v3261 = vsel %vm147, %v3063, 0
  %v3264 = vsel %vm147, %v3066, 0
  %v3267 = vsel %vm147, %v3069, 0
  %v3270 = vsel %vm147, %v3072, 0
  %v3273 = vsel %vm147, %v3075, 0
  %v3276 = vsel %vm147, %v3078, 0
  %v3279 = vsel %vm147, %v3081, 0
  %v3282 = vsel %vm147, %v3084, 0
  %v3285 = vsel %vm147, %v3087, 0
  %v3288 = vsel %vm147, %v3090, 0
  %v3291 = vsel %vm147, %v3093, 0
  %v3294 = vsel %vm147, %v3096, 0
  %v3297 = vsel %vm147, %v3099, 0
  %v3300 = vsel %vm147, %v3102, 0
  %v3303 = vsel %vm147, %v3105, 0
  %v3306 = vsel %vm147, %v3108, 0
  %3308 = vmatprep.subr.bf16.mxu0 0
  %3309 = vmatpush1.bf16.msra.mxu0 %v3224
  %3310 = vmatprep.subr.bf16.mxu0 0
  %3311 = vmatpush1.bf16.msra.mxu0 %v3225
  %3312 = vmatprep.subr.bf16.mxu0 0
  %3313 = vmatpush1.bf16.msra.mxu0 %v3226
  %3314 = vmatprep.subr.bf16.mxu0 0
  %3315 = vmatpush1.bf16.msra.mxu0 %v3227
  %3316 = vmatprep.subr.bf16.mxu0 0
  %3317 = vmatpush1.bf16.msra.mxu0 %v3228
  %3318 = vmatprep.subr.bf16.mxu0 0
  %3319 = vmatpush1.bf16.msra.mxu0 %v3229
  %3320 = vmatprep.subr.bf16.mxu0 0
  %3321 = vmatpush1.bf16.msra.mxu0 %v3230
  %3322 = vmatprep.subr.bf16.mxu0 0
  %3323 = vmatpush1.bf16.msra.mxu0 %v3231
  %3324 = vmatprep.subr.bf16.mxu0 0
  %3325 = vmatpush1.bf16.msra.mxu0 %v3232
  %3326 = vmatprep.subr.bf16.mxu0 0
  %3327 = vmatpush1.bf16.msra.mxu0 %v3233
  %3328 = vmatprep.subr.bf16.mxu0 0
  %3329 = vmatpush1.bf16.msra.mxu0 %v3234
  %3330 = vmatprep.subr.bf16.mxu0 0
  %3331 = vmatpush1.bf16.msra.mxu0 %v3235
  %3332 = vmatprep.subr.bf16.mxu0 0
  %3333 = vmatpush1.bf16.msra.mxu0 %v3236
  %3334 = vmatprep.subr.bf16.mxu0 0
  %3335 = vmatpush1.bf16.msra.mxu0 %v3237
  %3336 = vmatprep.subr.bf16.mxu0 0
  %3337 = vmatpush1.bf16.msra.mxu0 %v3238
  %3338 = vmatprep.subr.bf16.mxu0 0
  %3339 = vmatpush1.bf16.msra.mxu0 %v3239
  %3340 = vmatprep.mubr.bf16.mxu0 %v3062
  %3341 = vmatmul.mubr.bf16.gmra.mrb[0].mxu0 %v3061
  %v3342 = vpop.f32.mrb[0].mxu0
  %v3343 = vadd.f32 %v3150, %v3342
  %v3344 = vpop.f32.mrb[0].mxu0
  %v3345 = vpop.f32.mrb[0].mxu0
  %v3346 = vadd.f32 %v3150, %v3345
  %v3347 = vpop.f32.mrb[0].mxu0
  %3348 = vmatprep.mubr.bf16.mxu0 %v3065
  %3349 = vmatmul.mubr.bf16.gmra.mrb[0].mxu0 %v3064
  %v3350 = vpop.f32.mrb[0].mxu0
  %v3351 = vadd.f32 %v3150, %v3350
  %v3352 = vpop.f32.mrb[0].mxu0
  %v3353 = vpop.f32.mrb[0].mxu0
  %v3354 = vadd.f32 %v3150, %v3353
  %v3355 = vpop.f32.mrb[0].mxu0
  %3356 = vmatprep.mubr.bf16.mxu0 %v3068
  %3357 = vmatmul.mubr.bf16.gmra.mrb[0].mxu0 %v3067
  %v3358 = vpop.f32.mrb[0].mxu0
  %v3359 = vadd.f32 %v3150, %v3358
  %v3360 = vpop.f32.mrb[0].mxu0
  %v3361 = vpop.f32.mrb[0].mxu0
  %v3362 = vadd.f32 %v3150, %v3361
  %v3363 = vpop.f32.mrb[0].mxu0
  %3364 = vmatprep.mubr.bf16.mxu0 %v3071
  %3365 = vmatmul.mubr.bf16.gmra.mrb[0].mxu0 %v3070
  %v3366 = vpop.f32.mrb[0].mxu0
  %v3367 = vadd.f32 %v3150, %v3366
  %v3368 = vpop.f32.mrb[0].mxu0
  %v3369 = vpop.f32.mrb[0].mxu0
  %v3370 = vadd.f32 %v3150, %v3369
  %v3371 = vpop.f32.mrb[0].mxu0
  %3372 = vmatprep.mubr.bf16.mxu0 %v3074
  %3373 = vmatmul.mubr.bf16.gmra.mrb[0].mxu0 %v3073
  %v3374 = vpop.f32.mrb[0].mxu0
  %v3375 = vadd.f32 %v3150, %v3374
  %v3376 = vpop.f32.mrb[0].mxu0
  %v3377 = vpop.f32.mrb[0].mxu0
  %v3378 = vadd.f32 %v3150, %v3377
  %v3379 = vpop.f32.mrb[0].mxu0
  %3380 = vmatprep.mubr.bf16.mxu0 %v3077
  %3381 = vmatmul.mubr.bf16.gmra.mrb[0].mxu0 %v3076
  %v3382 = vpop.f32.mrb[0].mxu0
  %v3383 = vadd.f32 %v3150, %v3382
  %v3384 = vpop.f32.mrb[0].mxu0
  %v3385 = vpop.f32.mrb[0].mxu0
  %v3386 = vadd.f32 %v3150, %v3385
  %v3387 = vpop.f32.mrb[0].mxu0
  %3388 = vmatprep.mubr.bf16.mxu0 %v3080
  %3389 = vmatmul.mubr.bf16.gmra.mrb[0].mxu0 %v3079
  %v3390 = vpop.f32.mrb[0].mxu0
  %v3391 = vadd.f32 %v3150, %v3390
  %v3392 = vpop.f32.mrb[0].mxu0
  %v3393 = vpop.f32.mrb[0].mxu0
  %v3394 = vadd.f32 %v3150, %v3393
  %v3395 = vpop.f32.mrb[0].mxu0
  %3396 = vmatprep.mubr.bf16.mxu0 %v3083
  %3397 = vmatmul.mubr.bf16.gmra.mrb[0].mxu0 %v3082
  %v3398 = vpop.f32.mrb[0].mxu0
  %v3399 = vadd.f32 %v3150, %v3398
  %v3400 = vpop.f32.mrb[0].mxu0
  %v3401 = vpop.f32.mrb[0].mxu0
  %v3402 = vadd.f32 %v3150, %v3401
  %v3403 = vpop.f32.mrb[0].mxu0
  %3404 = vmatprep.mubr.bf16.mxu0 %v3086
  %3405 = vmatmul.mubr.bf16.gmra.mrb[0].mxu0 %v3085
  %v3406 = vpop.f32.mrb[0].mxu0
  %v3407 = vadd.f32 %v3150, %v3406
  %v3408 = vpop.f32.mrb[0].mxu0
  %v3409 = vpop.f32.mrb[0].mxu0
  %v3410 = vadd.f32 %v3150, %v3409
  %v3411 = vpop.f32.mrb[0].mxu0
  %3412 = vmatprep.mubr.bf16.mxu0 %v3089
  %3413 = vmatmul.mubr.bf16.gmra.mrb[0].mxu0 %v3088
  %v3414 = vpop.f32.mrb[0].mxu0
  %v3415 = vadd.f32 %v3150, %v3414
  %v3416 = vpop.f32.mrb[0].mxu0
  %v3417 = vpop.f32.mrb[0].mxu0
  %v3418 = vadd.f32 %v3150, %v3417
  %v3419 = vpop.f32.mrb[0].mxu0
  %3420 = vmatprep.mubr.bf16.mxu0 %v3092
  %3421 = vmatmul.mubr.bf16.gmra.mrb[0].mxu0 %v3091
  %v3422 = vpop.f32.mrb[0].mxu0
  %v3423 = vadd.f32 %v3150, %v3422
  %v3424 = vpop.f32.mrb[0].mxu0
  %v3425 = vpop.f32.mrb[0].mxu0
  %v3426 = vadd.f32 %v3150, %v3425
  %v3427 = vpop.f32.mrb[0].mxu0
  %3428 = vmatprep.mubr.bf16.mxu0 %v3095
  %3429 = vmatmul.mubr.bf16.gmra.mrb[0].mxu0 %v3094
  %v3430 = vpop.f32.mrb[0].mxu0
  %v3431 = vadd.f32 %v3150, %v3430
  %v3432 = vpop.f32.mrb[0].mxu0
  %v3433 = vpop.f32.mrb[0].mxu0
  %v3434 = vadd.f32 %v3150, %v3433
  %v3435 = vpop.f32.mrb[0].mxu0
  %3436 = vmatprep.mubr.bf16.mxu0 %v3098
  %3437 = vmatmul.mubr.bf16.gmra.mrb[0].mxu0 %v3097
  %v3438 = vpop.f32.mrb[0].mxu0
  %v3439 = vadd.f32 %v3150, %v3438
  %v3440 = vpop.f32.mrb[0].mxu0
  %v3441 = vpop.f32.mrb[0].mxu0
  %v3442 = vadd.f32 %v3150, %v3441
  %v3443 = vpop.f32.mrb[0].mxu0
  %3444 = vmatprep.mubr.bf16.mxu0 %v3101
  %3445 = vmatmul.mubr.bf16.gmra.mrb[0].mxu0 %v3100
  %v3446 = vpop.f32.mrb[0].mxu0
  %v3447 = vadd.f32 %v3150, %v3446
  %v3448 = vpop.f32.mrb[0].mxu0
  %v3449 = vpop.f32.mrb[0].mxu0
  %v3450 = vadd.f32 %v3150, %v3449
  %v3451 = vpop.f32.mrb[0].mxu0
  %3452 = vmatprep.mubr.bf16.mxu0 %v3104
  %3453 = vmatmul.mubr.bf16.gmra.mrb[0].mxu0 %v3103
  %v3454 = vpop.f32.mrb[0].mxu0
  %v3455 = vadd.f32 %v3150, %v3454
  %v3456 = vpop.f32.mrb[0].mxu0
  %v3457 = vpop.f32.mrb[0].mxu0
  %v3458 = vadd.f32 %v3150, %v3457
  %v3459 = vpop.f32.mrb[0].mxu0
  %3460 = vmatprep.mubr.bf16.mxu0 %v3107
  %3461 = vmatmul.mubr.bf16.gmra.mrb[0].mxu0 %v3106
  %v3462 = vpop.f32.mrb[0].mxu0
  %v3463 = vadd.f32 %v3150, %v3462
  %v3464 = vpop.f32.mrb[0].mxu0
  %v3465 = vpop.f32.mrb[0].mxu0
  %v3466 = vadd.f32 %v3150, %v3465
  %v3467 = vpop.f32.mrb[0].mxu0
  %3468 = vdwg.mxu0
  %3469 = vmatprep.subr.bf16.mxu0 0
  %3470 = vmatpush1.bf16.msra.mxu0 %v3240
  %3471 = vmatprep.subr.bf16.mxu0 0
  %3472 = vmatpush1.bf16.msra.mxu0 %v3241
  %3473 = vmatprep.subr.bf16.mxu0 0
  %3474 = vmatpush1.bf16.msra.mxu0 0
  %3475 = vmatprep.subr.bf16.mxu0 0
  %3476 = vmatpush1.bf16.msra.mxu0 0
  %3477 = vmatprep.subr.bf16.mxu0 0
  %3478 = vmatpush1.bf16.msra.mxu0 0
  %3479 = vmatprep.subr.bf16.mxu0 0
  %3480 = vmatpush1.bf16.msra.mxu0 0
  %3481 = vmatprep.subr.bf16.mxu0 0
  %3482 = vmatpush1.bf16.msra.mxu0 0
  %3483 = vmatprep.subr.bf16.mxu0 0
  %3484 = vmatpush1.bf16.msra.mxu0 0
  %3485 = vmatprep.subr.bf16.mxu0 0
  %3486 = vmatpush1.bf16.msra.mxu0 0
  %3487 = vmatprep.subr.bf16.mxu0 0
  %3488 = vmatpush1.bf16.msra.mxu0 0
  %3489 = vmatprep.subr.bf16.mxu0 0
  %3490 = vmatpush1.bf16.msra.mxu0 0
  %3491 = vmatprep.subr.bf16.mxu0 0
  %3492 = vmatpush1.bf16.msra.mxu0 0
  %3493 = vmatprep.subr.bf16.mxu0 0
  %3494 = vmatpush1.bf16.msra.mxu0 0
  %3495 = vmatprep.subr.bf16.mxu0 0
  %3496 = vmatpush1.bf16.msra.mxu0 0
  %3497 = vmatprep.subr.bf16.mxu0 0
  %3498 = vmatpush1.bf16.msra.mxu0 0
  %3499 = vmatprep.subr.bf16.mxu0 0
  %3500 = vmatpush1.bf16.msra.mxu0 0
  %3501 = vmatprep.mubr.bf16.mxu0 0
  %3502 = vmatmul.mubr.bf16.gmra.mrb[0].mxu0 %v3261
  %v3503 = vpop.f32.mrb[0].mxu0
  %v3504 = vadd.f32 %v3343, %v3503
  %v3505 = vpop.f32.mrb[0].mxu0
  %v3506 = vpop.f32.mrb[0].mxu0
  %v3507 = vadd.f32 %v3346, %v3506
  %v3508 = vpop.f32.mrb[0].mxu0
  %3509 = vmatprep.mubr.bf16.mxu0 0
  %3510 = vmatmul.mubr.bf16.gmra.mrb[0].mxu0 %v3264
  %v3511 = vpop.f32.mrb[0].mxu0
  %v3512 = vadd.f32 %v3351, %v3511
  %v3513 = vpop.f32.mrb[0].mxu0
  %v3514 = vpop.f32.mrb[0].mxu0
  %v3515 = vadd.f32 %v3354, %v3514
  %v3516 = vpop.f32.mrb[0].mxu0
  %3517 = vmatprep.mubr.bf16.mxu0 0
  %3518 = vmatmul.mubr.bf16.gmra.mrb[0].mxu0 %v3267
  %v3519 = vpop.f32.mrb[0].mxu0
  %v3520 = vadd.f32 %v3359, %v3519
  %v3521 = vpop.f32.mrb[0].mxu0
  %v3522 = vpop.f32.mrb[0].mxu0
  %v3523 = vadd.f32 %v3362, %v3522
  %v3524 = vpop.f32.mrb[0].mxu0
  %3525 = vmatprep.mubr.bf16.mxu0 0
  %3526 = vmatmul.mubr.bf16.gmra.mrb[0].mxu0 %v3270
  %v3527 = vpop.f32.mrb[0].mxu0
  %v3528 = vadd.f32 %v3367, %v3527
  %v3529 = vpop.f32.mrb[0].mxu0
  %v3530 = vpop.f32.mrb[0].mxu0
  %v3531 = vadd.f32 %v3370, %v3530
  %v3532 = vpop.f32.mrb[0].mxu0
  %3533 = vmatprep.mubr.bf16.mxu0 0
  %3534 = vmatmul.mubr.bf16.gmra.mrb[0].mxu0 %v3273
  %v3535 = vpop.f32.mrb[0].mxu0
  %v3536 = vadd.f32 %v3375, %v3535
  %v3537 = vpop.f32.mrb[0].mxu0
  %v3538 = vpop.f32.mrb[0].mxu0
  %v3539 = vadd.f32 %v3378, %v3538
  %v3540 = vpop.f32.mrb[0].mxu0
  %3541 = vmatprep.mubr.bf16.mxu0 0
  %3542 = vmatmul.mubr.bf16.gmra.mrb[0].mxu0 %v3276
  %v3543 = vpop.f32.mrb[0].mxu0
  %v3544 = vadd.f32 %v3383, %v3543
  %v3545 = vpop.f32.mrb[0].mxu0
  %v3546 = vpop.f32.mrb[0].mxu0
  %v3547 = vadd.f32 %v3386, %v3546
  %v3548 = vpop.f32.mrb[0].mxu0
  %3549 = vmatprep.mubr.bf16.mxu0 0
  %3550 = vmatmul.mubr.bf16.gmra.mrb[0].mxu0 %v3279
  %v3551 = vpop.f32.mrb[0].mxu0
  %v3552 = vadd.f32 %v3391, %v3551
  %v3553 = vpop.f32.mrb[0].mxu0
  %v3554 = vpop.f32.mrb[0].mxu0
  %v3555 = vadd.f32 %v3394, %v3554
  %v3556 = vpop.f32.mrb[0].mxu0
  %3557 = vmatprep.mubr.bf16.mxu0 0
  %3558 = vmatmul.mubr.bf16.gmra.mrb[0].mxu0 %v3282
  %v3559 = vpop.f32.mrb[0].mxu0
  %v3560 = vadd.f32 %v3399, %v3559
  %v3561 = vpop.f32.mrb[0].mxu0
  %v3562 = vpop.f32.mrb[0].mxu0
  %v3563 = vadd.f32 %v3402, %v3562
  %v3564 = vpop.f32.mrb[0].mxu0
  %3565 = vmatprep.mubr.bf16.mxu0 0
  %3566 = vmatmul.mubr.bf16.gmra.mrb[0].mxu0 %v3285
  %v3567 = vpop.f32.mrb[0].mxu0
  %v3568 = vadd.f32 %v3407, %v3567
  %v3569 = vpop.f32.mrb[0].mxu0
  %v3570 = vpop.f32.mrb[0].mxu0
  %v3571 = vadd.f32 %v3410, %v3570
  %v3572 = vpop.f32.mrb[0].mxu0
  %3573 = vmatprep.mubr.bf16.mxu0 0
  %3574 = vmatmul.mubr.bf16.gmra.mrb[0].mxu0 %v3288
  %v3575 = vpop.f32.mrb[0].mxu0
  %v3576 = vadd.f32 %v3415, %v3575
  %v3577 = vpop.f32.mrb[0].mxu0
  %v3578 = vpop.f32.mrb[0].mxu0
  %v3579 = vadd.f32 %v3418, %v3578
  %v3580 = vpop.f32.mrb[0].mxu0
  %3581 = vmatprep.mubr.bf16.mxu0 0
  %3582 = vmatmul.mubr.bf16.gmra.mrb[0].mxu0 %v3291
  %v3583 = vpop.f32.mrb[0].mxu0
  %v3584 = vadd.f32 %v3423, %v3583
  %v3585 = vpop.f32.mrb[0].mxu0
  %v3586 = vpop.f32.mrb[0].mxu0
  %v3587 = vadd.f32 %v3426, %v3586
  %v3588 = vpop.f32.mrb[0].mxu0
  %3589 = vmatprep.mubr.bf16.mxu0 0
  %3590 = vmatmul.mubr.bf16.gmra.mrb[0].mxu0 %v3294
  %v3591 = vpop.f32.mrb[0].mxu0
  %v3592 = vadd.f32 %v3431, %v3591
  %v3593 = vpop.f32.mrb[0].mxu0
  %v3594 = vpop.f32.mrb[0].mxu0
  %v3595 = vadd.f32 %v3434, %v3594
  %v3596 = vpop.f32.mrb[0].mxu0
  %3597 = vmatprep.mubr.bf16.mxu0 0
  %3598 = vmatmul.mubr.bf16.gmra.mrb[0].mxu0 %v3297
  %v3599 = vpop.f32.mrb[0].mxu0
  %v3600 = vadd.f32 %v3439, %v3599
  %v3601 = vpop.f32.mrb[0].mxu0
  %v3602 = vpop.f32.mrb[0].mxu0
  %v3603 = vadd.f32 %v3442, %v3602
  %v3604 = vpop.f32.mrb[0].mxu0
  %3605 = vmatprep.mubr.bf16.mxu0 0
  %3606 = vmatmul.mubr.bf16.gmra.mrb[0].mxu0 %v3300
  %v3607 = vpop.f32.mrb[0].mxu0
  %v3608 = vadd.f32 %v3447, %v3607
  %v3609 = vpop.f32.mrb[0].mxu0
  %v3610 = vpop.f32.mrb[0].mxu0
  %v3611 = vadd.f32 %v3450, %v3610
  %v3612 = vpop.f32.mrb[0].mxu0
  %3613 = vmatprep.mubr.bf16.mxu0 0
  %3614 = vmatmul.mubr.bf16.gmra.mrb[0].mxu0 %v3303
  %v3615 = vpop.f32.mrb[0].mxu0
  %v3616 = vadd.f32 %v3455, %v3615
  %v3617 = vpop.f32.mrb[0].mxu0
  %v3618 = vpop.f32.mrb[0].mxu0
  %v3619 = vadd.f32 %v3458, %v3618
  %v3620 = vpop.f32.mrb[0].mxu0
  %3621 = vmatprep.mubr.bf16.mxu0 0
  %3622 = vmatmul.mubr.bf16.gmra.mrb[0].mxu0 %v3306
  %v3623 = vpop.f32.mrb[0].mxu0
  %v3624 = vadd.f32 %v3463, %v3623
  %v3625 = vpop.f32.mrb[0].mxu0
  %v3626 = vpop.f32.mrb[0].mxu0
  %v3627 = vadd.f32 %v3466, %v3626
  %v3628 = vpop.f32.mrb[0].mxu0
  %3629 = vdwg.mxu0
  %v3630 = vmax.f32 %v3504, 0.0
  %v3631 = vmax.f32 %v3507, 0.0
  %v3632 = vmax.f32 %v3512, 0.0
  %v3633 = vmax.f32 %v3515, 0.0
  %v3634 = vmax.f32 %v3520, 0.0
  %v3635 = vmax.f32 %v3523, 0.0
  %v3636 = vmax.f32 %v3528, 0.0
  %v3637 = vmax.f32 %v3531, 0.0
  %v3638 = vmax.f32 %v3536, 0.0
  %v3639 = vmax.f32 %v3539, 0.0
  %v3640 = vmax.f32 %v3544, 0.0
  %v3641 = vmax.f32 %v3547, 0.0
  %v3642 = vmax.f32 %v3552, 0.0
  %v3643 = vmax.f32 %v3555, 0.0
  %v3644 = vmax.f32 %v3560, 0.0
  %v3645 = vmax.f32 %v3563, 0.0
  %v3646 = vmax.f32 %v3568, 0.0
  %v3647 = vmax.f32 %v3571, 0.0
  %v3648 = vmax.f32 %v3576, 0.0
  %v3649 = vmax.f32 %v3579, 0.0
  %v3650 = vmax.f32 %v3584, 0.0
  %v3651 = vmax.f32 %v3587, 0.0
  %v3652 = vmax.f32 %v3592, 0.0
  %v3653 = vmax.f32 %v3595, 0.0
  %v3654 = vmax.f32 %v3600, 0.0
  %v3655 = vmax.f32 %v3603, 0.0
  %v3656 = vmax.f32 %v3608, 0.0
  %v3657 = vmax.f32 %v3611, 0.0
  %v3658 = vmax.f32 %v3616, 0.0
  %v3659 = vmax.f32 %v3619, 0.0
  %v3660 = vmax.f32 %v3624, 0.0
  %v3661 = vmax.f32 %v3627, 0.0
  %v3662 = vpack.c.bf16 %v3631, %v3630
  %v3663 = vpack.c.bf16 %v3633, %v3632
  %v3664 = vpack.c.bf16 %v3635, %v3634
  %v3665 = vpack.c.bf16 %v3637, %v3636
  %v3666 = vpack.c.bf16 %v3639, %v3638
  %v3667 = vpack.c.bf16 %v3641, %v3640
  %v3668 = vpack.c.bf16 %v3643, %v3642
  %v3669 = vpack.c.bf16 %v3645, %v3644
  %v3670 = vpack.c.bf16 %v3647, %v3646
  %v3671 = vpack.c.bf16 %v3649, %v3648
  %v3672 = vpack.c.bf16 %v3651, %v3650
  %v3673 = vpack.c.bf16 %v3653, %v3652
  %v3674 = vpack.c.bf16 %v3655, %v3654
  %v3675 = vpack.c.bf16 %v3657, %v3656
  %v3676 = vpack.c.bf16 %v3659, %v3658
  %v3677 = vpack.c.bf16 %v3661, %v3660
  %v3694 = vunpack.c.l.b16 %v3662
  %v3695 = vunpack.c.h.b16 %v3662
  %v3696 = vunpack.c.l.b16 %v3663
  %v3697 = vunpack.c.h.b16 %v3663
  %v3698 = vunpack.c.l.b16 %v3664
  %v3699 = vunpack.c.h.b16 %v3664
  %v3700 = vunpack.c.l.b16 %v3665
  %v3701 = vunpack.c.h.b16 %v3665
  %v3702 = vunpack.c.l.b16 %v3666
  %v3703 = vunpack.c.h.b16 %v3666
  %v3704 = vunpack.c.l.b16 %v3667
  %v3705 = vunpack.c.h.b16 %v3667
  %v3706 = vunpack.c.l.b16 %v3668
  %v3707 = vunpack.c.h.b16 %v3668
  %v3708 = vunpack.c.l.b16 %v3669
  %v3709 = vunpack.c.h.b16 %v3669
  %v3710 = vunpack.c.l.b16 %v3670
  %v3711 = vunpack.c.h.b16 %v3670
  %v3712 = vunpack.c.l.b16 %v3671
  %v3713 = vunpack.c.h.b16 %v3671
  %v3714 = vunpack.c.l.b16 %v3672
  %v3715 = vunpack.c.h.b16 %v3672
  %v3716 = vunpack.c.l.b16 %v3673
  %v3717 = vunpack.c.h.b16 %v3673
  %v3718 = vunpack.c.l.b16 %v3674
  %v3719 = vunpack.c.h.b16 %v3674
  %v3720 = vunpack.c.l.b16 %v3675
  %v3721 = vunpack.c.h.b16 %v3675
  %v3722 = vunpack.c.l.b16 %v3676
  %v3723 = vunpack.c.h.b16 %v3676
  %v3724 = vunpack.c.l.b16 %v3677
  %v3725 = vunpack.c.h.b16 %v3677
  %v3726 = vpack.c.b16 %v3694, %v3694
  %v3727 = vpack.c.b16 %v3695, %v3695
  %v3728 = vpack.c.b16 %v3696, %v3696
  %v3729 = vpack.c.b16 %v3697, %v3697
  %v3730 = vpack.c.b16 %v3698, %v3698
  %v3731 = vpack.c.b16 %v3699, %v3699
  %v3732 = vpack.c.b16 %v3700, %v3700
  %v3733 = vpack.c.b16 %v3701, %v3701
  %v3734 = vpack.c.b16 %v3702, %v3702
  %v3735 = vpack.c.b16 %v3703, %v3703
  %v3736 = vpack.c.b16 %v3704, %v3704
  %v3737 = vpack.c.b16 %v3705, %v3705
  %v3738 = vpack.c.b16 %v3706, %v3706
  %v3739 = vpack.c.b16 %v3707, %v3707
  %v3740 = vpack.c.b16 %v3708, %v3708
  %v3741 = vpack.c.b16 %v3709, %v3709
  %v3742 = vpack.c.b16 %v3710, %v3710
  %v3743 = vpack.c.b16 %v3711, %v3711
  %v3744 = vpack.c.b16 %v3712, %v3712
  %v3745 = vpack.c.b16 %v3713, %v3713
  %v3746 = vpack.c.b16 %v3714, %v3714
  %v3747 = vpack.c.b16 %v3715, %v3715
  %v3748 = vpack.c.b16 %v3716, %v3716
  %v3749 = vpack.c.b16 %v3717, %v3717
  %v3750 = vpack.c.b16 %v3718, %v3718
  %v3751 = vpack.c.b16 %v3719, %v3719
  %v3752 = vpack.c.b16 %v3720, %v3720
  %v3753 = vpack.c.b16 %v3721, %v3721
  %v3754 = vpack.c.b16 %v3722, %v3722
  %v3755 = vpack.c.b16 %v3723, %v3723
  %v3756 = vpack.c.b16 %v3724, %v3724
  %v3757 = vpack.c.b16 %v3725, %v3725
  %vm3790 = vcmask 519168
  %3791 = vst.msk [vmem:[%s3] sm:$0xf] %vm3790, %v3726
  %3792 = vst.msk [vmem:[%s3 + $0x4] sm:$0xf] %vm3790, %v3727
  %3793 = vst.msk [vmem:[%s3 + $0x8] sm:$0xf] %vm3790, %v3728
  %3794 = vst.msk [vmem:[%s3 + $0xc] sm:$0xf] %vm3790, %v3729
  %3795 = vst.msk [vmem:[%s3 + $0x10] sm:$0xf] %vm3790, %v3730
  %3796 = vst.msk [vmem:[%s3 + $0x14] sm:$0xf] %vm3790, %v3731
  %3797 = vst.msk [vmem:[%s3 + $0x18] sm:$0xf] %vm3790, %v3732
  %3798 = vst.msk [vmem:[%s3 + $0x1c] sm:$0xf] %vm3790, %v3733
  %3799 = vst.msk [vmem:[%s3 + $0x20] sm:$0xf] %vm3790, %v3734
  %3800 = vst.msk [vmem:[%s3 + $0x24] sm:$0xf] %vm3790, %v3735
  %3801 = vst.msk [vmem:[%s3 + $0x28] sm:$0xf] %vm3790, %v3736
  %3802 = vst.msk [vmem:[%s3 + $0x2c] sm:$0xf] %vm3790, %v3737
  %3803 = vst.msk [vmem:[%s3 + $0x30] sm:$0xf] %vm3790, %v3738
  %3804 = vst.msk [vmem:[%s3 + $0x34] sm:$0xf] %vm3790, %v3739
  %3805 = vst.msk [vmem:[%s3 + $0x38] sm:$0xf] %vm3790, %v3740
  %3806 = vst.msk [vmem:[%s3 + $0x3c] sm:$0xf] %vm3790, %v3741
  %3807 = vst.msk [vmem:[%s3 + $0x40] sm:$0xf] %vm3790, %v3742
  %3808 = vst.msk [vmem:[%s3 + $0x44] sm:$0xf] %vm3790, %v3743
  %3809 = vst.msk [vmem:[%s3 + $0x48] sm:$0xf] %vm3790, %v3744
  %3810 = vst.msk [vmem:[%s3 + $0x4c] sm:$0xf] %vm3790, %v3745
  %3811 = vst.msk [vmem:[%s3 + $0x50] sm:$0xf] %vm3790, %v3746
  %3812 = vst.msk [vmem:[%s3 + $0x54] sm:$0xf] %vm3790, %v3747
  %3813 = vst.msk [vmem:[%s3 + $0x58] sm:$0xf] %vm3790, %v3748
  %3814 = vst.msk [vmem:[%s3 + $0x5c] sm:$0xf] %vm3790, %v3749
  %3815 = vst.msk [vmem:[%s3 + $0x60] sm:$0xf] %vm3790, %v3750
  %3816 = vst.msk [vmem:[%s3 + $0x64] sm:$0xf] %vm3790, %v3751
  %3817 = vst.msk [vmem:[%s3 + $0x68] sm:$0xf] %vm3790, %v3752
  %3818 = vst.msk [vmem:[%s3 + $0x6c] sm:$0xf] %vm3790, %v3753
  %3819 = vst.msk [vmem:[%s3 + $0x70] sm:$0xf] %vm3790, %v3754
  %3820 = vst.msk [vmem:[%s3 + $0x74] sm:$0xf] %vm3790, %v3755
  %3821 = vst.msk [vmem:[%s3 + $0x78] sm:$0xf] %vm3790, %v3756
  %3822 = vst.msk [vmem:[%s3 + $0x7c] sm:$0xf] %vm3790, %v3757
  // Predicated region
  $region14: #{tpu_custom_call.1} parent=0 // pred_check
    _
  $region15: #{tpu_custom_call.1} parent=0 // pred_check_branch
    %3824 = sbr.rel (0) target = $region17
  $region16: #{tpu_custom_call.1} parent=0 // pred_region
    _
  $region17: #{tpu_custom_call.1} parent=0 // pred_fallthru
    _
  // Predicated region
  $region18: #{tpu_custom_call.1} parent=0 // pred_check
    _
  $region19: #{tpu_custom_call.1} parent=0 // pred_check_branch
    %3826 = sbr.rel (0) target = $region21
  $region20: #{tpu_custom_call.1} parent=0 // pred_region
    _
  $region21: #{tpu_custom_call.1} parent=0 // pred_fallthru
    _

</llo_original>
